<compile_context>
chip_gen: v7x
topology: tpu7x:2x2x1
jax: 0.10.0
libtpu: 0.0.40
codegen_flags: <defaults>
</compile_context>

<pallas_src>
import functools

import numpy as np
import jax
import jax.numpy as jnp
from jax.experimental import pallas as pl
from jax.experimental.pallas import tpu as pltpu


def _window_attention_kernel(*refs, num_heads, mask_windows, approx_recip, compute_dtype):
    if mask_windows:
        (x_ref, rpb_ref, mask_ref, wqkv_ref, bqkv_ref, wproj_ref, bproj_ref,
         o_ref, qkv_s, ctx_s) = refs
    else:
        (x_ref, rpb_ref, wqkv_ref, bqkv_ref, wproj_ref, bproj_ref,
         o_ref, qkv_s, ctx_s) = refs
        mask_ref = None

    BW, N, C = x_ref.shape
    H = num_heads
    hd = C // H
    M = BW * N
    cd = compute_dtype
    f32 = jnp.float32

    # ---- fused QKV projection: one lane-dense (M, C) @ (C, 3C) MXU matmul ----
    x2d = x_ref[...].astype(cd).reshape(M, C)
    qkv = jnp.dot(x2d, wqkv_ref[...], preferred_element_type=f32) + bqkv_ref[...]
    # scale is pre-folded into the Q columns of wqkv/bqkv in the wrapper.
    qkv_s[...] = qkv.astype(cd).reshape(BW, N, 3 * C)

    # ---- per-head attention core (loop does only cheap VMEM lane-slices;
    #      all matmuls are single-leading-batch einsums) ----
    for h in range(H):
        q = qkv_s[:, :, h * hd:(h + 1) * hd]                       # (BW, N, hd)
        k = qkv_s[:, :, C + h * hd:C + (h + 1) * hd]
        v = qkv_s[:, :, 2 * C + h * hd:2 * C + (h + 1) * hd]

        s = jnp.einsum("bqd,bkd->bqk", q, k,
                       preferred_element_type=f32)                 # (BW, N, N) f32
        s = s + rpb_ref[h][None]                                   # relative position bias

        if mask_ref is not None:
            nW = mask_windows                                      # window id = local % nW
            s = (s.reshape(BW // nW, nW, N, N)
                 + mask_ref[...][None]).reshape(BW, N, N)

        # numerically stable softmax over keys (f32)
        s = s - jnp.max(s, axis=-1, keepdims=True)
        p = jnp.exp(s)
        p = p * pl.reciprocal(jnp.sum(p, axis=-1, keepdims=True), approx=approx_recip)

        ctx = jnp.einsum("bqk,bkd->bqd", p.astype(cd), v,
                         preferred_element_type=f32)               # (BW, N, hd)
        ctx_s[:, :, h * hd:(h + 1) * hd] = ctx.astype(cd)

    # ---- output projection: (M, C) @ (C, C); head reduction happens on the MXU ----
    ctx2d = ctx_s[...].reshape(M, C)
    out = jnp.dot(ctx2d, wproj_ref[...], preferred_element_type=f32) + bproj_ref[...]
    o_ref[...] = out.reshape(BW, N, C).astype(o_ref.dtype)


def _relative_position_bias(table, window_size, num_heads):
    """(H, N, N) f32 bias, same gather as the PyTorch __init__/forward."""
    Wh, Ww = window_size
    N = Wh * Ww
    coords = jnp.stack(jnp.meshgrid(jnp.arange(Wh), jnp.arange(Ww), indexing="ij"))
    cf = coords.reshape(2, -1)
    rel = jnp.transpose(cf[:, :, None] - cf[:, None, :], (1, 2, 0))
    rel = rel + jnp.array([Wh - 1, Ww - 1])
    rel = rel.at[:, :, 0].multiply(2 * Ww - 1)
    idx = rel.sum(-1)
    rpb = table[idx.reshape(-1)].reshape(N, N, num_heads)
    return jnp.transpose(rpb, (2, 0, 1)).astype(jnp.float32)


def _pick_block_windows(B_, nW, N, per_window_bytes, resident_bytes, budget_bytes):
    """Largest window-batch that divides B_, is a multiple of nW, fits the VMEM budget,
    and (when possible) leaves >=4 grid steps (2 per TensorCore on v7x) for pipelining."""
    cands = [d for d in range(nW, B_ + 1, nW) if B_ % d == 0] or [B_]
    good = [d for d in cands if resident_bytes + d * per_window_bytes <= budget_bytes]
    if not good:
        good = cands[:1]
    for min_steps, min_rows in ((4, 512), (4, 0), (2, 0), (1, 0)):
        tier = [d for d in good if B_ // d >= min_steps and d * N >= min_rows]
        if tier:
            return max(tier)
    return max(good)


def window_attention(x, params, *, window_size, num_heads, mask=None,
                     compute_dtype=jnp.bfloat16, block_windows=None):
    """x: (B_, N, C); mask: (nW, N, N) or None.  Returns (B_, N, C) in x.dtype."""
    B_, N, C = x.shape
    Wh, Ww = window_size
    assert N == Wh * Ww
    assert C % num_heads == 0
    H = num_heads
    hd = C // H
    scale = hd ** (-0.5)
    cd = np.dtype(compute_dtype)

    # ----- grid-invariant parameter prep (done once, outside the kernel) -----
    rpb = _relative_position_bias(params["relative_position_bias_table"],
                                  window_size, num_heads)                    # (H, N, N) f32

    wqkv = params["qkv_weight"].astype(jnp.float32)                          # (C, 3C)
    bqkv = params["qkv_bias"].astype(jnp.float32)                            # (3C,)
    wqkv = wqkv.at[:, :C].multiply(scale)        # fold softmax scale into the Q projection
    bqkv = bqkv.at[:C].multiply(scale)
    wqkv = wqkv.astype(cd)                                                   # lane-dense
    bqkv = bqkv.reshape(1, 3 * C)
    wproj = params["proj_weight"].astype(cd)                                 # (C, C)
    bproj = params["proj_bias"].reshape(1, C).astype(jnp.float32)

    if mask is not None:
        nW = mask.shape[0]
        assert B_ % nW == 0, "B_ must be a multiple of num_windows"
        mask_f = mask.astype(jnp.float32)
    else:
        nW = 1

    # ----- per-generation VMEM budget (v7x has only 64 MiB physical) -----
    try:
        vmem_cap = int(pltpu.get_tpu_info().vmem_capacity_bytes)
    except Exception:
        vmem_cap = 64 * 1024 * 1024        # conservative (v7x) if query unavailable

    cb = int(cd.itemsize)
    xb = int(np.dtype(x.dtype).itemsize)
    resident = ((3 * C * C + C * C) * cb                # projection weights
                + (3 * C + C) * 4                       # biases (f32)
                + (H + (nW if mask is not None else 0)) * N * N * 4)   # rpb (+ mask)
    per_window = (N * C * 2 * (xb + xb)                 # double-buffered x-in / out blocks
                  + N * (3 * C + C) * cb                # qkv / ctx VMEM scratch
                  + N * (3 * C + 2 * C) * 4             # f32 matmul outputs (vregs / spill)
                  + 4 * N * N * 4)                      # per-head score / softmax temps
    budget = int(0.45 * vmem_cap)

    if block_windows is not None:
        BW = block_windows
    else:
        BW = _pick_block_windows(B_, nW, N, per_window, resident, budget)
    assert B_ % BW == 0 and BW % nW == 0

    vmem_limit = int(max(32 * 1024 * 1024, 2 * (resident + BW * per_window)))
    vmem_limit = min(vmem_limit, int(0.9 * vmem_cap))

    kernel = functools.partial(
        _window_attention_kernel,
        num_heads=H,
        mask_windows=(nW if mask is not None else 0),
        approx_recip=(cd != np.dtype(np.float32)),
        compute_dtype=cd,
    )

    def _call(single_buffer_consts):
        const_kw = {}
        if single_buffer_consts:
            const_kw = dict(pipeline_mode=pl.Buffered(1))   # constants need one buffer only

        def cspec(shape):
            return pl.BlockSpec(shape, lambda *_: (0,) * len(shape), **const_kw)

        in_specs = [pl.BlockSpec((BW, N, C), lambda b: (b, 0, 0)),   # streamed x block
                    cspec((H, N, N))]                                # rel-pos bias (resident)
        operands = [x, rpb]
        if mask is not None:
            in_specs.append(cspec((nW, N, N)))                       # per-window mask
            operands.append(mask_f)
        in_specs += [cspec((C, 3 * C)),                              # fused qkv weight
                     cspec((1, 3 * C)),                              # fused qkv bias
                     cspec((C, C)),                                  # proj weight
                     cspec((1, C))]                                  # proj bias
        operands += [wqkv, bqkv, wproj, bproj]

        return pl.pallas_call(
            kernel,
            out_shape=jax.ShapeDtypeStruct((B_, N, C), x.dtype),
            grid_spec=pltpu.PrefetchScalarGridSpec(
                num_scalar_prefetch=0,
                grid=(B_ // BW,),
                in_specs=in_specs,
                out_specs=pl.BlockSpec((BW, N, C), lambda b: (b, 0, 0)),
                scratch_shapes=[pltpu.VMEM((BW, N, 3 * C), cd),      # qkv (channel-on-lane)
                                pltpu.VMEM((BW, N, C), cd)],         # ctx (channel-on-lane)
            ),
            compiler_params=pltpu.CompilerParams(
                dimension_semantics=("parallel",),
                vmem_limit_bytes=vmem_limit,
            ),
        )(*operands)

    try:
        return _call(True)
    except Exception:
        # pipeline_mode=pl.Buffered(1) unsupported on this JAX version: fall back to the
        # default double-buffering of the constant operands (correctness unaffected).
        return _call(False)


def _reference(x, params, *, window_size, num_heads, mask=None):
    """Pure-JAX reference mirroring the PyTorch forward (no prompt / no lora path)."""
    B_, N, C = x.shape
    head_dim = C // num_heads
    scale = head_dim ** (-0.5)

    qkv = x @ params["qkv_weight"] + params["qkv_bias"]
    qkv = qkv.reshape(B_, N, 3, num_heads, head_dim).transpose(2, 0, 3, 1, 4)
    q, k, v = qkv[0], qkv[1], qkv[2]

    rpb = _relative_position_bias(params["relative_position_bias_table"],
                                  window_size, num_heads)

    attn = (q * scale) @ jnp.swapaxes(k, -2, -1) + rpb[None]
    if mask is not None:
        nW = mask.shape[0]
        attn = attn.reshape(B_ // nW, nW, num_heads, N, N) + mask[None, :, None]
        attn = attn.reshape(-1, num_heads, N, N)
    attn = jax.nn.softmax(attn, axis=-1)
    out = (attn @ v).transpose(0, 2, 1, 3).reshape(B_, N, C)
    return out @ params["proj_weight"] + params["proj_bias"]


if __name__ == "__main__":
    # Small, module-consistent shapes: dim=32, heads=4, window 4x4 -> N=16, B_ = batch*nW = 16.
    dim = 32
    num_heads = 4
    window_size = (4, 4)
    N = window_size[0] * window_size[1]
    nW = 4
    batch = 4
    B_ = batch * nW

    key = jax.random.PRNGKey(0)
    k_x, k_rpb, k_qw, k_qb, k_pw, k_pb, k_m = jax.random.split(key, 7)

    params = {
        # trunc_normal(std=0.02) approximated with a clipped normal (deterministic init)
        "relative_position_bias_table": jnp.clip(
            0.02 * jax.random.normal(
                k_rpb, ((2 * window_size[0] - 1) * (2 * window_size[1] - 1), num_heads),
                jnp.float32),
            -0.04, 0.04),
        "qkv_weight": 0.05 * jax.random.normal(k_qw, (dim, 3 * dim), jnp.float32),
        "qkv_bias": 0.05 * jax.random.normal(k_qb, (3 * dim,), jnp.float32),
        "proj_weight": 0.05 * jax.random.normal(k_pw, (dim, dim), jnp.float32),
        "proj_bias": 0.05 * jax.random.normal(k_pb, (dim,), jnp.float32),
    }

    x = jax.random.normal(k_x, (B_, N, dim), jnp.float32)
    # 0 / -100 style shifted-window mask
    mask = -100.0 * (jax.random.uniform(k_m, (nW, N, N)) > 0.7).astype(jnp.float32)

    ref = _reference(x, params, window_size=window_size, num_heads=num_heads, mask=mask)

    # Default path: bf16 MXU operands, f32 accumulation / softmax, approx EUP reciprocal.
    out = jax.block_until_ready(
        window_attention(x, params, window_size=window_size, num_heads=num_heads, mask=mask))
    assert out.shape == (B_, N, dim)
    assert jnp.allclose(out, ref, atol=5e-2, rtol=5e-2), float(jnp.max(jnp.abs(out - ref)))

    # Exact f32 path against the pure-JAX reference.
    out_f32 = jax.block_until_ready(
        window_attention(x, params, window_size=window_size, num_heads=num_heads, mask=mask,
                         compute_dtype=jnp.float32))
    assert jnp.allclose(out_f32, ref, atol=1e-4, rtol=1e-4), \
        float(jnp.max(jnp.abs(out_f32 - ref)))

    # mask=None variant (separate kernel without the mask input / add).
    ref_nm = _reference(x, params, window_size=window_size, num_heads=num_heads, mask=None)
    out_nm = jax.block_until_ready(
        window_attention(x, params, window_size=window_size, num_heads=num_heads, mask=None,
                         compute_dtype=jnp.float32))
    assert jnp.allclose(out_nm, ref_nm, atol=1e-4, rtol=1e-4)

    print("KERNEL_OK")
</pallas_src>

<mosaic_0001>
module attributes {stable_mosaic.version = 11 : i64} {
  func.func @_window_attention_kernel(%arg0: i32, %arg1: memref<4x16x32xf32, #tpu.memory_space<vmem>>, %arg2: memref<4x16x16xf32, #tpu.memory_space<vmem>>, %arg3: memref<4x16x16xf32, #tpu.memory_space<vmem>>, %arg4: memref<32x96xbf16, #tpu.memory_space<vmem>>, %arg5: memref<1x96xf32, #tpu.memory_space<vmem>>, %arg6: memref<32x32xbf16, #tpu.memory_space<vmem>>, %arg7: memref<1x32xf32, #tpu.memory_space<vmem>>, %arg8: memref<4x16x32xf32, #tpu.memory_space<vmem>>, %arg9: memref<4x16x96xbf16, #tpu.memory_space<vmem>>, %arg10: memref<4x16x32xbf16, #tpu.memory_space<vmem>>) attributes {dimension_semantics = [#tpu.dimension_semantics<parallel>], iteration_bounds = array<i64: 4>, scalar_prefetch = 0 : i64, scratch_operands = 2 : i64, tpu.core_type = #tpu.core_type<tc>, window_params = [{transform_indices = @transform_0, window_bounds = array<i64: 4, 16, 32>}, {pipeline_mode = #tpu.pipeline_mode<synchronous>, transform_indices = @transform_1, window_bounds = array<i64: 4, 16, 16>}, {pipeline_mode = #tpu.pipeline_mode<synchronous>, transform_indices = @transform_2, window_bounds = array<i64: 4, 16, 16>}, {pipeline_mode = #tpu.pipeline_mode<synchronous>, transform_indices = @transform_3, window_bounds = array<i64: 32, 96>}, {pipeline_mode = #tpu.pipeline_mode<synchronous>, transform_indices = @transform_4, window_bounds = array<i64: 1, 96>}, {pipeline_mode = #tpu.pipeline_mode<synchronous>, transform_indices = @transform_5, window_bounds = array<i64: 32, 32>}, {pipeline_mode = #tpu.pipeline_mode<synchronous>, transform_indices = @transform_6, window_bounds = array<i64: 1, 32>}, {transform_indices = @transform_7, window_bounds = array<i64: 4, 16, 32>}]} {
    %c0 = arith.constant 0 : index
    %c0_0 = arith.constant 0 : index
    %c0_1 = arith.constant 0 : index
    %0 = vector.load %arg1[%c0, %c0_0, %c0_1] : memref<4x16x32xf32, #tpu.memory_space<vmem>>, vector<4x16x32xf32>
    %1 = arith.truncf %0 : vector<4x16x32xf32> to vector<4x16x32xbf16>
    %2 = vector.shape_cast %1 : vector<4x16x32xbf16> to vector<64x32xbf16>
    %c0_2 = arith.constant 0 : index
    %c0_3 = arith.constant 0 : index
    %3 = vector.load %arg4[%c0_2, %c0_3] : memref<32x96xbf16, #tpu.memory_space<vmem>>, vector<32x96xbf16>
    %cst = arith.constant dense<0.000000e+00> : vector<64x96xf32>
    %4 = tpu.matmul %2, %3, %cst {dimension_numbers = #tpu.dot_dimension_numbers<[1], [0], [0], [1], [0, 0, 1, 1], [], []>} : vector<64x32xbf16>, vector<32x96xbf16>, vector<64x96xf32> -> vector<64x96xf32>
    %c0_4 = arith.constant 0 : index
    %c0_5 = arith.constant 0 : index
    %5 = vector.load %arg5[%c0_4, %c0_5] : memref<1x96xf32, #tpu.memory_space<vmem>>, vector<1x96xf32>
    %6 = vector.broadcast %5 : vector<1x96xf32> to vector<64x96xf32>
    %7 = arith.addf %4, %6 : vector<64x96xf32>
    %8 = arith.truncf %7 : vector<64x96xf32> to vector<64x96xbf16>
    %9 = vector.shape_cast %8 : vector<64x96xbf16> to vector<4x16x96xbf16>
    %c0_6 = arith.constant 0 : index
    %c0_7 = arith.constant 0 : index
    %c0_8 = arith.constant 0 : index
    %10 = vector.load %arg9[%c0_6, %c0_7, %c0_8] : memref<4x16x96xbf16, #tpu.memory_space<vmem>>, vector<4x16x96xbf16>
    tpu.vector_store %arg9[%c0_6, %c0_7, %c0_8], %9 {strides = array<i32>} : memref<4x16x96xbf16, #tpu.memory_space<vmem>>, vector<4x16x96xbf16>,
    %c0_9 = arith.constant 0 : index
    %c0_10 = arith.constant 0 : index
    %c0_11 = arith.constant 0 : index
    %11 = vector.load %arg9[%c0_9, %c0_10, %c0_11] : memref<4x16x96xbf16, #tpu.memory_space<vmem>>, vector<4x16x8xbf16>
    %c0_12 = arith.constant 0 : index
    %c0_13 = arith.constant 0 : index
    %c32 = arith.constant 32 : index
    %12 = vector.load %arg9[%c0_12, %c0_13, %c32] : memref<4x16x96xbf16, #tpu.memory_space<vmem>>, vector<4x16x8xbf16>
    %c0_14 = arith.constant 0 : index
    %c0_15 = arith.constant 0 : index
    %c64 = arith.constant 64 : index
    %13 = vector.load %arg9[%c0_14, %c0_15, %c64] : memref<4x16x96xbf16, #tpu.memory_space<vmem>>, vector<4x16x8xbf16>
    "tpu.trace_start"() <{level = 10 : i32, message = "bqd,bkd->bqk"}> : () -> ()
    %cst_16 = arith.constant dense<0.000000e+00> : vector<4x16x16xf32>
    %14 = tpu.matmul %11, %12, %cst_16 {dimension_numbers = #tpu.dot_dimension_numbers<[2], [2], [1], [1], [0, 0, 0, 1, 1, 1], [0], [0]>} : vector<4x16x8xbf16>, vector<4x16x8xbf16>, vector<4x16x16xf32> -> vector<4x16x16xf32>
    "tpu.trace_stop"() : () -> ()
    %c0_17 = arith.constant 0 : index
    %c0_18 = arith.constant 0 : index
    %c0_19 = arith.constant 0 : index
    %15 = vector.load %arg2[%c0_17, %c0_18, %c0_19] : memref<4x16x16xf32, #tpu.memory_space<vmem>>, vector<1x16x16xf32>
    %16 = vector.shape_cast %15 : vector<1x16x16xf32> to vector<16x16xf32>
    %17 = vector.shape_cast %16 : vector<16x16xf32> to vector<1x16x16xf32>
    %18 = vector.broadcast %17 : vector<1x16x16xf32> to vector<4x16x16xf32>
    %19 = arith.addf %14, %18 : vector<4x16x16xf32>
    %20 = vector.shape_cast %19 : vector<4x16x16xf32> to vector<1x4x16x16xf32>
    %c0_20 = arith.constant 0 : index
    %c0_21 = arith.constant 0 : index
    %c0_22 = arith.constant 0 : index
    %21 = vector.load %arg3[%c0_20, %c0_21, %c0_22] : memref<4x16x16xf32, #tpu.memory_space<vmem>>, vector<4x16x16xf32>
    %22 = vector.shape_cast %21 : vector<4x16x16xf32> to vector<1x4x16x16xf32>
    %23 = arith.addf %20, %22 : vector<1x4x16x16xf32>
    %24 = vector.shape_cast %23 : vector<1x4x16x16xf32> to vector<4x16x16xf32>
    %cst_23 = arith.constant dense<0xFF800000> : vector<4x16xf32>
    %25 = vector.multi_reduction <maximumf>, %24, %cst_23 [2] : vector<4x16x16xf32> to vector<4x16xf32>
    %26 = vector.shape_cast %25 : vector<4x16xf32> to vector<4x16x1xf32>
    %27 = vector.broadcast %26 : vector<4x16x1xf32> to vector<4x16x16xf32>
    %28 = arith.subf %24, %27 : vector<4x16x16xf32>
    %29 = math.exp %28 : vector<4x16x16xf32>
    %cst_24 = arith.constant dense<0.000000e+00> : vector<4x16xf32>
    %30 = vector.multi_reduction <add>, %29, %cst_24 [2] : vector<4x16x16xf32> to vector<4x16xf32>
    %31 = vector.shape_cast %30 : vector<4x16xf32> to vector<4x16x1xf32>
    %32 = tpu.reciprocal %31 {approx = true} : vector<4x16x1xf32> -> vector<4x16x1xf32>
    %33 = vector.broadcast %32 : vector<4x16x1xf32> to vector<4x16x16xf32>
    %34 = arith.mulf %29, %33 : vector<4x16x16xf32>
    %35 = arith.truncf %34 : vector<4x16x16xf32> to vector<4x16x16xbf16>
    "tpu.trace_start"() <{level = 10 : i32, message = "bqk,bkd->bqd"}> : () -> ()
    %cst_25 = arith.constant dense<0.000000e+00> : vector<4x16x8xf32>
    %36 = tpu.matmul %35, %13, %cst_25 {dimension_numbers = #tpu.dot_dimension_numbers<[2], [1], [1], [2], [0, 0, 0, 1, 1, 2], [0], [0]>} : vector<4x16x16xbf16>, vector<4x16x8xbf16>, vector<4x16x8xf32> -> vector<4x16x8xf32>
    "tpu.trace_stop"() : () -> ()
    %37 = arith.truncf %36 : vector<4x16x8xf32> to vector<4x16x8xbf16>
    %c0_26 = arith.constant 0 : index
    %c0_27 = arith.constant 0 : index
    %c0_28 = arith.constant 0 : index
    %38 = vector.load %arg10[%c0_26, %c0_27, %c0_28] : memref<4x16x32xbf16, #tpu.memory_space<vmem>>, vector<4x16x8xbf16>
    tpu.vector_store %arg10[%c0_26, %c0_27, %c0_28], %37 {strides = array<i32>} : memref<4x16x32xbf16, #tpu.memory_space<vmem>>, vector<4x16x8xbf16>,
    %c0_29 = arith.constant 0 : index
    %c0_30 = arith.constant 0 : index
    %c8 = arith.constant 8 : index
    %39 = vector.load %arg9[%c0_29, %c0_30, %c8] : memref<4x16x96xbf16, #tpu.memory_space<vmem>>, vector<4x16x8xbf16>
    %c0_31 = arith.constant 0 : index
    %c0_32 = arith.constant 0 : index
    %c40 = arith.constant 40 : index
    %40 = vector.load %arg9[%c0_31, %c0_32, %c40] : memref<4x16x96xbf16, #tpu.memory_space<vmem>>, vector<4x16x8xbf16>
    %c0_33 = arith.constant 0 : index
    %c0_34 = arith.constant 0 : index
    %c72 = arith.constant 72 : index
    %41 = vector.load %arg9[%c0_33, %c0_34, %c72] : memref<4x16x96xbf16, #tpu.memory_space<vmem>>, vector<4x16x8xbf16>
    "tpu.trace_start"() <{level = 10 : i32, message = "bqd,bkd->bqk"}> : () -> ()
    %cst_35 = arith.constant dense<0.000000e+00> : vector<4x16x16xf32>
    %42 = tpu.matmul %39, %40, %cst_35 {dimension_numbers = #tpu.dot_dimension_numbers<[2], [2], [1], [1], [0, 0, 0, 1, 1, 1], [0], [0]>} : vector<4x16x8xbf16>, vector<4x16x8xbf16>, vector<4x16x16xf32> -> vector<4x16x16xf32>
    "tpu.trace_stop"() : () -> ()
    %c1 = arith.constant 1 : index
    %c0_36 = arith.constant 0 : index
    %c0_37 = arith.constant 0 : index
    %43 = vector.load %arg2[%c1, %c0_36, %c0_37] : memref<4x16x16xf32, #tpu.memory_space<vmem>>, vector<1x16x16xf32>
    %44 = vector.shape_cast %43 : vector<1x16x16xf32> to vector<16x16xf32>
    %45 = vector.shape_cast %44 : vector<16x16xf32> to vector<1x16x16xf32>
    %46 = vector.broadcast %45 : vector<1x16x16xf32> to vector<4x16x16xf32>
    %47 = arith.addf %42, %46 : vector<4x16x16xf32>
    %48 = vector.shape_cast %47 : vector<4x16x16xf32> to vector<1x4x16x16xf32>
    %c0_38 = arith.constant 0 : index
    %c0_39 = arith.constant 0 : index
    %c0_40 = arith.constant 0 : index
    %49 = vector.load %arg3[%c0_38, %c0_39, %c0_40] : memref<4x16x16xf32, #tpu.memory_space<vmem>>, vector<4x16x16xf32>
    %50 = vector.shape_cast %49 : vector<4x16x16xf32> to vector<1x4x16x16xf32>
    %51 = arith.addf %48, %50 : vector<1x4x16x16xf32>
    %52 = vector.shape_cast %51 : vector<1x4x16x16xf32> to vector<4x16x16xf32>
    %cst_41 = arith.constant dense<0xFF800000> : vector<4x16xf32>
    %53 = vector.multi_reduction <maximumf>, %52, %cst_41 [2] : vector<4x16x16xf32> to vector<4x16xf32>
    %54 = vector.shape_cast %53 : vector<4x16xf32> to vector<4x16x1xf32>
    %55 = vector.broadcast %54 : vector<4x16x1xf32> to vector<4x16x16xf32>
    %56 = arith.subf %52, %55 : vector<4x16x16xf32>
    %57 = math.exp %56 : vector<4x16x16xf32>
    %cst_42 = arith.constant dense<0.000000e+00> : vector<4x16xf32>
    %58 = vector.multi_reduction <add>, %57, %cst_42 [2] : vector<4x16x16xf32> to vector<4x16xf32>
    %59 = vector.shape_cast %58 : vector<4x16xf32> to vector<4x16x1xf32>
    %60 = tpu.reciprocal %59 {approx = true} : vector<4x16x1xf32> -> vector<4x16x1xf32>
    %61 = vector.broadcast %60 : vector<4x16x1xf32> to vector<4x16x16xf32>
    %62 = arith.mulf %57, %61 : vector<4x16x16xf32>
    %63 = arith.truncf %62 : vector<4x16x16xf32> to vector<4x16x16xbf16>
    "tpu.trace_start"() <{level = 10 : i32, message = "bqk,bkd->bqd"}> : () -> ()
    %cst_43 = arith.constant dense<0.000000e+00> : vector<4x16x8xf32>
    %64 = tpu.matmul %63, %41, %cst_43 {dimension_numbers = #tpu.dot_dimension_numbers<[2], [1], [1], [2], [0, 0, 0, 1, 1, 2], [0], [0]>} : vector<4x16x16xbf16>, vector<4x16x8xbf16>, vector<4x16x8xf32> -> vector<4x16x8xf32>
    "tpu.trace_stop"() : () -> ()
    %65 = arith.truncf %64 : vector<4x16x8xf32> to vector<4x16x8xbf16>
    %c0_44 = arith.constant 0 : index
    %c0_45 = arith.constant 0 : index
    %c8_46 = arith.constant 8 : index
    %66 = vector.load %arg10[%c0_44, %c0_45, %c8_46] : memref<4x16x32xbf16, #tpu.memory_space<vmem>>, vector<4x16x8xbf16>
    tpu.vector_store %arg10[%c0_44, %c0_45, %c8_46], %65 {strides = array<i32>} : memref<4x16x32xbf16, #tpu.memory_space<vmem>>, vector<4x16x8xbf16>,
    %c0_47 = arith.constant 0 : index
    %c0_48 = arith.constant 0 : index
    %c16 = arith.constant 16 : index
    %67 = vector.load %arg9[%c0_47, %c0_48, %c16] : memref<4x16x96xbf16, #tpu.memory_space<vmem>>, vector<4x16x8xbf16>
    %c0_49 = arith.constant 0 : index
    %c0_50 = arith.constant 0 : index
    %c48 = arith.constant 48 : index
    %68 = vector.load %arg9[%c0_49, %c0_50, %c48] : memref<4x16x96xbf16, #tpu.memory_space<vmem>>, vector<4x16x8xbf16>
    %c0_51 = arith.constant 0 : index
    %c0_52 = arith.constant 0 : index
    %c80 = arith.constant 80 : index
    %69 = vector.load %arg9[%c0_51, %c0_52, %c80] : memref<4x16x96xbf16, #tpu.memory_space<vmem>>, vector<4x16x8xbf16>
    "tpu.trace_start"() <{level = 10 : i32, message = "bqd,bkd->bqk"}> : () -> ()
    %cst_53 = arith.constant dense<0.000000e+00> : vector<4x16x16xf32>
    %70 = tpu.matmul %67, %68, %cst_53 {dimension_numbers = #tpu.dot_dimension_numbers<[2], [2], [1], [1], [0, 0, 0, 1, 1, 1], [0], [0]>} : vector<4x16x8xbf16>, vector<4x16x8xbf16>, vector<4x16x16xf32> -> vector<4x16x16xf32>
    "tpu.trace_stop"() : () -> ()
    %c2 = arith.constant 2 : index
    %c0_54 = arith.constant 0 : index
    %c0_55 = arith.constant 0 : index
    %71 = vector.load %arg2[%c2, %c0_54, %c0_55] : memref<4x16x16xf32, #tpu.memory_space<vmem>>, vector<1x16x16xf32>
    %72 = vector.shape_cast %71 : vector<1x16x16xf32> to vector<16x16xf32>
    %73 = vector.shape_cast %72 : vector<16x16xf32> to vector<1x16x16xf32>
    %74 = vector.broadcast %73 : vector<1x16x16xf32> to vector<4x16x16xf32>
    %75 = arith.addf %70, %74 : vector<4x16x16xf32>
    %76 = vector.shape_cast %75 : vector<4x16x16xf32> to vector<1x4x16x16xf32>
    %c0_56 = arith.constant 0 : index
    %c0_57 = arith.constant 0 : index
    %c0_58 = arith.constant 0 : index
    %77 = vector.load %arg3[%c0_56, %c0_57, %c0_58] : memref<4x16x16xf32, #tpu.memory_space<vmem>>, vector<4x16x16xf32>
    %78 = vector.shape_cast %77 : vector<4x16x16xf32> to vector<1x4x16x16xf32>
    %79 = arith.addf %76, %78 : vector<1x4x16x16xf32>
    %80 = vector.shape_cast %79 : vector<1x4x16x16xf32> to vector<4x16x16xf32>
    %cst_59 = arith.constant dense<0xFF800000> : vector<4x16xf32>
    %81 = vector.multi_reduction <maximumf>, %80, %cst_59 [2] : vector<4x16x16xf32> to vector<4x16xf32>
    %82 = vector.shape_cast %81 : vector<4x16xf32> to vector<4x16x1xf32>
    %83 = vector.broadcast %82 : vector<4x16x1xf32> to vector<4x16x16xf32>
    %84 = arith.subf %80, %83 : vector<4x16x16xf32>
    %85 = math.exp %84 : vector<4x16x16xf32>
    %cst_60 = arith.constant dense<0.000000e+00> : vector<4x16xf32>
    %86 = vector.multi_reduction <add>, %85, %cst_60 [2] : vector<4x16x16xf32> to vector<4x16xf32>
    %87 = vector.shape_cast %86 : vector<4x16xf32> to vector<4x16x1xf32>
    %88 = tpu.reciprocal %87 {approx = true} : vector<4x16x1xf32> -> vector<4x16x1xf32>
    %89 = vector.broadcast %88 : vector<4x16x1xf32> to vector<4x16x16xf32>
    %90 = arith.mulf %85, %89 : vector<4x16x16xf32>
    %91 = arith.truncf %90 : vector<4x16x16xf32> to vector<4x16x16xbf16>
    "tpu.trace_start"() <{level = 10 : i32, message = "bqk,bkd->bqd"}> : () -> ()
    %cst_61 = arith.constant dense<0.000000e+00> : vector<4x16x8xf32>
    %92 = tpu.matmul %91, %69, %cst_61 {dimension_numbers = #tpu.dot_dimension_numbers<[2], [1], [1], [2], [0, 0, 0, 1, 1, 2], [0], [0]>} : vector<4x16x16xbf16>, vector<4x16x8xbf16>, vector<4x16x8xf32> -> vector<4x16x8xf32>
    "tpu.trace_stop"() : () -> ()
    %93 = arith.truncf %92 : vector<4x16x8xf32> to vector<4x16x8xbf16>
    %c0_62 = arith.constant 0 : index
    %c0_63 = arith.constant 0 : index
    %c16_64 = arith.constant 16 : index
    %94 = vector.load %arg10[%c0_62, %c0_63, %c16_64] : memref<4x16x32xbf16, #tpu.memory_space<vmem>>, vector<4x16x8xbf16>
    tpu.vector_store %arg10[%c0_62, %c0_63, %c16_64], %93 {strides = array<i32>} : memref<4x16x32xbf16, #tpu.memory_space<vmem>>, vector<4x16x8xbf16>,
    %c0_65 = arith.constant 0 : index
    %c0_66 = arith.constant 0 : index
    %c24 = arith.constant 24 : index
    %95 = vector.load %arg9[%c0_65, %c0_66, %c24] : memref<4x16x96xbf16, #tpu.memory_space<vmem>>, vector<4x16x8xbf16>
    %c0_67 = arith.constant 0 : index
    %c0_68 = arith.constant 0 : index
    %c56 = arith.constant 56 : index
    %96 = vector.load %arg9[%c0_67, %c0_68, %c56] : memref<4x16x96xbf16, #tpu.memory_space<vmem>>, vector<4x16x8xbf16>
    %c0_69 = arith.constant 0 : index
    %c0_70 = arith.constant 0 : index
    %c88 = arith.constant 88 : index
    %97 = vector.load %arg9[%c0_69, %c0_70, %c88] : memref<4x16x96xbf16, #tpu.memory_space<vmem>>, vector<4x16x8xbf16>
    "tpu.trace_start"() <{level = 10 : i32, message = "bqd,bkd->bqk"}> : () -> ()
    %cst_71 = arith.constant dense<0.000000e+00> : vector<4x16x16xf32>
    %98 = tpu.matmul %95, %96, %cst_71 {dimension_numbers = #tpu.dot_dimension_numbers<[2], [2], [1], [1], [0, 0, 0, 1, 1, 1], [0], [0]>} : vector<4x16x8xbf16>, vector<4x16x8xbf16>, vector<4x16x16xf32> -> vector<4x16x16xf32>
    "tpu.trace_stop"() : () -> ()
    %c3 = arith.constant 3 : index
    %c0_72 = arith.constant 0 : index
    %c0_73 = arith.constant 0 : index
    %99 = vector.load %arg2[%c3, %c0_72, %c0_73] : memref<4x16x16xf32, #tpu.memory_space<vmem>>, vector<1x16x16xf32>
    %100 = vector.shape_cast %99 : vector<1x16x16xf32> to vector<16x16xf32>
    %101 = vector.shape_cast %100 : vector<16x16xf32> to vector<1x16x16xf32>
    %102 = vector.broadcast %101 : vector<1x16x16xf32> to vector<4x16x16xf32>
    %103 = arith.addf %98, %102 : vector<4x16x16xf32>
    %104 = vector.shape_cast %103 : vector<4x16x16xf32> to vector<1x4x16x16xf32>
    %c0_74 = arith.constant 0 : index
    %c0_75 = arith.constant 0 : index
    %c0_76 = arith.constant 0 : index
    %105 = vector.load %arg3[%c0_74, %c0_75, %c0_76] : memref<4x16x16xf32, #tpu.memory_space<vmem>>, vector<4x16x16xf32>
    %106 = vector.shape_cast %105 : vector<4x16x16xf32> to vector<1x4x16x16xf32>
    %107 = arith.addf %104, %106 : vector<1x4x16x16xf32>
    %108 = vector.shape_cast %107 : vector<1x4x16x16xf32> to vector<4x16x16xf32>
    %cst_77 = arith.constant dense<0xFF800000> : vector<4x16xf32>
    %109 = vector.multi_reduction <maximumf>, %108, %cst_77 [2] : vector<4x16x16xf32> to vector<4x16xf32>
    %110 = vector.shape_cast %109 : vector<4x16xf32> to vector<4x16x1xf32>
    %111 = vector.broadcast %110 : vector<4x16x1xf32> to vector<4x16x16xf32>
    %112 = arith.subf %108, %111 : vector<4x16x16xf32>
    %113 = math.exp %112 : vector<4x16x16xf32>
    %cst_78 = arith.constant dense<0.000000e+00> : vector<4x16xf32>
    %114 = vector.multi_reduction <add>, %113, %cst_78 [2] : vector<4x16x16xf32> to vector<4x16xf32>
    %115 = vector.shape_cast %114 : vector<4x16xf32> to vector<4x16x1xf32>
    %116 = tpu.reciprocal %115 {approx = true} : vector<4x16x1xf32> -> vector<4x16x1xf32>
    %117 = vector.broadcast %116 : vector<4x16x1xf32> to vector<4x16x16xf32>
    %118 = arith.mulf %113, %117 : vector<4x16x16xf32>
    %119 = arith.truncf %118 : vector<4x16x16xf32> to vector<4x16x16xbf16>
    "tpu.trace_start"() <{level = 10 : i32, message = "bqk,bkd->bqd"}> : () -> ()
    %cst_79 = arith.constant dense<0.000000e+00> : vector<4x16x8xf32>
    %120 = tpu.matmul %119, %97, %cst_79 {dimension_numbers = #tpu.dot_dimension_numbers<[2], [1], [1], [2], [0, 0, 0, 1, 1, 2], [0], [0]>} : vector<4x16x16xbf16>, vector<4x16x8xbf16>, vector<4x16x8xf32> -> vector<4x16x8xf32>
    "tpu.trace_stop"() : () -> ()
    %121 = arith.truncf %120 : vector<4x16x8xf32> to vector<4x16x8xbf16>
    %c0_80 = arith.constant 0 : index
    %c0_81 = arith.constant 0 : index
    %c24_82 = arith.constant 24 : index
    %122 = vector.load %arg10[%c0_80, %c0_81, %c24_82] : memref<4x16x32xbf16, #tpu.memory_space<vmem>>, vector<4x16x8xbf16>
    tpu.vector_store %arg10[%c0_80, %c0_81, %c24_82], %121 {strides = array<i32>} : memref<4x16x32xbf16, #tpu.memory_space<vmem>>, vector<4x16x8xbf16>,
    %c0_83 = arith.constant 0 : index
    %c0_84 = arith.constant 0 : index
    %c0_85 = arith.constant 0 : index
    %123 = vector.load %arg10[%c0_83, %c0_84, %c0_85] : memref<4x16x32xbf16, #tpu.memory_space<vmem>>, vector<4x16x32xbf16>
    %124 = vector.shape_cast %123 : vector<4x16x32xbf16> to vector<64x32xbf16>
    %c0_86 = arith.constant 0 : index
    %c0_87 = arith.constant 0 : index
    %125 = vector.load %arg6[%c0_86, %c0_87] : memref<32x32xbf16, #tpu.memory_space<vmem>>, vector<32x32xbf16>
    %cst_88 = arith.constant dense<0.000000e+00> : vector<64x32xf32>
    %126 = tpu.matmul %124, %125, %cst_88 {dimension_numbers = #tpu.dot_dimension_numbers<[1], [0], [0], [1], [0, 0, 1, 1], [], []>} : vector<64x32xbf16>, vector<32x32xbf16>, vector<64x32xf32> -> vector<64x32xf32>
    %c0_89 = arith.constant 0 : index
    %c0_90 = arith.constant 0 : index
    %127 = vector.load %arg7[%c0_89, %c0_90] : memref<1x32xf32, #tpu.memory_space<vmem>>, vector<1x32xf32>
    %128 = vector.broadcast %127 : vector<1x32xf32> to vector<64x32xf32>
    %129 = arith.addf %126, %128 : vector<64x32xf32>
    %130 = vector.shape_cast %129 : vector<64x32xf32> to vector<4x16x32xf32>
    %c0_91 = arith.constant 0 : index
    %c0_92 = arith.constant 0 : index
    %c0_93 = arith.constant 0 : index
    %131 = vector.load %arg8[%c0_91, %c0_92, %c0_93] : memref<4x16x32xf32, #tpu.memory_space<vmem>>, vector<4x16x32xf32>
    tpu.vector_store %arg8[%c0_91, %c0_92, %c0_93], %130 {strides = array<i32>} : memref<4x16x32xf32, #tpu.memory_space<vmem>>, vector<4x16x32xf32>,
    return
  }
  func.func @transform_0(%arg0: i32) -> (i32, i32, i32) {
    %c0_i32 = arith.constant 0 : i32
    %c0_i32_0 = arith.constant 0 : i32
    %c0_i32_1 = arith.constant 0 : i32
    return %arg0, %c0_i32, %c0_i32_0 : i32, i32, i32
  }
  func.func @transform_1(%arg0: i32) -> (i32, i32, i32) {
    %c0_i32 = arith.constant 0 : i32
    %c0_i32_0 = arith.constant 0 : i32
    %c0_i32_1 = arith.constant 0 : i32
    %c0_i32_2 = arith.constant 0 : i32
    return %c0_i32, %c0_i32_0, %c0_i32_1 : i32, i32, i32
  }
  func.func @transform_2(%arg0: i32) -> (i32, i32, i32) {
    %c0_i32 = arith.constant 0 : i32
    %c0_i32_0 = arith.constant 0 : i32
    %c0_i32_1 = arith.constant 0 : i32
    %c0_i32_2 = arith.constant 0 : i32
    return %c0_i32, %c0_i32_0, %c0_i32_1 : i32, i32, i32
  }
  func.func @transform_3(%arg0: i32) -> (i32, i32) {
    %c0_i32 = arith.constant 0 : i32
    %c0_i32_0 = arith.constant 0 : i32
    %c0_i32_1 = arith.constant 0 : i32
    return %c0_i32, %c0_i32_0 : i32, i32
  }
  func.func @transform_4(%arg0: i32) -> (i32, i32) {
    %c0_i32 = arith.constant 0 : i32
    %c0_i32_0 = arith.constant 0 : i32
    %c0_i32_1 = arith.constant 0 : i32
    return %c0_i32, %c0_i32_0 : i32, i32
  }
  func.func @transform_5(%arg0: i32) -> (i32, i32) {
    %c0_i32 = arith.constant 0 : i32
    %c0_i32_0 = arith.constant 0 : i32
    %c0_i32_1 = arith.constant 0 : i32
    return %c0_i32, %c0_i32_0 : i32, i32
  }
  func.func @transform_6(%arg0: i32) -> (i32, i32) {
    %c0_i32 = arith.constant 0 : i32
    %c0_i32_0 = arith.constant 0 : i32
    %c0_i32_1 = arith.constant 0 : i32
    return %c0_i32, %c0_i32_0 : i32, i32
  }
  func.func @transform_7(%arg0: i32) -> (i32, i32, i32) {
    %c0_i32 = arith.constant 0 : i32
    %c0_i32_0 = arith.constant 0 : i32
    %c0_i32_1 = arith.constant 0 : i32
    return %arg0, %c0_i32, %c0_i32_0 : i32, i32, i32
  }
}

module attributes {stable_mosaic.version = 11 : i64} {
  func.func @_window_attention_kernel(%arg0: i32, %arg1: memref<4x16x32xf32, #tpu.memory_space<vmem>>, %arg2: memref<4x16x16xf32, #tpu.memory_space<vmem>>, %arg3: memref<4x16x16xf32, #tpu.memory_space<vmem>>, %arg4: memref<32x96xbf16, #tpu.memory_space<vmem>>, %arg5: memref<1x96xf32, #tpu.memory_space<vmem>>, %arg6: memref<32x32xbf16, #tpu.memory_space<vmem>>, %arg7: memref<1x32xf32, #tpu.memory_space<vmem>>, %arg8: memref<4x16x32xf32, #tpu.memory_space<vmem>>, %arg9: memref<4x16x96xbf16, #tpu.memory_space<vmem>>, %arg10: memref<4x16x32xbf16, #tpu.memory_space<vmem>>) attributes {dimension_semantics = [#tpu.dimension_semantics<parallel>], iteration_bounds = array<i64: 4>, scalar_prefetch = 0 : i64, scratch_operands = 2 : i64, tpu.core_type = #tpu.core_type<tc>, window_params = [{transform_indices = @transform_0, window_bounds = array<i64: 4, 16, 32>}, {pipeline_mode = #tpu.pipeline_mode<synchronous>, transform_indices = @transform_1, window_bounds = array<i64: 4, 16, 16>}, {pipeline_mode = #tpu.pipeline_mode<synchronous>, transform_indices = @transform_2, window_bounds = array<i64: 4, 16, 16>}, {pipeline_mode = #tpu.pipeline_mode<synchronous>, transform_indices = @transform_3, window_bounds = array<i64: 32, 96>}, {pipeline_mode = #tpu.pipeline_mode<synchronous>, transform_indices = @transform_4, window_bounds = array<i64: 1, 96>}, {pipeline_mode = #tpu.pipeline_mode<synchronous>, transform_indices = @transform_5, window_bounds = array<i64: 32, 32>}, {pipeline_mode = #tpu.pipeline_mode<synchronous>, transform_indices = @transform_6, window_bounds = array<i64: 1, 32>}, {transform_indices = @transform_7, window_bounds = array<i64: 4, 16, 32>}]} {
    %c0 = arith.constant 0 : index
    %c0_0 = arith.constant 0 : index
    %c0_1 = arith.constant 0 : index
    %0 = vector.load %arg1[%c0, %c0_0, %c0_1] : memref<4x16x32xf32, #tpu.memory_space<vmem>>, vector<4x16x32xf32>
    %1 = arith.truncf %0 : vector<4x16x32xf32> to vector<4x16x32xbf16>
    %2 = vector.shape_cast %1 : vector<4x16x32xbf16> to vector<64x32xbf16>
    %c0_2 = arith.constant 0 : index
    %c0_3 = arith.constant 0 : index
    %3 = vector.load %arg4[%c0_2, %c0_3] : memref<32x96xbf16, #tpu.memory_space<vmem>>, vector<32x96xbf16>
    %cst = arith.constant dense<0.000000e+00> : vector<64x96xf32>
    %4 = tpu.matmul %2, %3, %cst {dimension_numbers = #tpu.dot_dimension_numbers<[1], [0], [0], [1], [0, 0, 1, 1], [], []>} : vector<64x32xbf16>, vector<32x96xbf16>, vector<64x96xf32> -> vector<64x96xf32>
    %c0_4 = arith.constant 0 : index
    %c0_5 = arith.constant 0 : index
    %5 = vector.load %arg5[%c0_4, %c0_5] : memref<1x96xf32, #tpu.memory_space<vmem>>, vector<1x96xf32>
    %6 = vector.broadcast %5 : vector<1x96xf32> to vector<64x96xf32>
    %7 = arith.addf %4, %6 : vector<64x96xf32>
    %8 = arith.truncf %7 : vector<64x96xf32> to vector<64x96xbf16>
    %9 = vector.shape_cast %8 : vector<64x96xbf16> to vector<4x16x96xbf16>
    %c0_6 = arith.constant 0 : index
    %c0_7 = arith.constant 0 : index
    %c0_8 = arith.constant 0 : index
    %10 = vector.load %arg9[%c0_6, %c0_7, %c0_8] : memref<4x16x96xbf16, #tpu.memory_space<vmem>>, vector<4x16x96xbf16>
    tpu.vector_store %arg9[%c0_6, %c0_7, %c0_8], %9 {strides = array<i32>} : memref<4x16x96xbf16, #tpu.memory_space<vmem>>, vector<4x16x96xbf16>,
    %c0_9 = arith.constant 0 : index
    %c0_10 = arith.constant 0 : index
    %c0_11 = arith.constant 0 : index
    %11 = vector.load %arg9[%c0_9, %c0_10, %c0_11] : memref<4x16x96xbf16, #tpu.memory_space<vmem>>, vector<4x16x8xbf16>
    %c0_12 = arith.constant 0 : index
    %c0_13 = arith.constant 0 : index
    %c32 = arith.constant 32 : index
    %12 = vector.load %arg9[%c0_12, %c0_13, %c32] : memref<4x16x96xbf16, #tpu.memory_space<vmem>>, vector<4x16x8xbf16>
    %c0_14 = arith.constant 0 : index
    %c0_15 = arith.constant 0 : index
    %c64 = arith.constant 64 : index
    %13 = vector.load %arg9[%c0_14, %c0_15, %c64] : memref<4x16x96xbf16, #tpu.memory_space<vmem>>, vector<4x16x8xbf16>
    "tpu.trace_start"() <{level = 10 : i32, message = "bqd,bkd->bqk"}> : () -> ()
    %cst_16 = arith.constant dense<0.000000e+00> : vector<4x16x16xf32>
    %14 = tpu.matmul %11, %12, %cst_16 {dimension_numbers = #tpu.dot_dimension_numbers<[2], [2], [1], [1], [0, 0, 0, 1, 1, 1], [0], [0]>} : vector<4x16x8xbf16>, vector<4x16x8xbf16>, vector<4x16x16xf32> -> vector<4x16x16xf32>
    "tpu.trace_stop"() : () -> ()
    %c0_17 = arith.constant 0 : index
    %c0_18 = arith.constant 0 : index
    %c0_19 = arith.constant 0 : index
    %15 = vector.load %arg2[%c0_17, %c0_18, %c0_19] : memref<4x16x16xf32, #tpu.memory_space<vmem>>, vector<1x16x16xf32>
    %16 = vector.shape_cast %15 : vector<1x16x16xf32> to vector<16x16xf32>
    %17 = vector.shape_cast %16 : vector<16x16xf32> to vector<1x16x16xf32>
    %18 = vector.broadcast %17 : vector<1x16x16xf32> to vector<4x16x16xf32>
    %19 = arith.addf %14, %18 : vector<4x16x16xf32>
    %20 = vector.shape_cast %19 : vector<4x16x16xf32> to vector<1x4x16x16xf32>
    %c0_20 = arith.constant 0 : index
    %c0_21 = arith.constant 0 : index
    %c0_22 = arith.constant 0 : index
    %21 = vector.load %arg3[%c0_20, %c0_21, %c0_22] : memref<4x16x16xf32, #tpu.memory_space<vmem>>, vector<4x16x16xf32>
    %22 = vector.shape_cast %21 : vector<4x16x16xf32> to vector<1x4x16x16xf32>
    %23 = arith.addf %20, %22 : vector<1x4x16x16xf32>
    %24 = vector.shape_cast %23 : vector<1x4x16x16xf32> to vector<4x16x16xf32>
    %cst_23 = arith.constant dense<0xFF800000> : vector<4x16xf32>
    %25 = vector.multi_reduction <maximumf>, %24, %cst_23 [2] : vector<4x16x16xf32> to vector<4x16xf32>
    %26 = vector.shape_cast %25 : vector<4x16xf32> to vector<4x16x1xf32>
    %27 = vector.broadcast %26 : vector<4x16x1xf32> to vector<4x16x16xf32>
    %28 = arith.subf %24, %27 : vector<4x16x16xf32>
    %29 = math.exp %28 : vector<4x16x16xf32>
    %cst_24 = arith.constant dense<0.000000e+00> : vector<4x16xf32>
    %30 = vector.multi_reduction <add>, %29, %cst_24 [2] : vector<4x16x16xf32> to vector<4x16xf32>
    %31 = vector.shape_cast %30 : vector<4x16xf32> to vector<4x16x1xf32>
    %32 = tpu.reciprocal %31 {approx = true} : vector<4x16x1xf32> -> vector<4x16x1xf32>
    %33 = vector.broadcast %32 : vector<4x16x1xf32> to vector<4x16x16xf32>
    %34 = arith.mulf %29, %33 : vector<4x16x16xf32>
    %35 = arith.truncf %34 : vector<4x16x16xf32> to vector<4x16x16xbf16>
    "tpu.trace_start"() <{level = 10 : i32, message = "bqk,bkd->bqd"}> : () -> ()
    %cst_25 = arith.constant dense<0.000000e+00> : vector<4x16x8xf32>
    %36 = tpu.matmul %35, %13, %cst_25 {dimension_numbers = #tpu.dot_dimension_numbers<[2], [1], [1], [2], [0, 0, 0, 1, 1, 2], [0], [0]>} : vector<4x16x16xbf16>, vector<4x16x8xbf16>, vector<4x16x8xf32> -> vector<4x16x8xf32>
    "tpu.trace_stop"() : () -> ()
    %37 = arith.truncf %36 : vector<4x16x8xf32> to vector<4x16x8xbf16>
    %c0_26 = arith.constant 0 : index
    %c0_27 = arith.constant 0 : index
    %c0_28 = arith.constant 0 : index
    %38 = vector.load %arg10[%c0_26, %c0_27, %c0_28] : memref<4x16x32xbf16, #tpu.memory_space<vmem>>, vector<4x16x8xbf16>
    tpu.vector_store %arg10[%c0_26, %c0_27, %c0_28], %37 {strides = array<i32>} : memref<4x16x32xbf16, #tpu.memory_space<vmem>>, vector<4x16x8xbf16>,
    %c0_29 = arith.constant 0 : index
    %c0_30 = arith.constant 0 : index
    %c8 = arith.constant 8 : index
    %39 = vector.load %arg9[%c0_29, %c0_30, %c8] : memref<4x16x96xbf16, #tpu.memory_space<vmem>>, vector<4x16x8xbf16>
    %c0_31 = arith.constant 0 : index
    %c0_32 = arith.constant 0 : index
    %c40 = arith.constant 40 : index
    %40 = vector.load %arg9[%c0_31, %c0_32, %c40] : memref<4x16x96xbf16, #tpu.memory_space<vmem>>, vector<4x16x8xbf16>
    %c0_33 = arith.constant 0 : index
    %c0_34 = arith.constant 0 : index
    %c72 = arith.constant 72 : index
    %41 = vector.load %arg9[%c0_33, %c0_34, %c72] : memref<4x16x96xbf16, #tpu.memory_space<vmem>>, vector<4x16x8xbf16>
    "tpu.trace_start"() <{level = 10 : i32, message = "bqd,bkd->bqk"}> : () -> ()
    %cst_35 = arith.constant dense<0.000000e+00> : vector<4x16x16xf32>
    %42 = tpu.matmul %39, %40, %cst_35 {dimension_numbers = #tpu.dot_dimension_numbers<[2], [2], [1], [1], [0, 0, 0, 1, 1, 1], [0], [0]>} : vector<4x16x8xbf16>, vector<4x16x8xbf16>, vector<4x16x16xf32> -> vector<4x16x16xf32>
    "tpu.trace_stop"() : () -> ()
    %c1 = arith.constant 1 : index
    %c0_36 = arith.constant 0 : index
    %c0_37 = arith.constant 0 : index
    %43 = vector.load %arg2[%c1, %c0_36, %c0_37] : memref<4x16x16xf32, #tpu.memory_space<vmem>>, vector<1x16x16xf32>
    %44 = vector.shape_cast %43 : vector<1x16x16xf32> to vector<16x16xf32>
    %45 = vector.shape_cast %44 : vector<16x16xf32> to vector<1x16x16xf32>
    %46 = vector.broadcast %45 : vector<1x16x16xf32> to vector<4x16x16xf32>
    %47 = arith.addf %42, %46 : vector<4x16x16xf32>
    %48 = vector.shape_cast %47 : vector<4x16x16xf32> to vector<1x4x16x16xf32>
    %c0_38 = arith.constant 0 : index
    %c0_39 = arith.constant 0 : index
    %c0_40 = arith.constant 0 : index
    %49 = vector.load %arg3[%c0_38, %c0_39, %c0_40] : memref<4x16x16xf32, #tpu.memory_space<vmem>>, vector<4x16x16xf32>
    %50 = vector.shape_cast %49 : vector<4x16x16xf32> to vector<1x4x16x16xf32>
    %51 = arith.addf %48, %50 : vector<1x4x16x16xf32>
    %52 = vector.shape_cast %51 : vector<1x4x16x16xf32> to vector<4x16x16xf32>
    %cst_41 = arith.constant dense<0xFF800000> : vector<4x16xf32>
    %53 = vector.multi_reduction <maximumf>, %52, %cst_41 [2] : vector<4x16x16xf32> to vector<4x16xf32>
    %54 = vector.shape_cast %53 : vector<4x16xf32> to vector<4x16x1xf32>
    %55 = vector.broadcast %54 : vector<4x16x1xf32> to vector<4x16x16xf32>
    %56 = arith.subf %52, %55 : vector<4x16x16xf32>
    %57 = math.exp %56 : vector<4x16x16xf32>
    %cst_42 = arith.constant dense<0.000000e+00> : vector<4x16xf32>
    %58 = vector.multi_reduction <add>, %57, %cst_42 [2] : vector<4x16x16xf32> to vector<4x16xf32>
    %59 = vector.shape_cast %58 : vector<4x16xf32> to vector<4x16x1xf32>
    %60 = tpu.reciprocal %59 {approx = true} : vector<4x16x1xf32> -> vector<4x16x1xf32>
    %61 = vector.broadcast %60 : vector<4x16x1xf32> to vector<4x16x16xf32>
    %62 = arith.mulf %57, %61 : vector<4x16x16xf32>
    %63 = arith.truncf %62 : vector<4x16x16xf32> to vector<4x16x16xbf16>
    "tpu.trace_start"() <{level = 10 : i32, message = "bqk,bkd->bqd"}> : () -> ()
    %cst_43 = arith.constant dense<0.000000e+00> : vector<4x16x8xf32>
    %64 = tpu.matmul %63, %41, %cst_43 {dimension_numbers = #tpu.dot_dimension_numbers<[2], [1], [1], [2], [0, 0, 0, 1, 1, 2], [0], [0]>} : vector<4x16x16xbf16>, vector<4x16x8xbf16>, vector<4x16x8xf32> -> vector<4x16x8xf32>
    "tpu.trace_stop"() : () -> ()
    %65 = arith.truncf %64 : vector<4x16x8xf32> to vector<4x16x8xbf16>
    %c0_44 = arith.constant 0 : index
    %c0_45 = arith.constant 0 : index
    %c8_46 = arith.constant 8 : index
    %66 = vector.load %arg10[%c0_44, %c0_45, %c8_46] : memref<4x16x32xbf16, #tpu.memory_space<vmem>>, vector<4x16x8xbf16>
    tpu.vector_store %arg10[%c0_44, %c0_45, %c8_46], %65 {strides = array<i32>} : memref<4x16x32xbf16, #tpu.memory_space<vmem>>, vector<4x16x8xbf16>,
    %c0_47 = arith.constant 0 : index
    %c0_48 = arith.constant 0 : index
    %c16 = arith.constant 16 : index
    %67 = vector.load %arg9[%c0_47, %c0_48, %c16] : memref<4x16x96xbf16, #tpu.memory_space<vmem>>, vector<4x16x8xbf16>
    %c0_49 = arith.constant 0 : index
    %c0_50 = arith.constant 0 : index
    %c48 = arith.constant 48 : index
    %68 = vector.load %arg9[%c0_49, %c0_50, %c48] : memref<4x16x96xbf16, #tpu.memory_space<vmem>>, vector<4x16x8xbf16>
    %c0_51 = arith.constant 0 : index
    %c0_52 = arith.constant 0 : index
    %c80 = arith.constant 80 : index
    %69 = vector.load %arg9[%c0_51, %c0_52, %c80] : memref<4x16x96xbf16, #tpu.memory_space<vmem>>, vector<4x16x8xbf16>
    "tpu.trace_start"() <{level = 10 : i32, message = "bqd,bkd->bqk"}> : () -> ()
    %cst_53 = arith.constant dense<0.000000e+00> : vector<4x16x16xf32>
    %70 = tpu.matmul %67, %68, %cst_53 {dimension_numbers = #tpu.dot_dimension_numbers<[2], [2], [1], [1], [0, 0, 0, 1, 1, 1], [0], [0]>} : vector<4x16x8xbf16>, vector<4x16x8xbf16>, vector<4x16x16xf32> -> vector<4x16x16xf32>
    "tpu.trace_stop"() : () -> ()
    %c2 = arith.constant 2 : index
    %c0_54 = arith.constant 0 : index
    %c0_55 = arith.constant 0 : index
    %71 = vector.load %arg2[%c2, %c0_54, %c0_55] : memref<4x16x16xf32, #tpu.memory_space<vmem>>, vector<1x16x16xf32>
    %72 = vector.shape_cast %71 : vector<1x16x16xf32> to vector<16x16xf32>
    %73 = vector.shape_cast %72 : vector<16x16xf32> to vector<1x16x16xf32>
    %74 = vector.broadcast %73 : vector<1x16x16xf32> to vector<4x16x16xf32>
    %75 = arith.addf %70, %74 : vector<4x16x16xf32>
    %76 = vector.shape_cast %75 : vector<4x16x16xf32> to vector<1x4x16x16xf32>
    %c0_56 = arith.constant 0 : index
    %c0_57 = arith.constant 0 : index
    %c0_58 = arith.constant 0 : index
    %77 = vector.load %arg3[%c0_56, %c0_57, %c0_58] : memref<4x16x16xf32, #tpu.memory_space<vmem>>, vector<4x16x16xf32>
    %78 = vector.shape_cast %77 : vector<4x16x16xf32> to vector<1x4x16x16xf32>
    %79 = arith.addf %76, %78 : vector<1x4x16x16xf32>
    %80 = vector.shape_cast %79 : vector<1x4x16x16xf32> to vector<4x16x16xf32>
    %cst_59 = arith.constant dense<0xFF800000> : vector<4x16xf32>
    %81 = vector.multi_reduction <maximumf>, %80, %cst_59 [2] : vector<4x16x16xf32> to vector<4x16xf32>
    %82 = vector.shape_cast %81 : vector<4x16xf32> to vector<4x16x1xf32>
    %83 = vector.broadcast %82 : vector<4x16x1xf32> to vector<4x16x16xf32>
    %84 = arith.subf %80, %83 : vector<4x16x16xf32>
    %85 = math.exp %84 : vector<4x16x16xf32>
    %cst_60 = arith.constant dense<0.000000e+00> : vector<4x16xf32>
    %86 = vector.multi_reduction <add>, %85, %cst_60 [2] : vector<4x16x16xf32> to vector<4x16xf32>
    %87 = vector.shape_cast %86 : vector<4x16xf32> to vector<4x16x1xf32>
    %88 = tpu.reciprocal %87 {approx = true} : vector<4x16x1xf32> -> vector<4x16x1xf32>
    %89 = vector.broadcast %88 : vector<4x16x1xf32> to vector<4x16x16xf32>
    %90 = arith.mulf %85, %89 : vector<4x16x16xf32>
    %91 = arith.truncf %90 : vector<4x16x16xf32> to vector<4x16x16xbf16>
    "tpu.trace_start"() <{level = 10 : i32, message = "bqk,bkd->bqd"}> : () -> ()
    %cst_61 = arith.constant dense<0.000000e+00> : vector<4x16x8xf32>
    %92 = tpu.matmul %91, %69, %cst_61 {dimension_numbers = #tpu.dot_dimension_numbers<[2], [1], [1], [2], [0, 0, 0, 1, 1, 2], [0], [0]>} : vector<4x16x16xbf16>, vector<4x16x8xbf16>, vector<4x16x8xf32> -> vector<4x16x8xf32>
    "tpu.trace_stop"() : () -> ()
    %93 = arith.truncf %92 : vector<4x16x8xf32> to vector<4x16x8xbf16>
    %c0_62 = arith.constant 0 : index
    %c0_63 = arith.constant 0 : index
    %c16_64 = arith.constant 16 : index
    %94 = vector.load %arg10[%c0_62, %c0_63, %c16_64] : memref<4x16x32xbf16, #tpu.memory_space<vmem>>, vector<4x16x8xbf16>
    tpu.vector_store %arg10[%c0_62, %c0_63, %c16_64], %93 {strides = array<i32>} : memref<4x16x32xbf16, #tpu.memory_space<vmem>>, vector<4x16x8xbf16>,
    %c0_65 = arith.constant 0 : index
    %c0_66 = arith.constant 0 : index
    %c24 = arith.constant 24 : index
    %95 = vector.load %arg9[%c0_65, %c0_66, %c24] : memref<4x16x96xbf16, #tpu.memory_space<vmem>>, vector<4x16x8xbf16>
    %c0_67 = arith.constant 0 : index
    %c0_68 = arith.constant 0 : index
    %c56 = arith.constant 56 : index
    %96 = vector.load %arg9[%c0_67, %c0_68, %c56] : memref<4x16x96xbf16, #tpu.memory_space<vmem>>, vector<4x16x8xbf16>
    %c0_69 = arith.constant 0 : index
    %c0_70 = arith.constant 0 : index
    %c88 = arith.constant 88 : index
    %97 = vector.load %arg9[%c0_69, %c0_70, %c88] : memref<4x16x96xbf16, #tpu.memory_space<vmem>>, vector<4x16x8xbf16>
    "tpu.trace_start"() <{level = 10 : i32, message = "bqd,bkd->bqk"}> : () -> ()
    %cst_71 = arith.constant dense<0.000000e+00> : vector<4x16x16xf32>
    %98 = tpu.matmul %95, %96, %cst_71 {dimension_numbers = #tpu.dot_dimension_numbers<[2], [2], [1], [1], [0, 0, 0, 1, 1, 1], [0], [0]>} : vector<4x16x8xbf16>, vector<4x16x8xbf16>, vector<4x16x16xf32> -> vector<4x16x16xf32>
    "tpu.trace_stop"() : () -> ()
    %c3 = arith.constant 3 : index
    %c0_72 = arith.constant 0 : index
    %c0_73 = arith.constant 0 : index
    %99 = vector.load %arg2[%c3, %c0_72, %c0_73] : memref<4x16x16xf32, #tpu.memory_space<vmem>>, vector<1x16x16xf32>
    %100 = vector.shape_cast %99 : vector<1x16x16xf32> to vector<16x16xf32>
    %101 = vector.shape_cast %100 : vector<16x16xf32> to vector<1x16x16xf32>
    %102 = vector.broadcast %101 : vector<1x16x16xf32> to vector<4x16x16xf32>
    %103 = arith.addf %98, %102 : vector<4x16x16xf32>
    %104 = vector.shape_cast %103 : vector<4x16x16xf32> to vector<1x4x16x16xf32>
    %c0_74 = arith.constant 0 : index
    %c0_75 = arith.constant 0 : index
    %c0_76 = arith.constant 0 : index
    %105 = vector.load %arg3[%c0_74, %c0_75, %c0_76] : memref<4x16x16xf32, #tpu.memory_space<vmem>>, vector<4x16x16xf32>
    %106 = vector.shape_cast %105 : vector<4x16x16xf32> to vector<1x4x16x16xf32>
    %107 = arith.addf %104, %106 : vector<1x4x16x16xf32>
    %108 = vector.shape_cast %107 : vector<1x4x16x16xf32> to vector<4x16x16xf32>
    %cst_77 = arith.constant dense<0xFF800000> : vector<4x16xf32>
    %109 = vector.multi_reduction <maximumf>, %108, %cst_77 [2] : vector<4x16x16xf32> to vector<4x16xf32>
    %110 = vector.shape_cast %109 : vector<4x16xf32> to vector<4x16x1xf32>
    %111 = vector.broadcast %110 : vector<4x16x1xf32> to vector<4x16x16xf32>
    %112 = arith.subf %108, %111 : vector<4x16x16xf32>
    %113 = math.exp %112 : vector<4x16x16xf32>
    %cst_78 = arith.constant dense<0.000000e+00> : vector<4x16xf32>
    %114 = vector.multi_reduction <add>, %113, %cst_78 [2] : vector<4x16x16xf32> to vector<4x16xf32>
    %115 = vector.shape_cast %114 : vector<4x16xf32> to vector<4x16x1xf32>
    %116 = tpu.reciprocal %115 {approx = true} : vector<4x16x1xf32> -> vector<4x16x1xf32>
    %117 = vector.broadcast %116 : vector<4x16x1xf32> to vector<4x16x16xf32>
    %118 = arith.mulf %113, %117 : vector<4x16x16xf32>
    %119 = arith.truncf %118 : vector<4x16x16xf32> to vector<4x16x16xbf16>
    "tpu.trace_start"() <{level = 10 : i32, message = "bqk,bkd->bqd"}> : () -> ()
    %cst_79 = arith.constant dense<0.000000e+00> : vector<4x16x8xf32>
    %120 = tpu.matmul %119, %97, %cst_79 {dimension_numbers = #tpu.dot_dimension_numbers<[2], [1], [1], [2], [0, 0, 0, 1, 1, 2], [0], [0]>} : vector<4x16x16xbf16>, vector<4x16x8xbf16>, vector<4x16x8xf32> -> vector<4x16x8xf32>
    "tpu.trace_stop"() : () -> ()
    %121 = arith.truncf %120 : vector<4x16x8xf32> to vector<4x16x8xbf16>
    %c0_80 = arith.constant 0 : index
    %c0_81 = arith.constant 0 : index
    %c24_82 = arith.constant 24 : index
    %122 = vector.load %arg10[%c0_80, %c0_81, %c24_82] : memref<4x16x32xbf16, #tpu.memory_space<vmem>>, vector<4x16x8xbf16>
    tpu.vector_store %arg10[%c0_80, %c0_81, %c24_82], %121 {strides = array<i32>} : memref<4x16x32xbf16, #tpu.memory_space<vmem>>, vector<4x16x8xbf16>,
    %c0_83 = arith.constant 0 : index
    %c0_84 = arith.constant 0 : index
    %c0_85 = arith.constant 0 : index
    %123 = vector.load %arg10[%c0_83, %c0_84, %c0_85] : memref<4x16x32xbf16, #tpu.memory_space<vmem>>, vector<4x16x32xbf16>
    %124 = vector.shape_cast %123 : vector<4x16x32xbf16> to vector<64x32xbf16>
    %c0_86 = arith.constant 0 : index
    %c0_87 = arith.constant 0 : index
    %125 = vector.load %arg6[%c0_86, %c0_87] : memref<32x32xbf16, #tpu.memory_space<vmem>>, vector<32x32xbf16>
    %cst_88 = arith.constant dense<0.000000e+00> : vector<64x32xf32>
    %126 = tpu.matmul %124, %125, %cst_88 {dimension_numbers = #tpu.dot_dimension_numbers<[1], [0], [0], [1], [0, 0, 1, 1], [], []>} : vector<64x32xbf16>, vector<32x32xbf16>, vector<64x32xf32> -> vector<64x32xf32>
    %c0_89 = arith.constant 0 : index
    %c0_90 = arith.constant 0 : index
    %127 = vector.load %arg7[%c0_89, %c0_90] : memref<1x32xf32, #tpu.memory_space<vmem>>, vector<1x32xf32>
    %128 = vector.broadcast %127 : vector<1x32xf32> to vector<64x32xf32>
    %129 = arith.addf %126, %128 : vector<64x32xf32>
    %130 = vector.shape_cast %129 : vector<64x32xf32> to vector<4x16x32xf32>
    %c0_91 = arith.constant 0 : index
    %c0_92 = arith.constant 0 : index
    %c0_93 = arith.constant 0 : index
    %131 = vector.load %arg8[%c0_91, %c0_92, %c0_93] : memref<4x16x32xf32, #tpu.memory_space<vmem>>, vector<4x16x32xf32>
    tpu.vector_store %arg8[%c0_91, %c0_92, %c0_93], %130 {strides = array<i32>} : memref<4x16x32xf32, #tpu.memory_space<vmem>>, vector<4x16x32xf32>,
    return
  }
  func.func @transform_0(%arg0: i32) -> (i32, i32, i32) {
    %c0_i32 = arith.constant 0 : i32
    %c0_i32_0 = arith.constant 0 : i32
    %c0_i32_1 = arith.constant 0 : i32
    return %arg0, %c0_i32, %c0_i32_0 : i32, i32, i32
  }
  func.func @transform_1(%arg0: i32) -> (i32, i32, i32) {
    %c0_i32 = arith.constant 0 : i32
    %c0_i32_0 = arith.constant 0 : i32
    %c0_i32_1 = arith.constant 0 : i32
    %c0_i32_2 = arith.constant 0 : i32
    return %c0_i32, %c0_i32_0, %c0_i32_1 : i32, i32, i32
  }
  func.func @transform_2(%arg0: i32) -> (i32, i32, i32) {
    %c0_i32 = arith.constant 0 : i32
    %c0_i32_0 = arith.constant 0 : i32
    %c0_i32_1 = arith.constant 0 : i32
    %c0_i32_2 = arith.constant 0 : i32
    return %c0_i32, %c0_i32_0, %c0_i32_1 : i32, i32, i32
  }
  func.func @transform_3(%arg0: i32) -> (i32, i32) {
    %c0_i32 = arith.constant 0 : i32
    %c0_i32_0 = arith.constant 0 : i32
    %c0_i32_1 = arith.constant 0 : i32
    return %c0_i32, %c0_i32_0 : i32, i32
  }
  func.func @transform_4(%arg0: i32) -> (i32, i32) {
    %c0_i32 = arith.constant 0 : i32
    %c0_i32_0 = arith.constant 0 : i32
    %c0_i32_1 = arith.constant 0 : i32
    return %c0_i32, %c0_i32_0 : i32, i32
  }
  func.func @transform_5(%arg0: i32) -> (i32, i32) {
    %c0_i32 = arith.constant 0 : i32
    %c0_i32_0 = arith.constant 0 : i32
    %c0_i32_1 = arith.constant 0 : i32
    return %c0_i32, %c0_i32_0 : i32, i32
  }
  func.func @transform_6(%arg0: i32) -> (i32, i32) {
    %c0_i32 = arith.constant 0 : i32
    %c0_i32_0 = arith.constant 0 : i32
    %c0_i32_1 = arith.constant 0 : i32
    return %c0_i32, %c0_i32_0 : i32, i32
  }
  func.func @transform_7(%arg0: i32) -> (i32, i32, i32) {
    %c0_i32 = arith.constant 0 : i32
    %c0_i32_0 = arith.constant 0 : i32
    %c0_i32_1 = arith.constant 0 : i32
    return %arg0, %c0_i32, %c0_i32_0 : i32, i32, i32
  }
}

</mosaic_0001>

<llo_original>
// kernel: tpu_custom_call.1
$region0: #{tpu_custom_call.1}
  #allocation0 [shape = 'u32[]', space=smem, size = 0x4, offset = 0x4, fixed_abs, tag = 'smem constant byte address 0x4 - core index']
  #allocation1 [shape = 'u32[144,128]{1,0:T(1,128)}', space=vmem, size = 0x12000, scoped, tag = 'internal scratch']
  #allocation2 [shape = 'bf16[4,16,96]{2,1,0:T(16,128)(2,1)}', space=vmem, size = 0x4000, scoped, tag = 'scratch operand']
  #allocation3 [shape = 'bf16[4,16,32]{2,1,0:T(16,128)(2,1)}', space=vmem, size = 0x4000, scoped, tag = 'scratch operand']
  %s0 = inlined_call_operand.hbm [shape: f32[16,16,32], index: 0, kind: input, shape index: {}]
  %s1 = inlined_call_operand.hbm [shape: f32[4,16,16], index: 1, kind: input, shape index: {}]
  %s2 = inlined_call_operand.hbm [shape: f32[4,16,16], index: 2, kind: input, shape index: {}]
  %s3 = inlined_call_operand.hbm [shape: bf16[32,96], index: 3, kind: input, shape index: {}]
  %s4 = inlined_call_operand.vmem [shape: f32[1,96], index: 4, kind: input, shape index: {}]
  %s5 = inlined_call_operand.vmem [shape: bf16[32,32], index: 5, kind: input, shape index: {}]
  %s6 = inlined_call_operand.vmem [shape: f32[1,32], index: 6, kind: input, shape index: {}]
  %s7 = inlined_call_operand.hbm [shape: f32[16,16,32], index: 7, kind: output, shape index: {}]
  %s8 = sld [smem:[#allocation0]]
  $region77: #{tpu_custom_call.1} parent=0
    _
  %s10 = ssub.s32 1, %s8
  %s11 = scalar_select 0, %s10, %s8
  $region1: #{tpu_custom_call.1} parent=0
    #allocation4 [shape = 'u8[65536]{0}', space=vmem, size = 0x10000, scoped, tag = 'input window, operand 0']
    #allocation5 [shape = 's32[2]{0}', space=sflag, size = 0x8, scoped, tag = 'scoped memory for tpu_custom_call.1']
    #allocation6 [shape = 's32[2]{0}', space=sflag, size = 0x8, scoped, tag = 'scoped memory for tpu_custom_call.1']
    #allocation7 [shape = 'u8[32768]{0}', space=vmem, size = 0x8000, scoped, tag = 'input window, operand 1, single buffered']
    #allocation8 [shape = 's32[1]{0}', space=sflag, size = 0x4, scoped, tag = 'scoped memory for tpu_custom_call.1']
    #allocation9 [shape = 'u8[32768]{0}', space=vmem, size = 0x8000, scoped, tag = 'input window, operand 2, single buffered']
    #allocation10 [shape = 'u8[8192]{0}', space=vmem, size = 0x2000, scoped, tag = 'input window, operand 3, single buffered']
    #allocation11 [shape = 's32[1]{0}', space=sflag, size = 0x4, scoped, tag = 'scoped memory for tpu_custom_call.1']
    #allocation12 [shape = 'u8[65536]{0}', space=vmem, size = 0x10000, scoped, tag = 'output window, operand 0']
    %12 = vsyncpa [#allocation5], 0
    %s13 = scalar_lea.sflag [#allocation5], 1
    %14 = vsyncpa %s13, 0
    %15 = vsyncpa [#allocation8], 0
    %16 = vsyncpa [#allocation11], 0
    %17 = vsyncpa [#allocation6], 0
    %s18 = scalar_lea.sflag [#allocation6], 1
    %19 = vsyncpa %s18, 0
    loop: start=0, step=1, limit=6
    $region2: #{tpu_custom_call.1} parent=1 // loop_pre_header
      _
    $region3: #{tpu_custom_call.1} parent=1 // loop_header
      %s21 = sphi 0, %s25
      %p22 = scmp.ge.s32.totalorder %s21, 6
      %s31 = sphi 0, %s33
      %s34 = sphi 0, %s31
      %s35 = sphi 0, %s34
      %s51 = sphi 0, %s35
      %s55 = sphi 0, %s55
      %s57 = sphi 0, %s55
      %s58 = sphi 0, %s57
      %s72 = sphi 0, %s58
      %s76 = sphi 0, %s76
      %s78 = sphi 0, %s76
      %s79 = sphi 0, %s78
      %s93 = sphi 0, %s79
      %s97 = sphi 0, %s97
      %s99 = sphi 0, %s97
      %s100 = sphi 0, %s99
      %s114 = sphi 0, %s100
      %s118 = sphi 0, %s118
      %s120 = sphi 0, %s118
      %s121 = sphi 0, %s120
      %s135 = sphi 0, %s121
      %s139 = sphi 0, %s139
      %s141 = sphi 0, %s139
      %s142 = sphi 0, %s141
      %s156 = sphi 0, %s142
      %s160 = sphi 0, %s160
      %s162 = sphi 0, %s160
      %s163 = sphi 0, %s162
      %s177 = sphi 0, %s163
      %s183 = sphi 0, %s185
      %s186 = sphi 0, %s183
      %s187 = sphi 0, %s186
      %s203 = sphi 0, %s187
    $region4: #{tpu_custom_call.1} parent=1 // loop_header_branch
      %24 = sbr.rel (%p22) target = $region8
    $region5: #{tpu_custom_call.1} parent=1 // loop_body
      %s26 = ssub.s32 %s21, 1
      %s27 = ssub.s32 %s21, 2
      %s28 = sadd.s32 %s21, 1
      %s29 = ssub.s32 %s21, %s28
      %p30 = scmp.eq.s32.totalorder %s29, 0
      %s32 = sadd.s32 %s31, 1
      %s33 = scalar_select %p30, %s31, %s32
      %p36 = pneg %p30
      %p37 = scmp.eq.s32.totalorder %s21, 3
      %p38 = por %p36, %p37
      %p39 = scmp.ne.s32.totalorder %s31, %s34
      %p40 = scmp.eq.s32.totalorder %s21, 0
      %p41 = por %p39, %p40
      %p42 = scmp.ne.s32.totalorder %s31, %s34
      %p43 = scmp.eq.s32.totalorder %s26, 3
      %p44 = por %p42, %p43
      %p45 = scmp.ne.s32.totalorder %s34, %s35
      %p46 = scmp.eq.s32.totalorder %s26, 0
      %p47 = por %p45, %p46
      %p48 = scmp.ne.s32.totalorder %s34, %s35
      %p49 = scmp.eq.s32.totalorder %s27, 3
      %p50 = por %p48, %p49
      %p52 = scmp.ne.s32.totalorder %s35, %s51
      %p53 = scmp.eq.s32.totalorder %s27, 0
      %p54 = por %p52, %p53
      %s56 = sadd.s32 %s55, 1
      %p59 = scmp.eq.s32.totalorder %s21, 3
      %p60 = scmp.ne.s32.totalorder %s55, %s57
      %p61 = scmp.eq.s32.totalorder %s21, 0
      %p62 = por %p60, %p61
      %p63 = scmp.ne.s32.totalorder %s55, %s57
      %p64 = scmp.eq.s32.totalorder %s26, 3
      %p65 = por %p63, %p64
      %p66 = scmp.ne.s32.totalorder %s57, %s58
      %p67 = scmp.eq.s32.totalorder %s26, 0
      %p68 = por %p66, %p67
      %p69 = scmp.ne.s32.totalorder %s57, %s58
      %p70 = scmp.eq.s32.totalorder %s27, 3
      %p71 = por %p69, %p70
      %p73 = scmp.ne.s32.totalorder %s58, %s72
      %p74 = scmp.eq.s32.totalorder %s27, 0
      %p75 = por %p73, %p74
      %s77 = sadd.s32 %s76, 1
      %p80 = scmp.eq.s32.totalorder %s21, 3
      %p81 = scmp.ne.s32.totalorder %s76, %s78
      %p82 = scmp.eq.s32.totalorder %s21, 0
      %p83 = por %p81, %p82
      %p84 = scmp.ne.s32.totalorder %s76, %s78
      %p85 = scmp.eq.s32.totalorder %s26, 3
      %p86 = por %p84, %p85
      %p87 = scmp.ne.s32.totalorder %s78, %s79
      %p88 = scmp.eq.s32.totalorder %s26, 0
      %p89 = por %p87, %p88
      %p90 = scmp.ne.s32.totalorder %s78, %s79
      %p91 = scmp.eq.s32.totalorder %s27, 3
      %p92 = por %p90, %p91
      %p94 = scmp.ne.s32.totalorder %s79, %s93
      %p95 = scmp.eq.s32.totalorder %s27, 0
      %p96 = por %p94, %p95
      %s98 = sadd.s32 %s97, 1
      %p101 = scmp.eq.s32.totalorder %s21, 3
      %p102 = scmp.ne.s32.totalorder %s97, %s99
      %p103 = scmp.eq.s32.totalorder %s21, 0
      %p104 = por %p102, %p103
      %p105 = scmp.ne.s32.totalorder %s97, %s99
      %p106 = scmp.eq.s32.totalorder %s26, 3
      %p107 = por %p105, %p106
      %p108 = scmp.ne.s32.totalorder %s99, %s100
      %p109 = scmp.eq.s32.totalorder %s26, 0
      %p110 = por %p108, %p109
      %p111 = scmp.ne.s32.totalorder %s99, %s100
      %p112 = scmp.eq.s32.totalorder %s27, 3
      %p113 = por %p111, %p112
      %p115 = scmp.ne.s32.totalorder %s100, %s114
      %p116 = scmp.eq.s32.totalorder %s27, 0
      %p117 = por %p115, %p116
      %s119 = sadd.s32 %s118, 1
      %p122 = scmp.eq.s32.totalorder %s21, 3
      %p123 = scmp.ne.s32.totalorder %s118, %s120
      %p124 = scmp.eq.s32.totalorder %s21, 0
      %p125 = por %p123, %p124
      %p126 = scmp.ne.s32.totalorder %s118, %s120
      %p127 = scmp.eq.s32.totalorder %s26, 3
      %p128 = por %p126, %p127
      %p129 = scmp.ne.s32.totalorder %s120, %s121
      %p130 = scmp.eq.s32.totalorder %s26, 0
      %p131 = por %p129, %p130
      %p132 = scmp.ne.s32.totalorder %s120, %s121
      %p133 = scmp.eq.s32.totalorder %s27, 3
      %p134 = por %p132, %p133
      %p136 = scmp.ne.s32.totalorder %s121, %s135
      %p137 = scmp.eq.s32.totalorder %s27, 0
      %p138 = por %p136, %p137
      %s140 = sadd.s32 %s139, 1
      %p143 = scmp.eq.s32.totalorder %s21, 3
      %p144 = scmp.ne.s32.totalorder %s139, %s141
      %p145 = scmp.eq.s32.totalorder %s21, 0
      %p146 = por %p144, %p145
      %p147 = scmp.ne.s32.totalorder %s139, %s141
      %p148 = scmp.eq.s32.totalorder %s26, 3
      %p149 = por %p147, %p148
      %p150 = scmp.ne.s32.totalorder %s141, %s142
      %p151 = scmp.eq.s32.totalorder %s26, 0
      %p152 = por %p150, %p151
      %p153 = scmp.ne.s32.totalorder %s141, %s142
      %p154 = scmp.eq.s32.totalorder %s27, 3
      %p155 = por %p153, %p154
      %p157 = scmp.ne.s32.totalorder %s142, %s156
      %p158 = scmp.eq.s32.totalorder %s27, 0
      %p159 = por %p157, %p158
      %s161 = sadd.s32 %s160, 1
      %p164 = scmp.eq.s32.totalorder %s21, 3
      %p165 = scmp.ne.s32.totalorder %s160, %s162
      %p166 = scmp.eq.s32.totalorder %s21, 0
      %p167 = por %p165, %p166
      %p168 = scmp.ne.s32.totalorder %s160, %s162
      %p169 = scmp.eq.s32.totalorder %s26, 3
      %p170 = por %p168, %p169
      %p171 = scmp.ne.s32.totalorder %s162, %s163
      %p172 = scmp.eq.s32.totalorder %s26, 0
      %p173 = por %p171, %p172
      %p174 = scmp.ne.s32.totalorder %s162, %s163
      %p175 = scmp.eq.s32.totalorder %s27, 3
      %p176 = por %p174, %p175
      %p178 = scmp.ne.s32.totalorder %s163, %s177
      %p179 = scmp.eq.s32.totalorder %s27, 0
      %p180 = por %p178, %p179
      %s181 = ssub.s32 %s21, %s28
      %p182 = scmp.eq.s32.totalorder %s181, 0
      %s184 = sadd.s32 %s183, 1
      %s185 = scalar_select %p182, %s183, %s184
      %p188 = pneg %p182
      %p189 = scmp.eq.s32.totalorder %s21, 3
      %p190 = por %p188, %p189
      %p191 = scmp.ne.s32.totalorder %s183, %s186
      %p192 = scmp.eq.s32.totalorder %s21, 0
      %p193 = por %p191, %p192
      %p194 = scmp.ne.s32.totalorder %s183, %s186
      %p195 = scmp.eq.s32.totalorder %s26, 3
      %p196 = por %p194, %p195
      %p197 = scmp.ne.s32.totalorder %s186, %s187
      %p198 = scmp.eq.s32.totalorder %s26, 0
      %p199 = por %p197, %p198
      %p200 = scmp.ne.s32.totalorder %s186, %s187
      %p201 = scmp.eq.s32.totalorder %s27, 3
      %p202 = por %p200, %p201
      %p204 = scmp.ne.s32.totalorder %s187, %s203
      %p205 = scmp.eq.s32.totalorder %s27, 0
      %p206 = por %p204, %p205
      %p207 = scmp.le.s32.totalorder 1, %s21
      %p208 = scmp.lt.s32.totalorder %s21, 5
      %p209 = pnand %p207, %p208
      %p210 = pneg %p209
      // Predicated region
      $region9: #{tpu_custom_call.1} parent=5 // pred_check
        _
      $region10: #{tpu_custom_call.1} parent=5 // pred_check_branch
        %212 = sbr.rel (%p209) target = $region12
      $region11: #{tpu_custom_call.1} parent=5 // pred_region
        %s213 = ssub.s32 %s21, 1
        // Predicated region
        $region13: #{tpu_custom_call.1} parent=11 // pred_check
          %p214 = pneg %p68
        $region14: #{tpu_custom_call.1} parent=11 // pred_check_branch
          %216 = sbr.rel (%p214) target = $region16
        $region15: #{tpu_custom_call.1} parent=11 // pred_region
          %s218 = ssub.s32 1024, 1024
          %219 = vsyncadd [#allocation8], %s218
          %s220 = sshll.u32 [#allocation7], 4
          %s221 = int_to_ptr.vmem [resolvable:$true] %s220
          %226 = dma.hbm_to_vmem [thread:$0]  %s1, 1024, %s221, [#allocation8], 128, 128, 8
        $region16: #{tpu_custom_call.1} parent=11 // pred_fallthru
          _
        // Predicated region
        $region17: #{tpu_custom_call.1} parent=11 // pred_check
          %p227 = pneg %p89
        $region18: #{tpu_custom_call.1} parent=11 // pred_check_branch
          %229 = sbr.rel (%p227) target = $region20
        $region19: #{tpu_custom_call.1} parent=11 // pred_region
          %s231 = ssub.s32 1024, 1024
          %232 = vsyncadd [#allocation8], %s231
          %s233 = sshll.u32 [#allocation9], 4
          %s234 = int_to_ptr.vmem [resolvable:$true] %s233
          %239 = dma.hbm_to_vmem [thread:$0]  %s2, 1024, %s234, [#allocation8], 128, 128, 8
        $region20: #{tpu_custom_call.1} parent=11 // pred_fallthru
          _
        // Predicated region
        $region21: #{tpu_custom_call.1} parent=11 // pred_check
          %p240 = pneg %p110
        $region22: #{tpu_custom_call.1} parent=11 // pred_check_branch
          %242 = sbr.rel (%p240) target = $region24
        $region23: #{tpu_custom_call.1} parent=11 // pred_region
          %s244 = ssub.s32 256, 256
          %245 = vsyncadd [#allocation11], %s244
          %s246 = sshll.u32 [#allocation10], 4
          %s247 = int_to_ptr.vmem [resolvable:$true] %s246
          %252 = dma.hbm_to_vmem [thread:$0]  %s3, 256, %s247, [#allocation11], 64, 64, 4
        $region24: #{tpu_custom_call.1} parent=11 // pred_fallthru
          _
        // Predicated region
        $region25: #{tpu_custom_call.1} parent=11 // pred_check
          %p253 = pneg %p131
        $region26: #{tpu_custom_call.1} parent=11 // pred_check_branch
          %255 = sbr.rel (%p253) target = $region28
        $region27: #{tpu_custom_call.1} parent=11 // pred_region
          _
        $region28: #{tpu_custom_call.1} parent=11 // pred_fallthru
          _
        // Predicated region
        $region29: #{tpu_custom_call.1} parent=11 // pred_check
          %p256 = pneg %p152
        $region30: #{tpu_custom_call.1} parent=11 // pred_check_branch
          %258 = sbr.rel (%p256) target = $region32
        $region31: #{tpu_custom_call.1} parent=11 // pred_region
          _
        $region32: #{tpu_custom_call.1} parent=11 // pred_fallthru
          _
        // Predicated region
        $region33: #{tpu_custom_call.1} parent=11 // pred_check
          %p259 = pneg %p173
        $region34: #{tpu_custom_call.1} parent=11 // pred_check_branch
          %261 = sbr.rel (%p259) target = $region36
        $region35: #{tpu_custom_call.1} parent=11 // pred_region
          _
        $region36: #{tpu_custom_call.1} parent=11 // pred_fallthru
          _
      $region12: #{tpu_custom_call.1} parent=5 // pred_fallthru
        _
      %p262 = scmp.lt.s32.totalorder %s21, 4
      // Predicated region
      $region37: #{tpu_custom_call.1} parent=5 // pred_check
        %p263 = pneg %p262
      $region38: #{tpu_custom_call.1} parent=5 // pred_check_branch
        %265 = sbr.rel (%p263) target = $region40
      $region39: #{tpu_custom_call.1} parent=5 // pred_region
        // Predicated region
        $region41: #{tpu_custom_call.1} parent=39 // pred_check
          %p266 = pneg %p41
        $region42: #{tpu_custom_call.1} parent=39 // pred_check_branch
          %268 = sbr.rel (%p266) target = $region44
        $region43: #{tpu_custom_call.1} parent=39 // pred_region
          %s269 = sand.u32 %s31, 1
          %s270 = scalar_lea.sflag [#allocation5], %s269
          %s271 = sand.u32 %s31, 1
          %s272 = smul.addr %s271, 64
          %s273 = scalar_lea.vmem [#allocation4], %s272
          %s274 = smul.u32 4, %s21
          %s276 = ssub.s32 1024, 1024
          %277 = vsyncadd %s270, %s276
          %s278 = smul.addr %s274, 2
          %s279 = smul.addr %s278, 128
          %s280 = scalar_lea.hbm %s0, %s279
          %s281 = sshll.u32 %s273, 4
          %s282 = int_to_ptr.vmem [resolvable:$true] %s281
          %287 = dma.hbm_to_vmem [thread:$0]  %s280, 1024, %s282, %s270, 128, 128, 8
        $region44: #{tpu_custom_call.1} parent=39 // pred_fallthru
          _
      $region40: #{tpu_custom_call.1} parent=5 // pred_fallthru
        _
      %p288 = scmp.le.s32.totalorder 1, %s21
      %p289 = scmp.lt.s32.totalorder %s21, 5
      %p290 = pnand %p288, %p289
      %p291 = pneg %p290
      // Predicated region
      $region45: #{tpu_custom_call.1} parent=5 // pred_check
        _
      $region46: #{tpu_custom_call.1} parent=5 // pred_check_branch
        %293 = sbr.rel (%p290) target = $region48
      $region47: #{tpu_custom_call.1} parent=5 // pred_region
        %s294 = ssub.s32 %s21, 1
        %s295 = sand.u32 %s34, 1
        %s296 = scalar_lea.sflag [#allocation5], %s295
        %s297 = sand.u32 %s34, 1
        %s298 = smul.addr %s297, 64
        %s299 = scalar_lea.vmem [#allocation4], %s298
        // Predicated region
        $region49: #{tpu_custom_call.1} parent=47 // pred_check
          %p300 = pneg %p47
        $region50: #{tpu_custom_call.1} parent=47 // pred_check_branch
          %302 = sbr.rel (%p300) target = $region52
        $region51: #{tpu_custom_call.1} parent=47 // pred_region
          %303 = dma.done %s296, 1024
        $region52: #{tpu_custom_call.1} parent=47 // pred_fallthru
          _
        // Predicated region
        $region53: #{tpu_custom_call.1} parent=47 // pred_check
          %p304 = pneg %p68
        $region54: #{tpu_custom_call.1} parent=47 // pred_check_branch
          %306 = sbr.rel (%p304) target = $region56
        $region55: #{tpu_custom_call.1} parent=47 // pred_region
          %307 = dma.done [#allocation8], 1024
        $region56: #{tpu_custom_call.1} parent=47 // pred_fallthru
          _
        // Predicated region
        $region57: #{tpu_custom_call.1} parent=47 // pred_check
          %p308 = pneg %p89
        $region58: #{tpu_custom_call.1} parent=47 // pred_check_branch
          %310 = sbr.rel (%p308) target = $region60
        $region59: #{tpu_custom_call.1} parent=47 // pred_region
          %311 = dma.done [#allocation8], 1024
        $region60: #{tpu_custom_call.1} parent=47 // pred_fallthru
          _
        // Predicated region
        $region61: #{tpu_custom_call.1} parent=47 // pred_check
          %p312 = pneg %p110
        $region62: #{tpu_custom_call.1} parent=47 // pred_check_branch
          %314 = sbr.rel (%p312) target = $region64
        $region63: #{tpu_custom_call.1} parent=47 // pred_region
          %315 = dma.done [#allocation11], 256
        $region64: #{tpu_custom_call.1} parent=47 // pred_fallthru
          _
        %s316 = sand.u32 %s34, 1
        %s317 = scalar_lea.sflag [#allocation5], %s316
        %s318 = sand.u32 %s34, 1
        %s319 = smul.addr %s318, 64
        %s320 = scalar_lea.vmem [#allocation4], %s319
        %p321 = pneg %p47
        %p322 = pneg %p44
        %p323 = pneg %p68
        %p324 = pneg %p65
        %p325 = pneg %p89
        %p326 = pneg %p86
        %p327 = pneg %p110
        %p328 = pneg %p107
        %p329 = pneg %p131
        %p330 = pneg %p128
        %p331 = pneg %p152
        %p332 = pneg %p149
        %p333 = pneg %p173
        %p334 = pneg %p170
        %p335 = pneg %p199
        %p336 = pneg %p196
        %s337 = sand.u32 %s186, 1
        %s338 = scalar_lea.sflag [#allocation6], %s337
        %s339 = sand.u32 %s186, 1
        %s340 = smul.addr %s339, 64
        %s341 = scalar_lea.vmem [#allocation12], %s340
        %s342 = smul.u32 4, %s26
        %s343 = smul.u32 4, %s26
        %v345 = vld [vmem:[%s299] sm:$0xff]
        %v346 = vld [vmem:[%s299 + $0x8] sm:$0xff]
        %v347 = vld [vmem:[%s299 + $0x10] sm:$0xff]
        %v348 = vld [vmem:[%s299 + $0x18] sm:$0xff]
        %v349 = vld [vmem:[%s299 + $0x20] sm:$0xff]
        %v350 = vld [vmem:[%s299 + $0x28] sm:$0xff]
        %v351 = vld [vmem:[%s299 + $0x30] sm:$0xff]
        %v352 = vld [vmem:[%s299 + $0x38] sm:$0xff]
        %v353 = vpack.c.bf16 %v346, %v345
        %v354 = vpack.c.bf16 %v348, %v347
        %v355 = vpack.c.bf16 %v350, %v349
        %v356 = vpack.c.bf16 %v352, %v351
        %v357 = vld [vmem:[#allocation10] sm:$0xf]
        %v358 = vld [vmem:[#allocation10 + $0x4] sm:$0xf]
        %v359 = vld [vmem:[#allocation10 + $0x8] sm:$0xf]
        %v360 = vld [vmem:[#allocation10 + $0xc] sm:$0xf]
        %v361 = vld [vmem:[%s4] sm:$0x1]
        %v363 = vlaneseq
        %v364 = vshrl.u32 %v363, 7
        %v365 = vsub.s32 0, %v364
        %v366 = vrot.slane %v361, %v365
        %v372 = vunpack.c.l.b16 %v357
        %v373 = vunpack.c.l.b16 %v358
        %v374 = vunpack.c.l.b16 %v359
        %v375 = vunpack.c.l.b16 %v360
        %v376 = vpack.c.b16 %v373, %v372
        %v377 = vpack.c.b16 %v375, %v374
        %vm380 = vcmask 261120
        %v382 = vsel %vm380, %v353, 0
        %v385 = vsel %vm380, %v354, 0
        %v388 = vsel %vm380, %v355, 0
        %v391 = vsel %vm380, %v356, 0
        %393 = vmatprep.subr.bf16.mxu0 0
        %394 = vmatpush1.bf16.msra.mxu0 %v376
        %395 = vmatprep.subr.bf16.mxu0 0
        %396 = vmatpush1.bf16.msra.mxu0 %v377
        %397 = vmatprep.subr.bf16.mxu0 0
        %398 = vmatpush1.bf16.msra.mxu0 0
        %399 = vmatprep.subr.bf16.mxu0 0
        %400 = vmatpush1.bf16.msra.mxu0 0
        %401 = vmatprep.subr.bf16.mxu0 0
        %402 = vmatpush1.bf16.msra.mxu0 0
        %403 = vmatprep.subr.bf16.mxu0 0
        %404 = vmatpush1.bf16.msra.mxu0 0
        %405 = vmatprep.subr.bf16.mxu0 0
        %406 = vmatpush1.bf16.msra.mxu0 0
        %407 = vmatprep.subr.bf16.mxu0 0
        %408 = vmatpush1.bf16.msra.mxu0 0
        %409 = vmatprep.subr.bf16.mxu0 0
        %410 = vmatpush1.bf16.msra.mxu0 0
        %411 = vmatprep.subr.bf16.mxu0 0
        %412 = vmatpush1.bf16.msra.mxu0 0
        %413 = vmatprep.subr.bf16.mxu0 0
        %414 = vmatpush1.bf16.msra.mxu0 0
        %415 = vmatprep.subr.bf16.mxu0 0
        %416 = vmatpush1.bf16.msra.mxu0 0
        %417 = vmatprep.subr.bf16.mxu0 0
        %418 = vmatpush1.bf16.msra.mxu0 0
        %419 = vmatprep.subr.bf16.mxu0 0
        %420 = vmatpush1.bf16.msra.mxu0 0
        %421 = vmatprep.subr.bf16.mxu0 0
        %422 = vmatpush1.bf16.msra.mxu0 0
        %423 = vmatprep.subr.bf16.mxu0 0
        %424 = vmatpush1.bf16.msra.mxu0 0
        %425 = vmatprep.mubr.bf16.mxu0 0
        %426 = vmatmul.mubr.bf16.gmra.mrb[0].mxu0 %v382
        %v427 = vpop.f32.mrb[0].mxu0
        %v428 = vadd.f32 %v366, %v427
        %v429 = vpop.f32.mrb[0].mxu0
        %v430 = vpop.f32.mrb[0].mxu0
        %v431 = vadd.f32 %v366, %v430
        %v432 = vpop.f32.mrb[0].mxu0
        %433 = vmatprep.mubr.bf16.mxu0 0
        %434 = vmatmul.mubr.bf16.gmra.mrb[0].mxu0 %v385
        %v435 = vpop.f32.mrb[0].mxu0
        %v436 = vadd.f32 %v366, %v435
        %v437 = vpop.f32.mrb[0].mxu0
        %v438 = vpop.f32.mrb[0].mxu0
        %v439 = vadd.f32 %v366, %v438
        %v440 = vpop.f32.mrb[0].mxu0
        %441 = vmatprep.mubr.bf16.mxu0 0
        %442 = vmatmul.mubr.bf16.gmra.mrb[0].mxu0 %v388
        %v443 = vpop.f32.mrb[0].mxu0
        %v444 = vadd.f32 %v366, %v443
        %v445 = vpop.f32.mrb[0].mxu0
        %v446 = vpop.f32.mrb[0].mxu0
        %v447 = vadd.f32 %v366, %v446
        %v448 = vpop.f32.mrb[0].mxu0
        %449 = vmatprep.mubr.bf16.mxu0 0
        %450 = vmatmul.mubr.bf16.gmra.mrb[0].mxu0 %v391
        %v451 = vpop.f32.mrb[0].mxu0
        %v452 = vadd.f32 %v366, %v451
        %v453 = vpop.f32.mrb[0].mxu0
        %v454 = vpop.f32.mrb[0].mxu0
        %v455 = vadd.f32 %v366, %v454
        %v456 = vpop.f32.mrb[0].mxu0
        %457 = vdwg.mxu0
        %v458 = vpack.c.bf16 %v431, %v428
        %v459 = vpack.c.bf16 %v439, %v436
        %v460 = vpack.c.bf16 %v447, %v444
        %v461 = vpack.c.bf16 %v455, %v452
        %vm462 = vcmask 785408
        %463 = vst.msk [vmem:[#allocation2] sm:$0xff] %vm462, %v458
        %464 = vst.msk [vmem:[#allocation2 + $0x8] sm:$0xff] %vm462, %v459
        %465 = vst.msk [vmem:[#allocation2 + $0x10] sm:$0xff] %vm462, %v460
        %466 = vst.msk [vmem:[#allocation2 + $0x18] sm:$0xff] %vm462, %v461
        %v467 = vld [vmem:[#allocation2] sm:$0xff]
        %v468 = vld [vmem:[#allocation2 + $0x8] sm:$0xff]
        %v469 = vld [vmem:[#allocation2 + $0x10] sm:$0xff]
        %v470 = vld [vmem:[#allocation2 + $0x18] sm:$0xff]
        %v471 = vld [vmem:[#allocation7] sm:$0xff]
        %v472 = vld [vmem:[#allocation7 + $0x8] sm:$0xff]
        %474 = vrot.lane.b32.xlu0 %v467, 96
        %v475 = vpop.permute.xlu0 %474
        %vm476 = vcmask 64512
        %v478 = vsel %vm476, %v467, 0
        %v481 = vsel %vm476, %v475, 0
        %483 = vmatprep.subr.bf16.mxu0 0
        %484 = vmatpush1.bf16.xpose.msra.mxu0 %v481
        %485 = vmatprep.subr.bf16.mxu0 0
        %486 = vmatpush1.bf16.xpose.msra.mxu0 0
        %487 = vmatprep.subr.bf16.mxu0 0
        %488 = vmatpush1.bf16.xpose.msra.mxu0 0
        %489 = vmatprep.subr.bf16.mxu0 0
        %490 = vmatpush1.bf16.xpose.msra.mxu0 0
        %491 = vmatprep.subr.bf16.mxu0 0
        %492 = vmatpush1.bf16.xpose.msra.mxu0 0
        %493 = vmatprep.subr.bf16.mxu0 0
        %494 = vmatpush1.bf16.xpose.msra.mxu0 0
        %495 = vmatprep.subr.bf16.mxu0 0
        %496 = vmatpush1.bf16.xpose.msra.mxu0 0
        %497 = vmatprep.subr.bf16.mxu0 0
        %498 = vmatpush1.bf16.xpose.msra.mxu0 0
        %499 = vmatprep.subr.bf16.mxu0 0
        %500 = vmatpush1.bf16.xpose.msra.mxu0 0
        %501 = vmatprep.subr.bf16.mxu0 0
        %502 = vmatpush1.bf16.xpose.msra.mxu0 0
        %503 = vmatprep.subr.bf16.mxu0 0
        %504 = vmatpush1.bf16.xpose.msra.mxu0 0
        %505 = vmatprep.subr.bf16.mxu0 0
        %506 = vmatpush1.bf16.xpose.msra.mxu0 0
        %507 = vmatprep.subr.bf16.mxu0 0
        %508 = vmatpush1.bf16.xpose.msra.mxu0 0
        %509 = vmatprep.subr.bf16.mxu0 0
        %510 = vmatpush1.bf16.xpose.msra.mxu0 0
        %511 = vmatprep.subr.bf16.mxu0 0
        %512 = vmatpush1.bf16.xpose.msra.mxu0 0
        %513 = vmatprep.subr.bf16.mxu0 0
        %514 = vmatpush1.bf16.xpose.msra.mxu0 0
        %515 = vmatprep.mubr.bf16.mxu0 0
        %516 = vmatmul.mubr.bf16.gmra.mrb[0].mxu0 %v478
        %v517 = vpop.f32.mrb[0].mxu0
        %v518 = vadd.f32 %v471, %v517
        %v519 = vpop.f32.mrb[0].mxu0
        %v520 = vpop.f32.mrb[0].mxu0
        %v521 = vadd.f32 %v472, %v520
        %v522 = vpop.f32.mrb[0].mxu0
        %523 = vdwg.mxu0
        %525 = vrot.lane.b32.xlu0 %v468, 96
        %v526 = vpop.permute.xlu0 %525
        %v528 = vsel %vm476, %v468, 0
        %v531 = vsel %vm476, %v526, 0
        %533 = vmatprep.subr.bf16.mxu0 0
        %534 = vmatpush1.bf16.xpose.msra.mxu0 %v531
        %535 = vmatprep.subr.bf16.mxu0 0
        %536 = vmatpush1.bf16.xpose.msra.mxu0 0
        %537 = vmatprep.subr.bf16.mxu0 0
        %538 = vmatpush1.bf16.xpose.msra.mxu0 0
        %539 = vmatprep.subr.bf16.mxu0 0
        %540 = vmatpush1.bf16.xpose.msra.mxu0 0
        %541 = vmatprep.subr.bf16.mxu0 0
        %542 = vmatpush1.bf16.xpose.msra.mxu0 0
        %543 = vmatprep.subr.bf16.mxu0 0
        %544 = vmatpush1.bf16.xpose.msra.mxu0 0
        %545 = vmatprep.subr.bf16.mxu0 0
        %546 = vmatpush1.bf16.xpose.msra.mxu0 0
        %547 = vmatprep.subr.bf16.mxu0 0
        %548 = vmatpush1.bf16.xpose.msra.mxu0 0
        %549 = vmatprep.subr.bf16.mxu0 0
        %550 = vmatpush1.bf16.xpose.msra.mxu0 0
        %551 = vmatprep.subr.bf16.mxu0 0
        %552 = vmatpush1.bf16.xpose.msra.mxu0 0
        %553 = vmatprep.subr.bf16.mxu0 0
        %554 = vmatpush1.bf16.xpose.msra.mxu0 0
        %555 = vmatprep.subr.bf16.mxu0 0
        %556 = vmatpush1.bf16.xpose.msra.mxu0 0
        %557 = vmatprep.subr.bf16.mxu0 0
        %558 = vmatpush1.bf16.xpose.msra.mxu0 0
        %559 = vmatprep.subr.bf16.mxu0 0
        %560 = vmatpush1.bf16.xpose.msra.mxu0 0
        %561 = vmatprep.subr.bf16.mxu0 0
        %562 = vmatpush1.bf16.xpose.msra.mxu0 0
        %563 = vmatprep.subr.bf16.mxu0 0
        %564 = vmatpush1.bf16.xpose.msra.mxu0 0
        %565 = vmatprep.mubr.bf16.mxu0 0
        %566 = vmatmul.mubr.bf16.gmra.mrb[0].mxu0 %v528
        %v567 = vpop.f32.mrb[0].mxu0
        %v568 = vadd.f32 %v471, %v567
        %v569 = vpop.f32.mrb[0].mxu0
        %v570 = vpop.f32.mrb[0].mxu0
        %v571 = vadd.f32 %v472, %v570
        %v572 = vpop.f32.mrb[0].mxu0
        %573 = vdwg.mxu0
        %575 = vrot.lane.b32.xlu0 %v469, 96
        %v576 = vpop.permute.xlu0 %575
        %v578 = vsel %vm476, %v469, 0
        %v581 = vsel %vm476, %v576, 0
        %583 = vmatprep.subr.bf16.mxu0 0
        %584 = vmatpush1.bf16.xpose.msra.mxu0 %v581
        %585 = vmatprep.subr.bf16.mxu0 0
        %586 = vmatpush1.bf16.xpose.msra.mxu0 0
        %587 = vmatprep.subr.bf16.mxu0 0
        %588 = vmatpush1.bf16.xpose.msra.mxu0 0
        %589 = vmatprep.subr.bf16.mxu0 0
        %590 = vmatpush1.bf16.xpose.msra.mxu0 0
        %591 = vmatprep.subr.bf16.mxu0 0
        %592 = vmatpush1.bf16.xpose.msra.mxu0 0
        %593 = vmatprep.subr.bf16.mxu0 0
        %594 = vmatpush1.bf16.xpose.msra.mxu0 0
        %595 = vmatprep.subr.bf16.mxu0 0
        %596 = vmatpush1.bf16.xpose.msra.mxu0 0
        %597 = vmatprep.subr.bf16.mxu0 0
        %598 = vmatpush1.bf16.xpose.msra.mxu0 0
        %599 = vmatprep.subr.bf16.mxu0 0
        %600 = vmatpush1.bf16.xpose.msra.mxu0 0
        %601 = vmatprep.subr.bf16.mxu0 0
        %602 = vmatpush1.bf16.xpose.msra.mxu0 0
        %603 = vmatprep.subr.bf16.mxu0 0
        %604 = vmatpush1.bf16.xpose.msra.mxu0 0
        %605 = vmatprep.subr.bf16.mxu0 0
        %606 = vmatpush1.bf16.xpose.msra.mxu0 0
        %607 = vmatprep.subr.bf16.mxu0 0
        %608 = vmatpush1.bf16.xpose.msra.mxu0 0
        %609 = vmatprep.subr.bf16.mxu0 0
        %610 = vmatpush1.bf16.xpose.msra.mxu0 0
        %611 = vmatprep.subr.bf16.mxu0 0
        %612 = vmatpush1.bf16.xpose.msra.mxu0 0
        %613 = vmatprep.subr.bf16.mxu0 0
        %614 = vmatpush1.bf16.xpose.msra.mxu0 0
        %615 = vmatprep.mubr.bf16.mxu0 0
        %616 = vmatmul.mubr.bf16.gmra.mrb[0].mxu0 %v578
        %v617 = vpop.f32.mrb[0].mxu0
        %v618 = vadd.f32 %v471, %v617
        %v619 = vpop.f32.mrb[0].mxu0
        %v620 = vpop.f32.mrb[0].mxu0
        %v621 = vadd.f32 %v472, %v620
        %v622 = vpop.f32.mrb[0].mxu0
        %623 = vdwg.mxu0
        %625 = vrot.lane.b32.xlu0 %v470, 96
        %v626 = vpop.permute.xlu0 %625
        %v628 = vsel %vm476, %v470, 0
        %v631 = vsel %vm476, %v626, 0
        %633 = vmatprep.subr.bf16.mxu0 0
        %634 = vmatpush1.bf16.xpose.msra.mxu0 %v631
        %635 = vmatprep.subr.bf16.mxu0 0
        %636 = vmatpush1.bf16.xpose.msra.mxu0 0
        %637 = vmatprep.subr.bf16.mxu0 0
        %638 = vmatpush1.bf16.xpose.msra.mxu0 0
        %639 = vmatprep.subr.bf16.mxu0 0
        %640 = vmatpush1.bf16.xpose.msra.mxu0 0
        %641 = vmatprep.subr.bf16.mxu0 0
        %642 = vmatpush1.bf16.xpose.msra.mxu0 0
        %643 = vmatprep.subr.bf16.mxu0 0
        %644 = vmatpush1.bf16.xpose.msra.mxu0 0
        %645 = vmatprep.subr.bf16.mxu0 0
        %646 = vmatpush1.bf16.xpose.msra.mxu0 0
        %647 = vmatprep.subr.bf16.mxu0 0
        %648 = vmatpush1.bf16.xpose.msra.mxu0 0
        %649 = vmatprep.subr.bf16.mxu0 0
        %650 = vmatpush1.bf16.xpose.msra.mxu0 0
        %651 = vmatprep.subr.bf16.mxu0 0
        %652 = vmatpush1.bf16.xpose.msra.mxu0 0
        %653 = vmatprep.subr.bf16.mxu0 0
        %654 = vmatpush1.bf16.xpose.msra.mxu0 0
        %655 = vmatprep.subr.bf16.mxu0 0
        %656 = vmatpush1.bf16.xpose.msra.mxu0 0
        %657 = vmatprep.subr.bf16.mxu0 0
        %658 = vmatpush1.bf16.xpose.msra.mxu0 0
        %659 = vmatprep.subr.bf16.mxu0 0
        %660 = vmatpush1.bf16.xpose.msra.mxu0 0
        %661 = vmatprep.subr.bf16.mxu0 0
        %662 = vmatpush1.bf16.xpose.msra.mxu0 0
        %663 = vmatprep.subr.bf16.mxu0 0
        %664 = vmatpush1.bf16.xpose.msra.mxu0 0
        %665 = vmatprep.mubr.bf16.mxu0 0
        %666 = vmatmul.mubr.bf16.gmra.mrb[0].mxu0 %v628
        %v667 = vpop.f32.mrb[0].mxu0
        %v668 = vadd.f32 %v471, %v667
        %v669 = vpop.f32.mrb[0].mxu0
        %v670 = vpop.f32.mrb[0].mxu0
        %v671 = vadd.f32 %v472, %v670
        %v672 = vpop.f32.mrb[0].mxu0
        %673 = vdwg.mxu0
        %v674 = vld [vmem:[#allocation9] sm:$0xff]
        %v675 = vld [vmem:[#allocation9 + $0x8] sm:$0xff]
        %v676 = vld [vmem:[#allocation9 + $0x10] sm:$0xff]
        %v677 = vld [vmem:[#allocation9 + $0x18] sm:$0xff]
        %v678 = vld [vmem:[#allocation9 + $0x20] sm:$0xff]
        %v679 = vld [vmem:[#allocation9 + $0x28] sm:$0xff]
        %v680 = vld [vmem:[#allocation9 + $0x30] sm:$0xff]
        %v681 = vld [vmem:[#allocation9 + $0x38] sm:$0xff]
        %v682 = vadd.f32 %v518, %v674
        %v683 = vadd.f32 %v521, %v675
        %v684 = vadd.f32 %v568, %v676
        %v685 = vadd.f32 %v571, %v677
        %v686 = vadd.f32 %v618, %v678
        %v687 = vadd.f32 %v621, %v679
        %v688 = vadd.f32 %v668, %v680
        %v689 = vadd.f32 %v671, %v681
        %vm690 = vcmask 130048
        %v691 = vsel %vm690, %v682, -inf
        %692 = vmax.xlane.f32.xlu0 %v691
        %v693 = vpop.xlane.xlu0 %692
        %v694 = vsel %vm690, %v683, -inf
        %695 = vmax.xlane.f32.xlu0 %v694
        %v696 = vpop.xlane.xlu0 %695
        %v697 = vsel %vm690, %v684, -inf
        %698 = vmax.xlane.f32.xlu0 %v697
        %v699 = vpop.xlane.xlu0 %698
        %v700 = vsel %vm690, %v685, -inf
        %701 = vmax.xlane.f32.xlu0 %v700
        %v702 = vpop.xlane.xlu0 %701
        %v703 = vsel %vm690, %v686, -inf
        %704 = vmax.xlane.f32.xlu0 %v703
        %v705 = vpop.xlane.xlu0 %704
        %v706 = vsel %vm690, %v687, -inf
        %707 = vmax.xlane.f32.xlu0 %v706
        %v708 = vpop.xlane.xlu0 %707
        %v709 = vsel %vm690, %v688, -inf
        %710 = vmax.xlane.f32.xlu0 %v709
        %v711 = vpop.xlane.xlu0 %710
        %v712 = vsel %vm690, %v689, -inf
        %713 = vmax.xlane.f32.xlu0 %v712
        %v714 = vpop.xlane.xlu0 %713
        %v715 = vsub.f32 %v682, %v693
        %v716 = vsub.f32 %v683, %v696
        %v717 = vsub.f32 %v684, %v699
        %v718 = vsub.f32 %v685, %v702
        %v719 = vsub.f32 %v686, %v705
        %v720 = vsub.f32 %v687, %v708
        %v721 = vsub.f32 %v688, %v711
        %v722 = vsub.f32 %v689, %v714
        %v723 = vmul.f32 %v715, 1.442695
        %v724 = vpow.pop %v723
        %v725 = vmul.f32 %v716, 1.442695
        %v726 = vpow.pop %v725
        %v727 = vmul.f32 %v717, 1.442695
        %v728 = vpow.pop %v727
        %v729 = vmul.f32 %v718, 1.442695
        %v730 = vpow.pop %v729
        %v731 = vmul.f32 %v719, 1.442695
        %v732 = vpow.pop %v731
        %v733 = vmul.f32 %v720, 1.442695
        %v734 = vpow.pop %v733
        %v735 = vmul.f32 %v721, 1.442695
        %v736 = vpow.pop %v735
        %v737 = vmul.f32 %v722, 1.442695
        %v738 = vpow.pop %v737
        %v739 = vsel %vm690, %v724, 0.0
        %740 = vadd.xlane.f32.xlu0 %v739
        %v741 = vpop.xlane.xlu0 %740
        %v742 = vsel %vm690, %v726, 0.0
        %743 = vadd.xlane.f32.xlu0 %v742
        %v744 = vpop.xlane.xlu0 %743
        %v745 = vsel %vm690, %v728, 0.0
        %746 = vadd.xlane.f32.xlu0 %v745
        %v747 = vpop.xlane.xlu0 %746
        %v748 = vsel %vm690, %v730, 0.0
        %749 = vadd.xlane.f32.xlu0 %v748
        %v750 = vpop.xlane.xlu0 %749
        %v751 = vsel %vm690, %v732, 0.0
        %752 = vadd.xlane.f32.xlu0 %v751
        %v753 = vpop.xlane.xlu0 %752
        %v754 = vsel %vm690, %v734, 0.0
        %755 = vadd.xlane.f32.xlu0 %v754
        %v756 = vpop.xlane.xlu0 %755
        %v757 = vsel %vm690, %v736, 0.0
        %758 = vadd.xlane.f32.xlu0 %v757
        %v759 = vpop.xlane.xlu0 %758
        %v760 = vsel %vm690, %v738, 0.0
        %761 = vadd.xlane.f32.xlu0 %v760
        %v762 = vpop.xlane.xlu0 %761
        %v763 = vrcp.pop %v741
        %v764 = vrcp.pop %v744
        %v765 = vrcp.pop %v747
        %v766 = vrcp.pop %v750
        %v767 = vrcp.pop %v753
        %v768 = vrcp.pop %v756
        %v769 = vrcp.pop %v759
        %v770 = vrcp.pop %v762
        %v771 = vmul.f32 %v724, %v763
        %v772 = vmul.f32 %v726, %v764
        %v773 = vmul.f32 %v728, %v765
        %v774 = vmul.f32 %v730, %v766
        %v775 = vmul.f32 %v732, %v767
        %v776 = vmul.f32 %v734, %v768
        %v777 = vmul.f32 %v736, %v769
        %v778 = vmul.f32 %v738, %v770
        %v779 = vpack.c.bf16 %v772, %v771
        %v780 = vpack.c.bf16 %v774, %v773
        %v781 = vpack.c.bf16 %v776, %v775
        %v782 = vpack.c.bf16 %v778, %v777
        %783 = vrot.lane.b32.xlu0 %v467, 64
        %v784 = vpop.permute.xlu0 %783
        %v787 = vsel %vm690, %v779, 0
        %789 = vmatprep.subr.bf16.mxu0 0
        %790 = vmatpush1.bf16.msra.mxu0 %v784
        %791 = vmatprep.subr.bf16.mxu0 0
        %792 = vmatpush1.bf16.msra.mxu0 0
        %793 = vmatprep.subr.bf16.mxu0 0
        %794 = vmatpush1.bf16.msra.mxu0 0
        %795 = vmatprep.subr.bf16.mxu0 0
        %796 = vmatpush1.bf16.msra.mxu0 0
        %797 = vmatprep.subr.bf16.mxu0 0
        %798 = vmatpush1.bf16.msra.mxu0 0
        %799 = vmatprep.subr.bf16.mxu0 0
        %800 = vmatpush1.bf16.msra.mxu0 0
        %801 = vmatprep.subr.bf16.mxu0 0
        %802 = vmatpush1.bf16.msra.mxu0 0
        %803 = vmatprep.subr.bf16.mxu0 0
        %804 = vmatpush1.bf16.msra.mxu0 0
        %805 = vmatprep.subr.bf16.mxu0 0
        %806 = vmatpush1.bf16.msra.mxu0 0
        %807 = vmatprep.subr.bf16.mxu0 0
        %808 = vmatpush1.bf16.msra.mxu0 0
        %809 = vmatprep.subr.bf16.mxu0 0
        %810 = vmatpush1.bf16.msra.mxu0 0
        %811 = vmatprep.subr.bf16.mxu0 0
        %812 = vmatpush1.bf16.msra.mxu0 0
        %813 = vmatprep.subr.bf16.mxu0 0
        %814 = vmatpush1.bf16.msra.mxu0 0
        %815 = vmatprep.subr.bf16.mxu0 0
        %816 = vmatpush1.bf16.msra.mxu0 0
        %817 = vmatprep.subr.bf16.mxu0 0
        %818 = vmatpush1.bf16.msra.mxu0 0
        %819 = vmatprep.subr.bf16.mxu0 0
        %820 = vmatpush1.bf16.msra.mxu0 0
        %821 = vmatprep.mubr.bf16.mxu0 0
        %822 = vmatmul.mubr.bf16.gmra.mrb[0].mxu0 %v787
        %v823 = vpop.f32.mrb[0].mxu0
        %v824 = vadd.f32 0.0, %v823
        %v825 = vpop.f32.mrb[0].mxu0
        %v826 = vpop.f32.mrb[0].mxu0
        %v827 = vadd.f32 0.0, %v826
        %v828 = vpop.f32.mrb[0].mxu0
        %829 = vdwg.mxu0
        %830 = vrot.lane.b32.xlu0 %v468, 64
        %v831 = vpop.permute.xlu0 %830
        %v834 = vsel %vm690, %v780, 0
        %836 = vmatprep.subr.bf16.mxu0 0
        %837 = vmatpush1.bf16.msra.mxu0 %v831
        %838 = vmatprep.subr.bf16.mxu0 0
        %839 = vmatpush1.bf16.msra.mxu0 0
        %840 = vmatprep.subr.bf16.mxu0 0
        %841 = vmatpush1.bf16.msra.mxu0 0
        %842 = vmatprep.subr.bf16.mxu0 0
        %843 = vmatpush1.bf16.msra.mxu0 0
        %844 = vmatprep.subr.bf16.mxu0 0
        %845 = vmatpush1.bf16.msra.mxu0 0
        %846 = vmatprep.subr.bf16.mxu0 0
        %847 = vmatpush1.bf16.msra.mxu0 0
        %848 = vmatprep.subr.bf16.mxu0 0
        %849 = vmatpush1.bf16.msra.mxu0 0
        %850 = vmatprep.subr.bf16.mxu0 0
        %851 = vmatpush1.bf16.msra.mxu0 0
        %852 = vmatprep.subr.bf16.mxu0 0
        %853 = vmatpush1.bf16.msra.mxu0 0
        %854 = vmatprep.subr.bf16.mxu0 0
        %855 = vmatpush1.bf16.msra.mxu0 0
        %856 = vmatprep.subr.bf16.mxu0 0
        %857 = vmatpush1.bf16.msra.mxu0 0
        %858 = vmatprep.subr.bf16.mxu0 0
        %859 = vmatpush1.bf16.msra.mxu0 0
        %860 = vmatprep.subr.bf16.mxu0 0
        %861 = vmatpush1.bf16.msra.mxu0 0
        %862 = vmatprep.subr.bf16.mxu0 0
        %863 = vmatpush1.bf16.msra.mxu0 0
        %864 = vmatprep.subr.bf16.mxu0 0
        %865 = vmatpush1.bf16.msra.mxu0 0
        %866 = vmatprep.subr.bf16.mxu0 0
        %867 = vmatpush1.bf16.msra.mxu0 0
        %868 = vmatprep.mubr.bf16.mxu0 0
        %869 = vmatmul.mubr.bf16.gmra.mrb[0].mxu0 %v834
        %v870 = vpop.f32.mrb[0].mxu0
        %v871 = vadd.f32 0.0, %v870
        %v872 = vpop.f32.mrb[0].mxu0
        %v873 = vpop.f32.mrb[0].mxu0
        %v874 = vadd.f32 0.0, %v873
        %v875 = vpop.f32.mrb[0].mxu0
        %876 = vdwg.mxu0
        %877 = vrot.lane.b32.xlu0 %v469, 64
        %v878 = vpop.permute.xlu0 %877
        %v881 = vsel %vm690, %v781, 0
        %883 = vmatprep.subr.bf16.mxu0 0
        %884 = vmatpush1.bf16.msra.mxu0 %v878
        %885 = vmatprep.subr.bf16.mxu0 0
        %886 = vmatpush1.bf16.msra.mxu0 0
        %887 = vmatprep.subr.bf16.mxu0 0
        %888 = vmatpush1.bf16.msra.mxu0 0
        %889 = vmatprep.subr.bf16.mxu0 0
        %890 = vmatpush1.bf16.msra.mxu0 0
        %891 = vmatprep.subr.bf16.mxu0 0
        %892 = vmatpush1.bf16.msra.mxu0 0
        %893 = vmatprep.subr.bf16.mxu0 0
        %894 = vmatpush1.bf16.msra.mxu0 0
        %895 = vmatprep.subr.bf16.mxu0 0
        %896 = vmatpush1.bf16.msra.mxu0 0
        %897 = vmatprep.subr.bf16.mxu0 0
        %898 = vmatpush1.bf16.msra.mxu0 0
        %899 = vmatprep.subr.bf16.mxu0 0
        %900 = vmatpush1.bf16.msra.mxu0 0
        %901 = vmatprep.subr.bf16.mxu0 0
        %902 = vmatpush1.bf16.msra.mxu0 0
        %903 = vmatprep.subr.bf16.mxu0 0
        %904 = vmatpush1.bf16.msra.mxu0 0
        %905 = vmatprep.subr.bf16.mxu0 0
        %906 = vmatpush1.bf16.msra.mxu0 0
        %907 = vmatprep.subr.bf16.mxu0 0
        %908 = vmatpush1.bf16.msra.mxu0 0
        %909 = vmatprep.subr.bf16.mxu0 0
        %910 = vmatpush1.bf16.msra.mxu0 0
        %911 = vmatprep.subr.bf16.mxu0 0
        %912 = vmatpush1.bf16.msra.mxu0 0
        %913 = vmatprep.subr.bf16.mxu0 0
        %914 = vmatpush1.bf16.msra.mxu0 0
        %915 = vmatprep.mubr.bf16.mxu0 0
        %916 = vmatmul.mubr.bf16.gmra.mrb[0].mxu0 %v881
        %v917 = vpop.f32.mrb[0].mxu0
        %v918 = vadd.f32 0.0, %v917
        %v919 = vpop.f32.mrb[0].mxu0
        %v920 = vpop.f32.mrb[0].mxu0
        %v921 = vadd.f32 0.0, %v920
        %v922 = vpop.f32.mrb[0].mxu0
        %923 = vdwg.mxu0
        %924 = vrot.lane.b32.xlu0 %v470, 64
        %v925 = vpop.permute.xlu0 %924
        %v928 = vsel %vm690, %v782, 0
        %930 = vmatprep.subr.bf16.mxu0 0
        %931 = vmatpush1.bf16.msra.mxu0 %v925
        %932 = vmatprep.subr.bf16.mxu0 0
        %933 = vmatpush1.bf16.msra.mxu0 0
        %934 = vmatprep.subr.bf16.mxu0 0
        %935 = vmatpush1.bf16.msra.mxu0 0
        %936 = vmatprep.subr.bf16.mxu0 0
        %937 = vmatpush1.bf16.msra.mxu0 0
        %938 = vmatprep.subr.bf16.mxu0 0
        %939 = vmatpush1.bf16.msra.mxu0 0
        %940 = vmatprep.subr.bf16.mxu0 0
        %941 = vmatpush1.bf16.msra.mxu0 0
        %942 = vmatprep.subr.bf16.mxu0 0
        %943 = vmatpush1.bf16.msra.mxu0 0
        %944 = vmatprep.subr.bf16.mxu0 0
        %945 = vmatpush1.bf16.msra.mxu0 0
        %946 = vmatprep.subr.bf16.mxu0 0
        %947 = vmatpush1.bf16.msra.mxu0 0
        %948 = vmatprep.subr.bf16.mxu0 0
        %949 = vmatpush1.bf16.msra.mxu0 0
        %950 = vmatprep.subr.bf16.mxu0 0
        %951 = vmatpush1.bf16.msra.mxu0 0
        %952 = vmatprep.subr.bf16.mxu0 0
        %953 = vmatpush1.bf16.msra.mxu0 0
        %954 = vmatprep.subr.bf16.mxu0 0
        %955 = vmatpush1.bf16.msra.mxu0 0
        %956 = vmatprep.subr.bf16.mxu0 0
        %957 = vmatpush1.bf16.msra.mxu0 0
        %958 = vmatprep.subr.bf16.mxu0 0
        %959 = vmatpush1.bf16.msra.mxu0 0
        %960 = vmatprep.subr.bf16.mxu0 0
        %961 = vmatpush1.bf16.msra.mxu0 0
        %962 = vmatprep.mubr.bf16.mxu0 0
        %963 = vmatmul.mubr.bf16.gmra.mrb[0].mxu0 %v928
        %v964 = vpop.f32.mrb[0].mxu0
        %v965 = vadd.f32 0.0, %v964
        %v966 = vpop.f32.mrb[0].mxu0
        %v967 = vpop.f32.mrb[0].mxu0
        %v968 = vadd.f32 0.0, %v967
        %v969 = vpop.f32.mrb[0].mxu0
        %970 = vdwg.mxu0
        %v971 = vpack.c.bf16 %v827, %v824
        %v972 = vpack.c.bf16 %v874, %v871
        %v973 = vpack.c.bf16 %v921, %v918
        %v974 = vpack.c.bf16 %v968, %v965
        %975 = vst.msk [vmem:[#allocation3] sm:$0xff] %vm476, %v971
        %976 = vst.msk [vmem:[#allocation3 + $0x8] sm:$0xff] %vm476, %v972
        %977 = vst.msk [vmem:[#allocation3 + $0x10] sm:$0xff] %vm476, %v973
        %978 = vst.msk [vmem:[#allocation3 + $0x18] sm:$0xff] %vm476, %v974
        %v979 = vld [vmem:[#allocation2] sm:$0xff]
        %v980 = vld [vmem:[#allocation2 + $0x8] sm:$0xff]
        %v981 = vld [vmem:[#allocation2 + $0x10] sm:$0xff]
        %v982 = vld [vmem:[#allocation2 + $0x18] sm:$0xff]
        %s983 = scalar_lea.vmem [#allocation7], 16
        %v984 = vld [vmem:[%s983] sm:$0xff]
        %v985 = vld [vmem:[%s983 + $0x8] sm:$0xff]
        %987 = vrot.lane.b32.xlu0 %v979, 120
        %v988 = vpop.permute.xlu0 %987
        %989 = vrot.lane.b32.xlu0 %v979, 88
        %v990 = vpop.permute.xlu0 %989
        %v992 = vsel %vm476, %v988, 0
        %v995 = vsel %vm476, %v990, 0
        %997 = vmatprep.subr.bf16.mxu0 0
        %998 = vmatpush1.bf16.xpose.msra.mxu0 %v995
        %999 = vmatprep.subr.bf16.mxu0 0
        %1000 = vmatpush1.bf16.xpose.msra.mxu0 0
        %1001 = vmatprep.subr.bf16.mxu0 0
        %1002 = vmatpush1.bf16.xpose.msra.mxu0 0
        %1003 = vmatprep.subr.bf16.mxu0 0
        %1004 = vmatpush1.bf16.xpose.msra.mxu0 0
        %1005 = vmatprep.subr.bf16.mxu0 0
        %1006 = vmatpush1.bf16.xpose.msra.mxu0 0
        %1007 = vmatprep.subr.bf16.mxu0 0
        %1008 = vmatpush1.bf16.xpose.msra.mxu0 0
        %1009 = vmatprep.subr.bf16.mxu0 0
        %1010 = vmatpush1.bf16.xpose.msra.mxu0 0
        %1011 = vmatprep.subr.bf16.mxu0 0
        %1012 = vmatpush1.bf16.xpose.msra.mxu0 0
        %1013 = vmatprep.subr.bf16.mxu0 0
        %1014 = vmatpush1.bf16.xpose.msra.mxu0 0
        %1015 = vmatprep.subr.bf16.mxu0 0
        %1016 = vmatpush1.bf16.xpose.msra.mxu0 0
        %1017 = vmatprep.subr.bf16.mxu0 0
        %1018 = vmatpush1.bf16.xpose.msra.mxu0 0
        %1019 = vmatprep.subr.bf16.mxu0 0
        %1020 = vmatpush1.bf16.xpose.msra.mxu0 0
        %1021 = vmatprep.subr.bf16.mxu0 0
        %1022 = vmatpush1.bf16.xpose.msra.mxu0 0
        %1023 = vmatprep.subr.bf16.mxu0 0
        %1024 = vmatpush1.bf16.xpose.msra.mxu0 0
        %1025 = vmatprep.subr.bf16.mxu0 0
        %1026 = vmatpush1.bf16.xpose.msra.mxu0 0
        %1027 = vmatprep.subr.bf16.mxu0 0
        %1028 = vmatpush1.bf16.xpose.msra.mxu0 0
        %1029 = vmatprep.mubr.bf16.mxu0 0
        %1030 = vmatmul.mubr.bf16.gmra.mrb[0].mxu0 %v992
        %v1031 = vpop.f32.mrb[0].mxu0
        %v1032 = vadd.f32 %v984, %v1031
        %v1033 = vpop.f32.mrb[0].mxu0
        %v1034 = vpop.f32.mrb[0].mxu0
        %v1035 = vadd.f32 %v985, %v1034
        %v1036 = vpop.f32.mrb[0].mxu0
        %1037 = vdwg.mxu0
        %1039 = vrot.lane.b32.xlu0 %v980, 120
        %v1040 = vpop.permute.xlu0 %1039
        %1041 = vrot.lane.b32.xlu0 %v980, 88
        %v1042 = vpop.permute.xlu0 %1041
        %v1044 = vsel %vm476, %v1040, 0
        %v1047 = vsel %vm476, %v1042, 0
        %1049 = vmatprep.subr.bf16.mxu0 0
        %1050 = vmatpush1.bf16.xpose.msra.mxu0 %v1047
        %1051 = vmatprep.subr.bf16.mxu0 0
        %1052 = vmatpush1.bf16.xpose.msra.mxu0 0
        %1053 = vmatprep.subr.bf16.mxu0 0
        %1054 = vmatpush1.bf16.xpose.msra.mxu0 0
        %1055 = vmatprep.subr.bf16.mxu0 0
        %1056 = vmatpush1.bf16.xpose.msra.mxu0 0
        %1057 = vmatprep.subr.bf16.mxu0 0
        %1058 = vmatpush1.bf16.xpose.msra.mxu0 0
        %1059 = vmatprep.subr.bf16.mxu0 0
        %1060 = vmatpush1.bf16.xpose.msra.mxu0 0
        %1061 = vmatprep.subr.bf16.mxu0 0
        %1062 = vmatpush1.bf16.xpose.msra.mxu0 0
        %1063 = vmatprep.subr.bf16.mxu0 0
        %1064 = vmatpush1.bf16.xpose.msra.mxu0 0
        %1065 = vmatprep.subr.bf16.mxu0 0
        %1066 = vmatpush1.bf16.xpose.msra.mxu0 0
        %1067 = vmatprep.subr.bf16.mxu0 0
        %1068 = vmatpush1.bf16.xpose.msra.mxu0 0
        %1069 = vmatprep.subr.bf16.mxu0 0
        %1070 = vmatpush1.bf16.xpose.msra.mxu0 0
        %1071 = vmatprep.subr.bf16.mxu0 0
        %1072 = vmatpush1.bf16.xpose.msra.mxu0 0
        %1073 = vmatprep.subr.bf16.mxu0 0
        %1074 = vmatpush1.bf16.xpose.msra.mxu0 0
        %1075 = vmatprep.subr.bf16.mxu0 0
        %1076 = vmatpush1.bf16.xpose.msra.mxu0 0
        %1077 = vmatprep.subr.bf16.mxu0 0
        %1078 = vmatpush1.bf16.xpose.msra.mxu0 0
        %1079 = vmatprep.subr.bf16.mxu0 0
        %1080 = vmatpush1.bf16.xpose.msra.mxu0 0
        %1081 = vmatprep.mubr.bf16.mxu0 0
        %1082 = vmatmul.mubr.bf16.gmra.mrb[0].mxu0 %v1044
        %v1083 = vpop.f32.mrb[0].mxu0
        %v1084 = vadd.f32 %v984, %v1083
        %v1085 = vpop.f32.mrb[0].mxu0
        %v1086 = vpop.f32.mrb[0].mxu0
        %v1087 = vadd.f32 %v985, %v1086
        %v1088 = vpop.f32.mrb[0].mxu0
        %1089 = vdwg.mxu0
        %1091 = vrot.lane.b32.xlu0 %v981, 120
        %v1092 = vpop.permute.xlu0 %1091
        %1093 = vrot.lane.b32.xlu0 %v981, 88
        %v1094 = vpop.permute.xlu0 %1093
        %v1096 = vsel %vm476, %v1092, 0
        %v1099 = vsel %vm476, %v1094, 0
        %1101 = vmatprep.subr.bf16.mxu0 0
        %1102 = vmatpush1.bf16.xpose.msra.mxu0 %v1099
        %1103 = vmatprep.subr.bf16.mxu0 0
        %1104 = vmatpush1.bf16.xpose.msra.mxu0 0
        %1105 = vmatprep.subr.bf16.mxu0 0
        %1106 = vmatpush1.bf16.xpose.msra.mxu0 0
        %1107 = vmatprep.subr.bf16.mxu0 0
        %1108 = vmatpush1.bf16.xpose.msra.mxu0 0
        %1109 = vmatprep.subr.bf16.mxu0 0
        %1110 = vmatpush1.bf16.xpose.msra.mxu0 0
        %1111 = vmatprep.subr.bf16.mxu0 0
        %1112 = vmatpush1.bf16.xpose.msra.mxu0 0
        %1113 = vmatprep.subr.bf16.mxu0 0
        %1114 = vmatpush1.bf16.xpose.msra.mxu0 0
        %1115 = vmatprep.subr.bf16.mxu0 0
        %1116 = vmatpush1.bf16.xpose.msra.mxu0 0
        %1117 = vmatprep.subr.bf16.mxu0 0
        %1118 = vmatpush1.bf16.xpose.msra.mxu0 0
        %1119 = vmatprep.subr.bf16.mxu0 0
        %1120 = vmatpush1.bf16.xpose.msra.mxu0 0
        %1121 = vmatprep.subr.bf16.mxu0 0
        %1122 = vmatpush1.bf16.xpose.msra.mxu0 0
        %1123 = vmatprep.subr.bf16.mxu0 0
        %1124 = vmatpush1.bf16.xpose.msra.mxu0 0
        %1125 = vmatprep.subr.bf16.mxu0 0
        %1126 = vmatpush1.bf16.xpose.msra.mxu0 0
        %1127 = vmatprep.subr.bf16.mxu0 0
        %1128 = vmatpush1.bf16.xpose.msra.mxu0 0
        %1129 = vmatprep.subr.bf16.mxu0 0
        %1130 = vmatpush1.bf16.xpose.msra.mxu0 0
        %1131 = vmatprep.subr.bf16.mxu0 0
        %1132 = vmatpush1.bf16.xpose.msra.mxu0 0
        %1133 = vmatprep.mubr.bf16.mxu0 0
        %1134 = vmatmul.mubr.bf16.gmra.mrb[0].mxu0 %v1096
        %v1135 = vpop.f32.mrb[0].mxu0
        %v1136 = vadd.f32 %v984, %v1135
        %v1137 = vpop.f32.mrb[0].mxu0
        %v1138 = vpop.f32.mrb[0].mxu0
        %v1139 = vadd.f32 %v985, %v1138
        %v1140 = vpop.f32.mrb[0].mxu0
        %1141 = vdwg.mxu0
        %1143 = vrot.lane.b32.xlu0 %v982, 120
        %v1144 = vpop.permute.xlu0 %1143
        %1145 = vrot.lane.b32.xlu0 %v982, 88
        %v1146 = vpop.permute.xlu0 %1145
        %v1148 = vsel %vm476, %v1144, 0
        %v1151 = vsel %vm476, %v1146, 0
        %1153 = vmatprep.subr.bf16.mxu0 0
        %1154 = vmatpush1.bf16.xpose.msra.mxu0 %v1151
        %1155 = vmatprep.subr.bf16.mxu0 0
        %1156 = vmatpush1.bf16.xpose.msra.mxu0 0
        %1157 = vmatprep.subr.bf16.mxu0 0
        %1158 = vmatpush1.bf16.xpose.msra.mxu0 0
        %1159 = vmatprep.subr.bf16.mxu0 0
        %1160 = vmatpush1.bf16.xpose.msra.mxu0 0
        %1161 = vmatprep.subr.bf16.mxu0 0
        %1162 = vmatpush1.bf16.xpose.msra.mxu0 0
        %1163 = vmatprep.subr.bf16.mxu0 0
        %1164 = vmatpush1.bf16.xpose.msra.mxu0 0
        %1165 = vmatprep.subr.bf16.mxu0 0
        %1166 = vmatpush1.bf16.xpose.msra.mxu0 0
        %1167 = vmatprep.subr.bf16.mxu0 0
        %1168 = vmatpush1.bf16.xpose.msra.mxu0 0
        %1169 = vmatprep.subr.bf16.mxu0 0
        %1170 = vmatpush1.bf16.xpose.msra.mxu0 0
        %1171 = vmatprep.subr.bf16.mxu0 0
        %1172 = vmatpush1.bf16.xpose.msra.mxu0 0
        %1173 = vmatprep.subr.bf16.mxu0 0
        %1174 = vmatpush1.bf16.xpose.msra.mxu0 0
        %1175 = vmatprep.subr.bf16.mxu0 0
        %1176 = vmatpush1.bf16.xpose.msra.mxu0 0
        %1177 = vmatprep.subr.bf16.mxu0 0
        %1178 = vmatpush1.bf16.xpose.msra.mxu0 0
        %1179 = vmatprep.subr.bf16.mxu0 0
        %1180 = vmatpush1.bf16.xpose.msra.mxu0 0
        %1181 = vmatprep.subr.bf16.mxu0 0
        %1182 = vmatpush1.bf16.xpose.msra.mxu0 0
        %1183 = vmatprep.subr.bf16.mxu0 0
        %1184 = vmatpush1.bf16.xpose.msra.mxu0 0
        %1185 = vmatprep.mubr.bf16.mxu0 0
        %1186 = vmatmul.mubr.bf16.gmra.mrb[0].mxu0 %v1148
        %v1187 = vpop.f32.mrb[0].mxu0
        %v1188 = vadd.f32 %v984, %v1187
        %v1189 = vpop.f32.mrb[0].mxu0
        %v1190 = vpop.f32.mrb[0].mxu0
        %v1191 = vadd.f32 %v985, %v1190
        %v1192 = vpop.f32.mrb[0].mxu0
        %1193 = vdwg.mxu0
        %v1194 = vld [vmem:[#allocation9] sm:$0xff]
        %v1195 = vld [vmem:[#allocation9 + $0x8] sm:$0xff]
        %v1196 = vld [vmem:[#allocation9 + $0x10] sm:$0xff]
        %v1197 = vld [vmem:[#allocation9 + $0x18] sm:$0xff]
        %v1198 = vld [vmem:[#allocation9 + $0x20] sm:$0xff]
        %v1199 = vld [vmem:[#allocation9 + $0x28] sm:$0xff]
        %v1200 = vld [vmem:[#allocation9 + $0x30] sm:$0xff]
        %v1201 = vld [vmem:[#allocation9 + $0x38] sm:$0xff]
        %v1202 = vadd.f32 %v1032, %v1194
        %v1203 = vadd.f32 %v1035, %v1195
        %v1204 = vadd.f32 %v1084, %v1196
        %v1205 = vadd.f32 %v1087, %v1197
        %v1206 = vadd.f32 %v1136, %v1198
        %v1207 = vadd.f32 %v1139, %v1199
        %v1208 = vadd.f32 %v1188, %v1200
        %v1209 = vadd.f32 %v1191, %v1201
        %v1210 = vsel %vm690, %v1202, -inf
        %1211 = vmax.xlane.f32.xlu0 %v1210
        %v1212 = vpop.xlane.xlu0 %1211
        %v1213 = vsel %vm690, %v1203, -inf
        %1214 = vmax.xlane.f32.xlu0 %v1213
        %v1215 = vpop.xlane.xlu0 %1214
        %v1216 = vsel %vm690, %v1204, -inf
        %1217 = vmax.xlane.f32.xlu0 %v1216
        %v1218 = vpop.xlane.xlu0 %1217
        %v1219 = vsel %vm690, %v1205, -inf
        %1220 = vmax.xlane.f32.xlu0 %v1219
        %v1221 = vpop.xlane.xlu0 %1220
        %v1222 = vsel %vm690, %v1206, -inf
        %1223 = vmax.xlane.f32.xlu0 %v1222
        %v1224 = vpop.xlane.xlu0 %1223
        %v1225 = vsel %vm690, %v1207, -inf
        %1226 = vmax.xlane.f32.xlu0 %v1225
        %v1227 = vpop.xlane.xlu0 %1226
        %v1228 = vsel %vm690, %v1208, -inf
        %1229 = vmax.xlane.f32.xlu0 %v1228
        %v1230 = vpop.xlane.xlu0 %1229
        %v1231 = vsel %vm690, %v1209, -inf
        %1232 = vmax.xlane.f32.xlu0 %v1231
        %v1233 = vpop.xlane.xlu0 %1232
        %v1234 = vsub.f32 %v1202, %v1212
        %v1235 = vsub.f32 %v1203, %v1215
        %v1236 = vsub.f32 %v1204, %v1218
        %v1237 = vsub.f32 %v1205, %v1221
        %v1238 = vsub.f32 %v1206, %v1224
        %v1239 = vsub.f32 %v1207, %v1227
        %v1240 = vsub.f32 %v1208, %v1230
        %v1241 = vsub.f32 %v1209, %v1233
        %v1242 = vmul.f32 %v1234, 1.442695
        %v1243 = vpow.pop %v1242
        %v1244 = vmul.f32 %v1235, 1.442695
        %v1245 = vpow.pop %v1244
        %v1246 = vmul.f32 %v1236, 1.442695
        %v1247 = vpow.pop %v1246
        %v1248 = vmul.f32 %v1237, 1.442695
        %v1249 = vpow.pop %v1248
        %v1250 = vmul.f32 %v1238, 1.442695
        %v1251 = vpow.pop %v1250
        %v1252 = vmul.f32 %v1239, 1.442695
        %v1253 = vpow.pop %v1252
        %v1254 = vmul.f32 %v1240, 1.442695
        %v1255 = vpow.pop %v1254
        %v1256 = vmul.f32 %v1241, 1.442695
        %v1257 = vpow.pop %v1256
        %v1258 = vsel %vm690, %v1243, 0.0
        %1259 = vadd.xlane.f32.xlu0 %v1258
        %v1260 = vpop.xlane.xlu0 %1259
        %v1261 = vsel %vm690, %v1245, 0.0
        %1262 = vadd.xlane.f32.xlu0 %v1261
        %v1263 = vpop.xlane.xlu0 %1262
        %v1264 = vsel %vm690, %v1247, 0.0
        %1265 = vadd.xlane.f32.xlu0 %v1264
        %v1266 = vpop.xlane.xlu0 %1265
        %v1267 = vsel %vm690, %v1249, 0.0
        %1268 = vadd.xlane.f32.xlu0 %v1267
        %v1269 = vpop.xlane.xlu0 %1268
        %v1270 = vsel %vm690, %v1251, 0.0
        %1271 = vadd.xlane.f32.xlu0 %v1270
        %v1272 = vpop.xlane.xlu0 %1271
        %v1273 = vsel %vm690, %v1253, 0.0
        %1274 = vadd.xlane.f32.xlu0 %v1273
        %v1275 = vpop.xlane.xlu0 %1274
        %v1276 = vsel %vm690, %v1255, 0.0
        %1277 = vadd.xlane.f32.xlu0 %v1276
        %v1278 = vpop.xlane.xlu0 %1277
        %v1279 = vsel %vm690, %v1257, 0.0
        %1280 = vadd.xlane.f32.xlu0 %v1279
        %v1281 = vpop.xlane.xlu0 %1280
        %v1282 = vrcp.pop %v1260
        %v1283 = vrcp.pop %v1263
        %v1284 = vrcp.pop %v1266
        %v1285 = vrcp.pop %v1269
        %v1286 = vrcp.pop %v1272
        %v1287 = vrcp.pop %v1275
        %v1288 = vrcp.pop %v1278
        %v1289 = vrcp.pop %v1281
        %v1290 = vmul.f32 %v1243, %v1282
        %v1291 = vmul.f32 %v1245, %v1283
        %v1292 = vmul.f32 %v1247, %v1284
        %v1293 = vmul.f32 %v1249, %v1285
        %v1294 = vmul.f32 %v1251, %v1286
        %v1295 = vmul.f32 %v1253, %v1287
        %v1296 = vmul.f32 %v1255, %v1288
        %v1297 = vmul.f32 %v1257, %v1289
        %v1298 = vpack.c.bf16 %v1291, %v1290
        %v1299 = vpack.c.bf16 %v1293, %v1292
        %v1300 = vpack.c.bf16 %v1295, %v1294
        %v1301 = vpack.c.bf16 %v1297, %v1296
        %1302 = vrot.lane.b32.xlu0 %v979, 56
        %v1303 = vpop.permute.xlu0 %1302
        %v1306 = vsel %vm690, %v1298, 0
        %1308 = vmatprep.subr.bf16.mxu0 0
        %1309 = vmatpush1.bf16.msra.mxu0 %v1303
        %1310 = vmatprep.subr.bf16.mxu0 0
        %1311 = vmatpush1.bf16.msra.mxu0 0
        %1312 = vmatprep.subr.bf16.mxu0 0
        %1313 = vmatpush1.bf16.msra.mxu0 0
        %1314 = vmatprep.subr.bf16.mxu0 0
        %1315 = vmatpush1.bf16.msra.mxu0 0
        %1316 = vmatprep.subr.bf16.mxu0 0
        %1317 = vmatpush1.bf16.msra.mxu0 0
        %1318 = vmatprep.subr.bf16.mxu0 0
        %1319 = vmatpush1.bf16.msra.mxu0 0
        %1320 = vmatprep.subr.bf16.mxu0 0
        %1321 = vmatpush1.bf16.msra.mxu0 0
        %1322 = vmatprep.subr.bf16.mxu0 0
        %1323 = vmatpush1.bf16.msra.mxu0 0
        %1324 = vmatprep.subr.bf16.mxu0 0
        %1325 = vmatpush1.bf16.msra.mxu0 0
        %1326 = vmatprep.subr.bf16.mxu0 0
        %1327 = vmatpush1.bf16.msra.mxu0 0
        %1328 = vmatprep.subr.bf16.mxu0 0
        %1329 = vmatpush1.bf16.msra.mxu0 0
        %1330 = vmatprep.subr.bf16.mxu0 0
        %1331 = vmatpush1.bf16.msra.mxu0 0
        %1332 = vmatprep.subr.bf16.mxu0 0
        %1333 = vmatpush1.bf16.msra.mxu0 0
        %1334 = vmatprep.subr.bf16.mxu0 0
        %1335 = vmatpush1.bf16.msra.mxu0 0
        %1336 = vmatprep.subr.bf16.mxu0 0
        %1337 = vmatpush1.bf16.msra.mxu0 0
        %1338 = vmatprep.subr.bf16.mxu0 0
        %1339 = vmatpush1.bf16.msra.mxu0 0
        %1340 = vmatprep.mubr.bf16.mxu0 0
        %1341 = vmatmul.mubr.bf16.gmra.mrb[0].mxu0 %v1306
        %v1342 = vpop.f32.mrb[0].mxu0
        %v1343 = vadd.f32 0.0, %v1342
        %v1344 = vpop.f32.mrb[0].mxu0
        %v1345 = vpop.f32.mrb[0].mxu0
        %v1346 = vadd.f32 0.0, %v1345
        %v1347 = vpop.f32.mrb[0].mxu0
        %1348 = vdwg.mxu0
        %1349 = vrot.lane.b32.xlu0 %v980, 56
        %v1350 = vpop.permute.xlu0 %1349
        %v1353 = vsel %vm690, %v1299, 0
        %1355 = vmatprep.subr.bf16.mxu0 0
        %1356 = vmatpush1.bf16.msra.mxu0 %v1350
        %1357 = vmatprep.subr.bf16.mxu0 0
        %1358 = vmatpush1.bf16.msra.mxu0 0
        %1359 = vmatprep.subr.bf16.mxu0 0
        %1360 = vmatpush1.bf16.msra.mxu0 0
        %1361 = vmatprep.subr.bf16.mxu0 0
        %1362 = vmatpush1.bf16.msra.mxu0 0
        %1363 = vmatprep.subr.bf16.mxu0 0
        %1364 = vmatpush1.bf16.msra.mxu0 0
        %1365 = vmatprep.subr.bf16.mxu0 0
        %1366 = vmatpush1.bf16.msra.mxu0 0
        %1367 = vmatprep.subr.bf16.mxu0 0
        %1368 = vmatpush1.bf16.msra.mxu0 0
        %1369 = vmatprep.subr.bf16.mxu0 0
        %1370 = vmatpush1.bf16.msra.mxu0 0
        %1371 = vmatprep.subr.bf16.mxu0 0
        %1372 = vmatpush1.bf16.msra.mxu0 0
        %1373 = vmatprep.subr.bf16.mxu0 0
        %1374 = vmatpush1.bf16.msra.mxu0 0
        %1375 = vmatprep.subr.bf16.mxu0 0
        %1376 = vmatpush1.bf16.msra.mxu0 0
        %1377 = vmatprep.subr.bf16.mxu0 0
        %1378 = vmatpush1.bf16.msra.mxu0 0
        %1379 = vmatprep.subr.bf16.mxu0 0
        %1380 = vmatpush1.bf16.msra.mxu0 0
        %1381 = vmatprep.subr.bf16.mxu0 0
        %1382 = vmatpush1.bf16.msra.mxu0 0
        %1383 = vmatprep.subr.bf16.mxu0 0
        %1384 = vmatpush1.bf16.msra.mxu0 0
        %1385 = vmatprep.subr.bf16.mxu0 0
        %1386 = vmatpush1.bf16.msra.mxu0 0
        %1387 = vmatprep.mubr.bf16.mxu0 0
        %1388 = vmatmul.mubr.bf16.gmra.mrb[0].mxu0 %v1353
        %v1389 = vpop.f32.mrb[0].mxu0
        %v1390 = vadd.f32 0.0, %v1389
        %v1391 = vpop.f32.mrb[0].mxu0
        %v1392 = vpop.f32.mrb[0].mxu0
        %v1393 = vadd.f32 0.0, %v1392
        %v1394 = vpop.f32.mrb[0].mxu0
        %1395 = vdwg.mxu0
        %1396 = vrot.lane.b32.xlu0 %v981, 56
        %v1397 = vpop.permute.xlu0 %1396
        %v1400 = vsel %vm690, %v1300, 0
        %1402 = vmatprep.subr.bf16.mxu0 0
        %1403 = vmatpush1.bf16.msra.mxu0 %v1397
        %1404 = vmatprep.subr.bf16.mxu0 0
        %1405 = vmatpush1.bf16.msra.mxu0 0
        %1406 = vmatprep.subr.bf16.mxu0 0
        %1407 = vmatpush1.bf16.msra.mxu0 0
        %1408 = vmatprep.subr.bf16.mxu0 0
        %1409 = vmatpush1.bf16.msra.mxu0 0
        %1410 = vmatprep.subr.bf16.mxu0 0
        %1411 = vmatpush1.bf16.msra.mxu0 0
        %1412 = vmatprep.subr.bf16.mxu0 0
        %1413 = vmatpush1.bf16.msra.mxu0 0
        %1414 = vmatprep.subr.bf16.mxu0 0
        %1415 = vmatpush1.bf16.msra.mxu0 0
        %1416 = vmatprep.subr.bf16.mxu0 0
        %1417 = vmatpush1.bf16.msra.mxu0 0
        %1418 = vmatprep.subr.bf16.mxu0 0
        %1419 = vmatpush1.bf16.msra.mxu0 0
        %1420 = vmatprep.subr.bf16.mxu0 0
        %1421 = vmatpush1.bf16.msra.mxu0 0
        %1422 = vmatprep.subr.bf16.mxu0 0
        %1423 = vmatpush1.bf16.msra.mxu0 0
        %1424 = vmatprep.subr.bf16.mxu0 0
        %1425 = vmatpush1.bf16.msra.mxu0 0
        %1426 = vmatprep.subr.bf16.mxu0 0
        %1427 = vmatpush1.bf16.msra.mxu0 0
        %1428 = vmatprep.subr.bf16.mxu0 0
        %1429 = vmatpush1.bf16.msra.mxu0 0
        %1430 = vmatprep.subr.bf16.mxu0 0
        %1431 = vmatpush1.bf16.msra.mxu0 0
        %1432 = vmatprep.subr.bf16.mxu0 0
        %1433 = vmatpush1.bf16.msra.mxu0 0
        %1434 = vmatprep.mubr.bf16.mxu0 0
        %1435 = vmatmul.mubr.bf16.gmra.mrb[0].mxu0 %v1400
        %v1436 = vpop.f32.mrb[0].mxu0
        %v1437 = vadd.f32 0.0, %v1436
        %v1438 = vpop.f32.mrb[0].mxu0
        %v1439 = vpop.f32.mrb[0].mxu0
        %v1440 = vadd.f32 0.0, %v1439
        %v1441 = vpop.f32.mrb[0].mxu0
        %1442 = vdwg.mxu0
        %1443 = vrot.lane.b32.xlu0 %v982, 56
        %v1444 = vpop.permute.xlu0 %1443
        %v1447 = vsel %vm690, %v1301, 0
        %1449 = vmatprep.subr.bf16.mxu0 0
        %1450 = vmatpush1.bf16.msra.mxu0 %v1444
        %1451 = vmatprep.subr.bf16.mxu0 0
        %1452 = vmatpush1.bf16.msra.mxu0 0
        %1453 = vmatprep.subr.bf16.mxu0 0
        %1454 = vmatpush1.bf16.msra.mxu0 0
        %1455 = vmatprep.subr.bf16.mxu0 0
        %1456 = vmatpush1.bf16.msra.mxu0 0
        %1457 = vmatprep.subr.bf16.mxu0 0
        %1458 = vmatpush1.bf16.msra.mxu0 0
        %1459 = vmatprep.subr.bf16.mxu0 0
        %1460 = vmatpush1.bf16.msra.mxu0 0
        %1461 = vmatprep.subr.bf16.mxu0 0
        %1462 = vmatpush1.bf16.msra.mxu0 0
        %1463 = vmatprep.subr.bf16.mxu0 0
        %1464 = vmatpush1.bf16.msra.mxu0 0
        %1465 = vmatprep.subr.bf16.mxu0 0
        %1466 = vmatpush1.bf16.msra.mxu0 0
        %1467 = vmatprep.subr.bf16.mxu0 0
        %1468 = vmatpush1.bf16.msra.mxu0 0
        %1469 = vmatprep.subr.bf16.mxu0 0
        %1470 = vmatpush1.bf16.msra.mxu0 0
        %1471 = vmatprep.subr.bf16.mxu0 0
        %1472 = vmatpush1.bf16.msra.mxu0 0
        %1473 = vmatprep.subr.bf16.mxu0 0
        %1474 = vmatpush1.bf16.msra.mxu0 0
        %1475 = vmatprep.subr.bf16.mxu0 0
        %1476 = vmatpush1.bf16.msra.mxu0 0
        %1477 = vmatprep.subr.bf16.mxu0 0
        %1478 = vmatpush1.bf16.msra.mxu0 0
        %1479 = vmatprep.subr.bf16.mxu0 0
        %1480 = vmatpush1.bf16.msra.mxu0 0
        %1481 = vmatprep.mubr.bf16.mxu0 0
        %1482 = vmatmul.mubr.bf16.gmra.mrb[0].mxu0 %v1447
        %v1483 = vpop.f32.mrb[0].mxu0
        %v1484 = vadd.f32 0.0, %v1483
        %v1485 = vpop.f32.mrb[0].mxu0
        %v1486 = vpop.f32.mrb[0].mxu0
        %v1487 = vadd.f32 0.0, %v1486
        %v1488 = vpop.f32.mrb[0].mxu0
        %1489 = vdwg.mxu0
        %v1490 = vpack.c.bf16 %v1346, %v1343
        %v1491 = vpack.c.bf16 %v1393, %v1390
        %v1492 = vpack.c.bf16 %v1440, %v1437
        %v1493 = vpack.c.bf16 %v1487, %v1484
        %1498 = vrot.lane.b32.xlu0 %v1490, 8
        %v1499 = vpop.permute.xlu0 %1498
        %1500 = vrot.lane.b32.xlu0 %v1491, 8
        %v1501 = vpop.permute.xlu0 %1500
        %1502 = vrot.lane.b32.xlu0 %v1492, 8
        %v1503 = vpop.permute.xlu0 %1502
        %1504 = vrot.lane.b32.xlu0 %v1493, 8
        %v1505 = vpop.permute.xlu0 %1504
        %vm1510 = vcmask 130112
        %1511 = vst.msk [vmem:[#allocation3] sm:$0xff] %vm1510, %v1499
        %1512 = vst.msk [vmem:[#allocation3 + $0x8] sm:$0xff] %vm1510, %v1501
        %1513 = vst.msk [vmem:[#allocation3 + $0x10] sm:$0xff] %vm1510, %v1503
        %1514 = vst.msk [vmem:[#allocation3 + $0x18] sm:$0xff] %vm1510, %v1505
        %v1515 = vld [vmem:[#allocation2] sm:$0xff]
        %v1516 = vld [vmem:[#allocation2 + $0x8] sm:$0xff]
        %v1517 = vld [vmem:[#allocation2 + $0x10] sm:$0xff]
        %v1518 = vld [vmem:[#allocation2 + $0x18] sm:$0xff]
        %s1519 = scalar_lea.vmem [#allocation7], 32
        %v1520 = vld [vmem:[%s1519] sm:$0xff]
        %v1521 = vld [vmem:[%s1519 + $0x8] sm:$0xff]
        %1523 = vrot.lane.b32.xlu0 %v1515, 112
        %v1524 = vpop.permute.xlu0 %1523
        %1525 = vrot.lane.b32.xlu0 %v1515, 80
        %v1526 = vpop.permute.xlu0 %1525
        %v1528 = vsel %vm476, %v1524, 0
        %v1531 = vsel %vm476, %v1526, 0
        %1533 = vmatprep.subr.bf16.mxu0 0
        %1534 = vmatpush1.bf16.xpose.msra.mxu0 %v1531
        %1535 = vmatprep.subr.bf16.mxu0 0
        %1536 = vmatpush1.bf16.xpose.msra.mxu0 0
        %1537 = vmatprep.subr.bf16.mxu0 0
        %1538 = vmatpush1.bf16.xpose.msra.mxu0 0
        %1539 = vmatprep.subr.bf16.mxu0 0
        %1540 = vmatpush1.bf16.xpose.msra.mxu0 0
        %1541 = vmatprep.subr.bf16.mxu0 0
        %1542 = vmatpush1.bf16.xpose.msra.mxu0 0
        %1543 = vmatprep.subr.bf16.mxu0 0
        %1544 = vmatpush1.bf16.xpose.msra.mxu0 0
        %1545 = vmatprep.subr.bf16.mxu0 0
        %1546 = vmatpush1.bf16.xpose.msra.mxu0 0
        %1547 = vmatprep.subr.bf16.mxu0 0
        %1548 = vmatpush1.bf16.xpose.msra.mxu0 0
        %1549 = vmatprep.subr.bf16.mxu0 0
        %1550 = vmatpush1.bf16.xpose.msra.mxu0 0
        %1551 = vmatprep.subr.bf16.mxu0 0
        %1552 = vmatpush1.bf16.xpose.msra.mxu0 0
        %1553 = vmatprep.subr.bf16.mxu0 0
        %1554 = vmatpush1.bf16.xpose.msra.mxu0 0
        %1555 = vmatprep.subr.bf16.mxu0 0
        %1556 = vmatpush1.bf16.xpose.msra.mxu0 0
        %1557 = vmatprep.subr.bf16.mxu0 0
        %1558 = vmatpush1.bf16.xpose.msra.mxu0 0
        %1559 = vmatprep.subr.bf16.mxu0 0
        %1560 = vmatpush1.bf16.xpose.msra.mxu0 0
        %1561 = vmatprep.subr.bf16.mxu0 0
        %1562 = vmatpush1.bf16.xpose.msra.mxu0 0
        %1563 = vmatprep.subr.bf16.mxu0 0
        %1564 = vmatpush1.bf16.xpose.msra.mxu0 0
        %1565 = vmatprep.mubr.bf16.mxu0 0
        %1566 = vmatmul.mubr.bf16.gmra.mrb[0].mxu0 %v1528
        %v1567 = vpop.f32.mrb[0].mxu0
        %v1568 = vadd.f32 %v1520, %v1567
        %v1569 = vpop.f32.mrb[0].mxu0
        %v1570 = vpop.f32.mrb[0].mxu0
        %v1571 = vadd.f32 %v1521, %v1570
        %v1572 = vpop.f32.mrb[0].mxu0
        %1573 = vdwg.mxu0
        %1575 = vrot.lane.b32.xlu0 %v1516, 112
        %v1576 = vpop.permute.xlu0 %1575
        %1577 = vrot.lane.b32.xlu0 %v1516, 80
        %v1578 = vpop.permute.xlu0 %1577
        %v1580 = vsel %vm476, %v1576, 0
        %v1583 = vsel %vm476, %v1578, 0
        %1585 = vmatprep.subr.bf16.mxu0 0
        %1586 = vmatpush1.bf16.xpose.msra.mxu0 %v1583
        %1587 = vmatprep.subr.bf16.mxu0 0
        %1588 = vmatpush1.bf16.xpose.msra.mxu0 0
        %1589 = vmatprep.subr.bf16.mxu0 0
        %1590 = vmatpush1.bf16.xpose.msra.mxu0 0
        %1591 = vmatprep.subr.bf16.mxu0 0
        %1592 = vmatpush1.bf16.xpose.msra.mxu0 0
        %1593 = vmatprep.subr.bf16.mxu0 0
        %1594 = vmatpush1.bf16.xpose.msra.mxu0 0
        %1595 = vmatprep.subr.bf16.mxu0 0
        %1596 = vmatpush1.bf16.xpose.msra.mxu0 0
        %1597 = vmatprep.subr.bf16.mxu0 0
        %1598 = vmatpush1.bf16.xpose.msra.mxu0 0
        %1599 = vmatprep.subr.bf16.mxu0 0
        %1600 = vmatpush1.bf16.xpose.msra.mxu0 0
        %1601 = vmatprep.subr.bf16.mxu0 0
        %1602 = vmatpush1.bf16.xpose.msra.mxu0 0
        %1603 = vmatprep.subr.bf16.mxu0 0
        %1604 = vmatpush1.bf16.xpose.msra.mxu0 0
        %1605 = vmatprep.subr.bf16.mxu0 0
        %1606 = vmatpush1.bf16.xpose.msra.mxu0 0
        %1607 = vmatprep.subr.bf16.mxu0 0
        %1608 = vmatpush1.bf16.xpose.msra.mxu0 0
        %1609 = vmatprep.subr.bf16.mxu0 0
        %1610 = vmatpush1.bf16.xpose.msra.mxu0 0
        %1611 = vmatprep.subr.bf16.mxu0 0
        %1612 = vmatpush1.bf16.xpose.msra.mxu0 0
        %1613 = vmatprep.subr.bf16.mxu0 0
        %1614 = vmatpush1.bf16.xpose.msra.mxu0 0
        %1615 = vmatprep.subr.bf16.mxu0 0
        %1616 = vmatpush1.bf16.xpose.msra.mxu0 0
        %1617 = vmatprep.mubr.bf16.mxu0 0
        %1618 = vmatmul.mubr.bf16.gmra.mrb[0].mxu0 %v1580
        %v1619 = vpop.f32.mrb[0].mxu0
        %v1620 = vadd.f32 %v1520, %v1619
        %v1621 = vpop.f32.mrb[0].mxu0
        %v1622 = vpop.f32.mrb[0].mxu0
        %v1623 = vadd.f32 %v1521, %v1622
        %v1624 = vpop.f32.mrb[0].mxu0
        %1625 = vdwg.mxu0
        %1627 = vrot.lane.b32.xlu0 %v1517, 112
        %v1628 = vpop.permute.xlu0 %1627
        %1629 = vrot.lane.b32.xlu0 %v1517, 80
        %v1630 = vpop.permute.xlu0 %1629
        %v1632 = vsel %vm476, %v1628, 0
        %v1635 = vsel %vm476, %v1630, 0
        %1637 = vmatprep.subr.bf16.mxu0 0
        %1638 = vmatpush1.bf16.xpose.msra.mxu0 %v1635
        %1639 = vmatprep.subr.bf16.mxu0 0
        %1640 = vmatpush1.bf16.xpose.msra.mxu0 0
        %1641 = vmatprep.subr.bf16.mxu0 0
        %1642 = vmatpush1.bf16.xpose.msra.mxu0 0
        %1643 = vmatprep.subr.bf16.mxu0 0
        %1644 = vmatpush1.bf16.xpose.msra.mxu0 0
        %1645 = vmatprep.subr.bf16.mxu0 0
        %1646 = vmatpush1.bf16.xpose.msra.mxu0 0
        %1647 = vmatprep.subr.bf16.mxu0 0
        %1648 = vmatpush1.bf16.xpose.msra.mxu0 0
        %1649 = vmatprep.subr.bf16.mxu0 0
        %1650 = vmatpush1.bf16.xpose.msra.mxu0 0
        %1651 = vmatprep.subr.bf16.mxu0 0
        %1652 = vmatpush1.bf16.xpose.msra.mxu0 0
        %1653 = vmatprep.subr.bf16.mxu0 0
        %1654 = vmatpush1.bf16.xpose.msra.mxu0 0
        %1655 = vmatprep.subr.bf16.mxu0 0
        %1656 = vmatpush1.bf16.xpose.msra.mxu0 0
        %1657 = vmatprep.subr.bf16.mxu0 0
        %1658 = vmatpush1.bf16.xpose.msra.mxu0 0
        %1659 = vmatprep.subr.bf16.mxu0 0
        %1660 = vmatpush1.bf16.xpose.msra.mxu0 0
        %1661 = vmatprep.subr.bf16.mxu0 0
        %1662 = vmatpush1.bf16.xpose.msra.mxu0 0
        %1663 = vmatprep.subr.bf16.mxu0 0
        %1664 = vmatpush1.bf16.xpose.msra.mxu0 0
        %1665 = vmatprep.subr.bf16.mxu0 0
        %1666 = vmatpush1.bf16.xpose.msra.mxu0 0
        %1667 = vmatprep.subr.bf16.mxu0 0
        %1668 = vmatpush1.bf16.xpose.msra.mxu0 0
        %1669 = vmatprep.mubr.bf16.mxu0 0
        %1670 = vmatmul.mubr.bf16.gmra.mrb[0].mxu0 %v1632
        %v1671 = vpop.f32.mrb[0].mxu0
        %v1672 = vadd.f32 %v1520, %v1671
        %v1673 = vpop.f32.mrb[0].mxu0
        %v1674 = vpop.f32.mrb[0].mxu0
        %v1675 = vadd.f32 %v1521, %v1674
        %v1676 = vpop.f32.mrb[0].mxu0
        %1677 = vdwg.mxu0
        %1679 = vrot.lane.b32.xlu0 %v1518, 112
        %v1680 = vpop.permute.xlu0 %1679
        %1681 = vrot.lane.b32.xlu0 %v1518, 80
        %v1682 = vpop.permute.xlu0 %1681
        %v1684 = vsel %vm476, %v1680, 0
        %v1687 = vsel %vm476, %v1682, 0
        %1689 = vmatprep.subr.bf16.mxu0 0
        %1690 = vmatpush1.bf16.xpose.msra.mxu0 %v1687
        %1691 = vmatprep.subr.bf16.mxu0 0
        %1692 = vmatpush1.bf16.xpose.msra.mxu0 0
        %1693 = vmatprep.subr.bf16.mxu0 0
        %1694 = vmatpush1.bf16.xpose.msra.mxu0 0
        %1695 = vmatprep.subr.bf16.mxu0 0
        %1696 = vmatpush1.bf16.xpose.msra.mxu0 0
        %1697 = vmatprep.subr.bf16.mxu0 0
        %1698 = vmatpush1.bf16.xpose.msra.mxu0 0
        %1699 = vmatprep.subr.bf16.mxu0 0
        %1700 = vmatpush1.bf16.xpose.msra.mxu0 0
        %1701 = vmatprep.subr.bf16.mxu0 0
        %1702 = vmatpush1.bf16.xpose.msra.mxu0 0
        %1703 = vmatprep.subr.bf16.mxu0 0
        %1704 = vmatpush1.bf16.xpose.msra.mxu0 0
        %1705 = vmatprep.subr.bf16.mxu0 0
        %1706 = vmatpush1.bf16.xpose.msra.mxu0 0
        %1707 = vmatprep.subr.bf16.mxu0 0
        %1708 = vmatpush1.bf16.xpose.msra.mxu0 0
        %1709 = vmatprep.subr.bf16.mxu0 0
        %1710 = vmatpush1.bf16.xpose.msra.mxu0 0
        %1711 = vmatprep.subr.bf16.mxu0 0
        %1712 = vmatpush1.bf16.xpose.msra.mxu0 0
        %1713 = vmatprep.subr.bf16.mxu0 0
        %1714 = vmatpush1.bf16.xpose.msra.mxu0 0
        %1715 = vmatprep.subr.bf16.mxu0 0
        %1716 = vmatpush1.bf16.xpose.msra.mxu0 0
        %1717 = vmatprep.subr.bf16.mxu0 0
        %1718 = vmatpush1.bf16.xpose.msra.mxu0 0
        %1719 = vmatprep.subr.bf16.mxu0 0
        %1720 = vmatpush1.bf16.xpose.msra.mxu0 0
        %1721 = vmatprep.mubr.bf16.mxu0 0
        %1722 = vmatmul.mubr.bf16.gmra.mrb[0].mxu0 %v1684
        %v1723 = vpop.f32.mrb[0].mxu0
        %v1724 = vadd.f32 %v1520, %v1723
        %v1725 = vpop.f32.mrb[0].mxu0
        %v1726 = vpop.f32.mrb[0].mxu0
        %v1727 = vadd.f32 %v1521, %v1726
        %v1728 = vpop.f32.mrb[0].mxu0
        %1729 = vdwg.mxu0
        %v1730 = vld [vmem:[#allocation9] sm:$0xff]
        %v1731 = vld [vmem:[#allocation9 + $0x8] sm:$0xff]
        %v1732 = vld [vmem:[#allocation9 + $0x10] sm:$0xff]
        %v1733 = vld [vmem:[#allocation9 + $0x18] sm:$0xff]
        %v1734 = vld [vmem:[#allocation9 + $0x20] sm:$0xff]
        %v1735 = vld [vmem:[#allocation9 + $0x28] sm:$0xff]
        %v1736 = vld [vmem:[#allocation9 + $0x30] sm:$0xff]
        %v1737 = vld [vmem:[#allocation9 + $0x38] sm:$0xff]
        %v1738 = vadd.f32 %v1568, %v1730
        %v1739 = vadd.f32 %v1571, %v1731
        %v1740 = vadd.f32 %v1620, %v1732
        %v1741 = vadd.f32 %v1623, %v1733
        %v1742 = vadd.f32 %v1672, %v1734
        %v1743 = vadd.f32 %v1675, %v1735
        %v1744 = vadd.f32 %v1724, %v1736
        %v1745 = vadd.f32 %v1727, %v1737
        %v1746 = vsel %vm690, %v1738, -inf
        %1747 = vmax.xlane.f32.xlu0 %v1746
        %v1748 = vpop.xlane.xlu0 %1747
        %v1749 = vsel %vm690, %v1739, -inf
        %1750 = vmax.xlane.f32.xlu0 %v1749
        %v1751 = vpop.xlane.xlu0 %1750
        %v1752 = vsel %vm690, %v1740, -inf
        %1753 = vmax.xlane.f32.xlu0 %v1752
        %v1754 = vpop.xlane.xlu0 %1753
        %v1755 = vsel %vm690, %v1741, -inf
        %1756 = vmax.xlane.f32.xlu0 %v1755
        %v1757 = vpop.xlane.xlu0 %1756
        %v1758 = vsel %vm690, %v1742, -inf
        %1759 = vmax.xlane.f32.xlu0 %v1758
        %v1760 = vpop.xlane.xlu0 %1759
        %v1761 = vsel %vm690, %v1743, -inf
        %1762 = vmax.xlane.f32.xlu0 %v1761
        %v1763 = vpop.xlane.xlu0 %1762
        %v1764 = vsel %vm690, %v1744, -inf
        %1765 = vmax.xlane.f32.xlu0 %v1764
        %v1766 = vpop.xlane.xlu0 %1765
        %v1767 = vsel %vm690, %v1745, -inf
        %1768 = vmax.xlane.f32.xlu0 %v1767
        %v1769 = vpop.xlane.xlu0 %1768
        %v1770 = vsub.f32 %v1738, %v1748
        %v1771 = vsub.f32 %v1739, %v1751
        %v1772 = vsub.f32 %v1740, %v1754
        %v1773 = vsub.f32 %v1741, %v1757
        %v1774 = vsub.f32 %v1742, %v1760
        %v1775 = vsub.f32 %v1743, %v1763
        %v1776 = vsub.f32 %v1744, %v1766
        %v1777 = vsub.f32 %v1745, %v1769
        %v1778 = vmul.f32 %v1770, 1.442695
        %v1779 = vpow.pop %v1778
        %v1780 = vmul.f32 %v1771, 1.442695
        %v1781 = vpow.pop %v1780
        %v1782 = vmul.f32 %v1772, 1.442695
        %v1783 = vpow.pop %v1782
        %v1784 = vmul.f32 %v1773, 1.442695
        %v1785 = vpow.pop %v1784
        %v1786 = vmul.f32 %v1774, 1.442695
        %v1787 = vpow.pop %v1786
        %v1788 = vmul.f32 %v1775, 1.442695
        %v1789 = vpow.pop %v1788
        %v1790 = vmul.f32 %v1776, 1.442695
        %v1791 = vpow.pop %v1790
        %v1792 = vmul.f32 %v1777, 1.442695
        %v1793 = vpow.pop %v1792
        %v1794 = vsel %vm690, %v1779, 0.0
        %1795 = vadd.xlane.f32.xlu0 %v1794
        %v1796 = vpop.xlane.xlu0 %1795
        %v1797 = vsel %vm690, %v1781, 0.0
        %1798 = vadd.xlane.f32.xlu0 %v1797
        %v1799 = vpop.xlane.xlu0 %1798
        %v1800 = vsel %vm690, %v1783, 0.0
        %1801 = vadd.xlane.f32.xlu0 %v1800
        %v1802 = vpop.xlane.xlu0 %1801
        %v1803 = vsel %vm690, %v1785, 0.0
        %1804 = vadd.xlane.f32.xlu0 %v1803
        %v1805 = vpop.xlane.xlu0 %1804
        %v1806 = vsel %vm690, %v1787, 0.0
        %1807 = vadd.xlane.f32.xlu0 %v1806
        %v1808 = vpop.xlane.xlu0 %1807
        %v1809 = vsel %vm690, %v1789, 0.0
        %1810 = vadd.xlane.f32.xlu0 %v1809
        %v1811 = vpop.xlane.xlu0 %1810
        %v1812 = vsel %vm690, %v1791, 0.0
        %1813 = vadd.xlane.f32.xlu0 %v1812
        %v1814 = vpop.xlane.xlu0 %1813
        %v1815 = vsel %vm690, %v1793, 0.0
        %1816 = vadd.xlane.f32.xlu0 %v1815
        %v1817 = vpop.xlane.xlu0 %1816
        %v1818 = vrcp.pop %v1796
        %v1819 = vrcp.pop %v1799
        %v1820 = vrcp.pop %v1802
        %v1821 = vrcp.pop %v1805
        %v1822 = vrcp.pop %v1808
        %v1823 = vrcp.pop %v1811
        %v1824 = vrcp.pop %v1814
        %v1825 = vrcp.pop %v1817
        %v1826 = vmul.f32 %v1779, %v1818
        %v1827 = vmul.f32 %v1781, %v1819
        %v1828 = vmul.f32 %v1783, %v1820
        %v1829 = vmul.f32 %v1785, %v1821
        %v1830 = vmul.f32 %v1787, %v1822
        %v1831 = vmul.f32 %v1789, %v1823
        %v1832 = vmul.f32 %v1791, %v1824
        %v1833 = vmul.f32 %v1793, %v1825
        %v1834 = vpack.c.bf16 %v1827, %v1826
        %v1835 = vpack.c.bf16 %v1829, %v1828
        %v1836 = vpack.c.bf16 %v1831, %v1830
        %v1837 = vpack.c.bf16 %v1833, %v1832
        %1838 = vrot.lane.b32.xlu0 %v1515, 48
        %v1839 = vpop.permute.xlu0 %1838
        %v1842 = vsel %vm690, %v1834, 0
        %1844 = vmatprep.subr.bf16.mxu0 0
        %1845 = vmatpush1.bf16.msra.mxu0 %v1839
        %1846 = vmatprep.subr.bf16.mxu0 0
        %1847 = vmatpush1.bf16.msra.mxu0 0
        %1848 = vmatprep.subr.bf16.mxu0 0
        %1849 = vmatpush1.bf16.msra.mxu0 0
        %1850 = vmatprep.subr.bf16.mxu0 0
        %1851 = vmatpush1.bf16.msra.mxu0 0
        %1852 = vmatprep.subr.bf16.mxu0 0
        %1853 = vmatpush1.bf16.msra.mxu0 0
        %1854 = vmatprep.subr.bf16.mxu0 0
        %1855 = vmatpush1.bf16.msra.mxu0 0
        %1856 = vmatprep.subr.bf16.mxu0 0
        %1857 = vmatpush1.bf16.msra.mxu0 0
        %1858 = vmatprep.subr.bf16.mxu0 0
        %1859 = vmatpush1.bf16.msra.mxu0 0
        %1860 = vmatprep.subr.bf16.mxu0 0
        %1861 = vmatpush1.bf16.msra.mxu0 0
        %1862 = vmatprep.subr.bf16.mxu0 0
        %1863 = vmatpush1.bf16.msra.mxu0 0
        %1864 = vmatprep.subr.bf16.mxu0 0
        %1865 = vmatpush1.bf16.msra.mxu0 0
        %1866 = vmatprep.subr.bf16.mxu0 0
        %1867 = vmatpush1.bf16.msra.mxu0 0
        %1868 = vmatprep.subr.bf16.mxu0 0
        %1869 = vmatpush1.bf16.msra.mxu0 0
        %1870 = vmatprep.subr.bf16.mxu0 0
        %1871 = vmatpush1.bf16.msra.mxu0 0
        %1872 = vmatprep.subr.bf16.mxu0 0
        %1873 = vmatpush1.bf16.msra.mxu0 0
        %1874 = vmatprep.subr.bf16.mxu0 0
        %1875 = vmatpush1.bf16.msra.mxu0 0
        %1876 = vmatprep.mubr.bf16.mxu0 0
        %1877 = vmatmul.mubr.bf16.gmra.mrb[0].mxu0 %v1842
        %v1878 = vpop.f32.mrb[0].mxu0
        %v1879 = vadd.f32 0.0, %v1878
        %v1880 = vpop.f32.mrb[0].mxu0
        %v1881 = vpop.f32.mrb[0].mxu0
        %v1882 = vadd.f32 0.0, %v1881
        %v1883 = vpop.f32.mrb[0].mxu0
        %1884 = vdwg.mxu0
        %1885 = vrot.lane.b32.xlu0 %v1516, 48
        %v1886 = vpop.permute.xlu0 %1885
        %v1889 = vsel %vm690, %v1835, 0
        %1891 = vmatprep.subr.bf16.mxu0 0
        %1892 = vmatpush1.bf16.msra.mxu0 %v1886
        %1893 = vmatprep.subr.bf16.mxu0 0
        %1894 = vmatpush1.bf16.msra.mxu0 0
        %1895 = vmatprep.subr.bf16.mxu0 0
        %1896 = vmatpush1.bf16.msra.mxu0 0
        %1897 = vmatprep.subr.bf16.mxu0 0
        %1898 = vmatpush1.bf16.msra.mxu0 0
        %1899 = vmatprep.subr.bf16.mxu0 0
        %1900 = vmatpush1.bf16.msra.mxu0 0
        %1901 = vmatprep.subr.bf16.mxu0 0
        %1902 = vmatpush1.bf16.msra.mxu0 0
        %1903 = vmatprep.subr.bf16.mxu0 0
        %1904 = vmatpush1.bf16.msra.mxu0 0
        %1905 = vmatprep.subr.bf16.mxu0 0
        %1906 = vmatpush1.bf16.msra.mxu0 0
        %1907 = vmatprep.subr.bf16.mxu0 0
        %1908 = vmatpush1.bf16.msra.mxu0 0
        %1909 = vmatprep.subr.bf16.mxu0 0
        %1910 = vmatpush1.bf16.msra.mxu0 0
        %1911 = vmatprep.subr.bf16.mxu0 0
        %1912 = vmatpush1.bf16.msra.mxu0 0
        %1913 = vmatprep.subr.bf16.mxu0 0
        %1914 = vmatpush1.bf16.msra.mxu0 0
        %1915 = vmatprep.subr.bf16.mxu0 0
        %1916 = vmatpush1.bf16.msra.mxu0 0
        %1917 = vmatprep.subr.bf16.mxu0 0
        %1918 = vmatpush1.bf16.msra.mxu0 0
        %1919 = vmatprep.subr.bf16.mxu0 0
        %1920 = vmatpush1.bf16.msra.mxu0 0
        %1921 = vmatprep.subr.bf16.mxu0 0
        %1922 = vmatpush1.bf16.msra.mxu0 0
        %1923 = vmatprep.mubr.bf16.mxu0 0
        %1924 = vmatmul.mubr.bf16.gmra.mrb[0].mxu0 %v1889
        %v1925 = vpop.f32.mrb[0].mxu0
        %v1926 = vadd.f32 0.0, %v1925
        %v1927 = vpop.f32.mrb[0].mxu0
        %v1928 = vpop.f32.mrb[0].mxu0
        %v1929 = vadd.f32 0.0, %v1928
        %v1930 = vpop.f32.mrb[0].mxu0
        %1931 = vdwg.mxu0
        %1932 = vrot.lane.b32.xlu0 %v1517, 48
        %v1933 = vpop.permute.xlu0 %1932
        %v1936 = vsel %vm690, %v1836, 0
        %1938 = vmatprep.subr.bf16.mxu0 0
        %1939 = vmatpush1.bf16.msra.mxu0 %v1933
        %1940 = vmatprep.subr.bf16.mxu0 0
        %1941 = vmatpush1.bf16.msra.mxu0 0
        %1942 = vmatprep.subr.bf16.mxu0 0
        %1943 = vmatpush1.bf16.msra.mxu0 0
        %1944 = vmatprep.subr.bf16.mxu0 0
        %1945 = vmatpush1.bf16.msra.mxu0 0
        %1946 = vmatprep.subr.bf16.mxu0 0
        %1947 = vmatpush1.bf16.msra.mxu0 0
        %1948 = vmatprep.subr.bf16.mxu0 0
        %1949 = vmatpush1.bf16.msra.mxu0 0
        %1950 = vmatprep.subr.bf16.mxu0 0
        %1951 = vmatpush1.bf16.msra.mxu0 0
        %1952 = vmatprep.subr.bf16.mxu0 0
        %1953 = vmatpush1.bf16.msra.mxu0 0
        %1954 = vmatprep.subr.bf16.mxu0 0
        %1955 = vmatpush1.bf16.msra.mxu0 0
        %1956 = vmatprep.subr.bf16.mxu0 0
        %1957 = vmatpush1.bf16.msra.mxu0 0
        %1958 = vmatprep.subr.bf16.mxu0 0
        %1959 = vmatpush1.bf16.msra.mxu0 0
        %1960 = vmatprep.subr.bf16.mxu0 0
        %1961 = vmatpush1.bf16.msra.mxu0 0
        %1962 = vmatprep.subr.bf16.mxu0 0
        %1963 = vmatpush1.bf16.msra.mxu0 0
        %1964 = vmatprep.subr.bf16.mxu0 0
        %1965 = vmatpush1.bf16.msra.mxu0 0
        %1966 = vmatprep.subr.bf16.mxu0 0
        %1967 = vmatpush1.bf16.msra.mxu0 0
        %1968 = vmatprep.subr.bf16.mxu0 0
        %1969 = vmatpush1.bf16.msra.mxu0 0
        %1970 = vmatprep.mubr.bf16.mxu0 0
        %1971 = vmatmul.mubr.bf16.gmra.mrb[0].mxu0 %v1936
        %v1972 = vpop.f32.mrb[0].mxu0
        %v1973 = vadd.f32 0.0, %v1972
        %v1974 = vpop.f32.mrb[0].mxu0
        %v1975 = vpop.f32.mrb[0].mxu0
        %v1976 = vadd.f32 0.0, %v1975
        %v1977 = vpop.f32.mrb[0].mxu0
        %1978 = vdwg.mxu0
        %1979 = vrot.lane.b32.xlu0 %v1518, 48
        %v1980 = vpop.permute.xlu0 %1979
        %v1983 = vsel %vm690, %v1837, 0
        %1985 = vmatprep.subr.bf16.mxu0 0
        %1986 = vmatpush1.bf16.msra.mxu0 %v1980
        %1987 = vmatprep.subr.bf16.mxu0 0
        %1988 = vmatpush1.bf16.msra.mxu0 0
        %1989 = vmatprep.subr.bf16.mxu0 0
        %1990 = vmatpush1.bf16.msra.mxu0 0
        %1991 = vmatprep.subr.bf16.mxu0 0
        %1992 = vmatpush1.bf16.msra.mxu0 0
        %1993 = vmatprep.subr.bf16.mxu0 0
        %1994 = vmatpush1.bf16.msra.mxu0 0
        %1995 = vmatprep.subr.bf16.mxu0 0
        %1996 = vmatpush1.bf16.msra.mxu0 0
        %1997 = vmatprep.subr.bf16.mxu0 0
        %1998 = vmatpush1.bf16.msra.mxu0 0
        %1999 = vmatprep.subr.bf16.mxu0 0
        %2000 = vmatpush1.bf16.msra.mxu0 0
        %2001 = vmatprep.subr.bf16.mxu0 0
        %2002 = vmatpush1.bf16.msra.mxu0 0
        %2003 = vmatprep.subr.bf16.mxu0 0
        %2004 = vmatpush1.bf16.msra.mxu0 0
        %2005 = vmatprep.subr.bf16.mxu0 0
        %2006 = vmatpush1.bf16.msra.mxu0 0
        %2007 = vmatprep.subr.bf16.mxu0 0
        %2008 = vmatpush1.bf16.msra.mxu0 0
        %2009 = vmatprep.subr.bf16.mxu0 0
        %2010 = vmatpush1.bf16.msra.mxu0 0
        %2011 = vmatprep.subr.bf16.mxu0 0
        %2012 = vmatpush1.bf16.msra.mxu0 0
        %2013 = vmatprep.subr.bf16.mxu0 0
        %2014 = vmatpush1.bf16.msra.mxu0 0
        %2015 = vmatprep.subr.bf16.mxu0 0
        %2016 = vmatpush1.bf16.msra.mxu0 0
        %2017 = vmatprep.mubr.bf16.mxu0 0
        %2018 = vmatmul.mubr.bf16.gmra.mrb[0].mxu0 %v1983
        %v2019 = vpop.f32.mrb[0].mxu0
        %v2020 = vadd.f32 0.0, %v2019
        %v2021 = vpop.f32.mrb[0].mxu0
        %v2022 = vpop.f32.mrb[0].mxu0
        %v2023 = vadd.f32 0.0, %v2022
        %v2024 = vpop.f32.mrb[0].mxu0
        %2025 = vdwg.mxu0
        %v2026 = vpack.c.bf16 %v1882, %v1879
        %v2027 = vpack.c.bf16 %v1929, %v1926
        %v2028 = vpack.c.bf16 %v1976, %v1973
        %v2029 = vpack.c.bf16 %v2023, %v2020
        %2034 = vrot.lane.b32.xlu0 %v2026, 16
        %v2035 = vpop.permute.xlu0 %2034
        %2036 = vrot.lane.b32.xlu0 %v2027, 16
        %v2037 = vpop.permute.xlu0 %2036
        %2038 = vrot.lane.b32.xlu0 %v2028, 16
        %v2039 = vpop.permute.xlu0 %2038
        %2040 = vrot.lane.b32.xlu0 %v2029, 16
        %v2041 = vpop.permute.xlu0 %2040
        %vm2046 = vcmask 195712
        %2047 = vst.msk [vmem:[#allocation3] sm:$0xff] %vm2046, %v2035
        %2048 = vst.msk [vmem:[#allocation3 + $0x8] sm:$0xff] %vm2046, %v2037
        %2049 = vst.msk [vmem:[#allocation3 + $0x10] sm:$0xff] %vm2046, %v2039
        %2050 = vst.msk [vmem:[#allocation3 + $0x18] sm:$0xff] %vm2046, %v2041
        %v2051 = vld [vmem:[#allocation2] sm:$0xff]
        %v2052 = vld [vmem:[#allocation2 + $0x8] sm:$0xff]
        %v2053 = vld [vmem:[#allocation2 + $0x10] sm:$0xff]
        %v2054 = vld [vmem:[#allocation2 + $0x18] sm:$0xff]
        %s2055 = scalar_lea.vmem [#allocation7], 48
        %v2056 = vld [vmem:[%s2055] sm:$0xff]
        %v2057 = vld [vmem:[%s2055 + $0x8] sm:$0xff]
        %2059 = vrot.lane.b32.xlu0 %v2051, 104
        %v2060 = vpop.permute.xlu0 %2059
        %2061 = vrot.lane.b32.xlu0 %v2051, 72
        %v2062 = vpop.permute.xlu0 %2061
        %v2064 = vsel %vm476, %v2060, 0
        %v2067 = vsel %vm476, %v2062, 0
        %2069 = vmatprep.subr.bf16.mxu0 0
        %2070 = vmatpush1.bf16.xpose.msra.mxu0 %v2067
        %2071 = vmatprep.subr.bf16.mxu0 0
        %2072 = vmatpush1.bf16.xpose.msra.mxu0 0
        %2073 = vmatprep.subr.bf16.mxu0 0
        %2074 = vmatpush1.bf16.xpose.msra.mxu0 0
        %2075 = vmatprep.subr.bf16.mxu0 0
        %2076 = vmatpush1.bf16.xpose.msra.mxu0 0
        %2077 = vmatprep.subr.bf16.mxu0 0
        %2078 = vmatpush1.bf16.xpose.msra.mxu0 0
        %2079 = vmatprep.subr.bf16.mxu0 0
        %2080 = vmatpush1.bf16.xpose.msra.mxu0 0
        %2081 = vmatprep.subr.bf16.mxu0 0
        %2082 = vmatpush1.bf16.xpose.msra.mxu0 0
        %2083 = vmatprep.subr.bf16.mxu0 0
        %2084 = vmatpush1.bf16.xpose.msra.mxu0 0
        %2085 = vmatprep.subr.bf16.mxu0 0
        %2086 = vmatpush1.bf16.xpose.msra.mxu0 0
        %2087 = vmatprep.subr.bf16.mxu0 0
        %2088 = vmatpush1.bf16.xpose.msra.mxu0 0
        %2089 = vmatprep.subr.bf16.mxu0 0
        %2090 = vmatpush1.bf16.xpose.msra.mxu0 0
        %2091 = vmatprep.subr.bf16.mxu0 0
        %2092 = vmatpush1.bf16.xpose.msra.mxu0 0
        %2093 = vmatprep.subr.bf16.mxu0 0
        %2094 = vmatpush1.bf16.xpose.msra.mxu0 0
        %2095 = vmatprep.subr.bf16.mxu0 0
        %2096 = vmatpush1.bf16.xpose.msra.mxu0 0
        %2097 = vmatprep.subr.bf16.mxu0 0
        %2098 = vmatpush1.bf16.xpose.msra.mxu0 0
        %2099 = vmatprep.subr.bf16.mxu0 0
        %2100 = vmatpush1.bf16.xpose.msra.mxu0 0
        %2101 = vmatprep.mubr.bf16.mxu0 0
        %2102 = vmatmul.mubr.bf16.gmra.mrb[0].mxu0 %v2064
        %v2103 = vpop.f32.mrb[0].mxu0
        %v2104 = vadd.f32 %v2056, %v2103
        %v2105 = vpop.f32.mrb[0].mxu0
        %v2106 = vpop.f32.mrb[0].mxu0
        %v2107 = vadd.f32 %v2057, %v2106
        %v2108 = vpop.f32.mrb[0].mxu0
        %2109 = vdwg.mxu0
        %2111 = vrot.lane.b32.xlu0 %v2052, 104
        %v2112 = vpop.permute.xlu0 %2111
        %2113 = vrot.lane.b32.xlu0 %v2052, 72
        %v2114 = vpop.permute.xlu0 %2113
        %v2116 = vsel %vm476, %v2112, 0
        %v2119 = vsel %vm476, %v2114, 0
        %2121 = vmatprep.subr.bf16.mxu0 0
        %2122 = vmatpush1.bf16.xpose.msra.mxu0 %v2119
        %2123 = vmatprep.subr.bf16.mxu0 0
        %2124 = vmatpush1.bf16.xpose.msra.mxu0 0
        %2125 = vmatprep.subr.bf16.mxu0 0
        %2126 = vmatpush1.bf16.xpose.msra.mxu0 0
        %2127 = vmatprep.subr.bf16.mxu0 0
        %2128 = vmatpush1.bf16.xpose.msra.mxu0 0
        %2129 = vmatprep.subr.bf16.mxu0 0
        %2130 = vmatpush1.bf16.xpose.msra.mxu0 0
        %2131 = vmatprep.subr.bf16.mxu0 0
        %2132 = vmatpush1.bf16.xpose.msra.mxu0 0
        %2133 = vmatprep.subr.bf16.mxu0 0
        %2134 = vmatpush1.bf16.xpose.msra.mxu0 0
        %2135 = vmatprep.subr.bf16.mxu0 0
        %2136 = vmatpush1.bf16.xpose.msra.mxu0 0
        %2137 = vmatprep.subr.bf16.mxu0 0
        %2138 = vmatpush1.bf16.xpose.msra.mxu0 0
        %2139 = vmatprep.subr.bf16.mxu0 0
        %2140 = vmatpush1.bf16.xpose.msra.mxu0 0
        %2141 = vmatprep.subr.bf16.mxu0 0
        %2142 = vmatpush1.bf16.xpose.msra.mxu0 0
        %2143 = vmatprep.subr.bf16.mxu0 0
        %2144 = vmatpush1.bf16.xpose.msra.mxu0 0
        %2145 = vmatprep.subr.bf16.mxu0 0
        %2146 = vmatpush1.bf16.xpose.msra.mxu0 0
        %2147 = vmatprep.subr.bf16.mxu0 0
        %2148 = vmatpush1.bf16.xpose.msra.mxu0 0
        %2149 = vmatprep.subr.bf16.mxu0 0
        %2150 = vmatpush1.bf16.xpose.msra.mxu0 0
        %2151 = vmatprep.subr.bf16.mxu0 0
        %2152 = vmatpush1.bf16.xpose.msra.mxu0 0
        %2153 = vmatprep.mubr.bf16.mxu0 0
        %2154 = vmatmul.mubr.bf16.gmra.mrb[0].mxu0 %v2116
        %v2155 = vpop.f32.mrb[0].mxu0
        %v2156 = vadd.f32 %v2056, %v2155
        %v2157 = vpop.f32.mrb[0].mxu0
        %v2158 = vpop.f32.mrb[0].mxu0
        %v2159 = vadd.f32 %v2057, %v2158
        %v2160 = vpop.f32.mrb[0].mxu0
        %2161 = vdwg.mxu0
        %2163 = vrot.lane.b32.xlu0 %v2053, 104
        %v2164 = vpop.permute.xlu0 %2163
        %2165 = vrot.lane.b32.xlu0 %v2053, 72
        %v2166 = vpop.permute.xlu0 %2165
        %v2168 = vsel %vm476, %v2164, 0
        %v2171 = vsel %vm476, %v2166, 0
        %2173 = vmatprep.subr.bf16.mxu0 0
        %2174 = vmatpush1.bf16.xpose.msra.mxu0 %v2171
        %2175 = vmatprep.subr.bf16.mxu0 0
        %2176 = vmatpush1.bf16.xpose.msra.mxu0 0
        %2177 = vmatprep.subr.bf16.mxu0 0
        %2178 = vmatpush1.bf16.xpose.msra.mxu0 0
        %2179 = vmatprep.subr.bf16.mxu0 0
        %2180 = vmatpush1.bf16.xpose.msra.mxu0 0
        %2181 = vmatprep.subr.bf16.mxu0 0
        %2182 = vmatpush1.bf16.xpose.msra.mxu0 0
        %2183 = vmatprep.subr.bf16.mxu0 0
        %2184 = vmatpush1.bf16.xpose.msra.mxu0 0
        %2185 = vmatprep.subr.bf16.mxu0 0
        %2186 = vmatpush1.bf16.xpose.msra.mxu0 0
        %2187 = vmatprep.subr.bf16.mxu0 0
        %2188 = vmatpush1.bf16.xpose.msra.mxu0 0
        %2189 = vmatprep.subr.bf16.mxu0 0
        %2190 = vmatpush1.bf16.xpose.msra.mxu0 0
        %2191 = vmatprep.subr.bf16.mxu0 0
        %2192 = vmatpush1.bf16.xpose.msra.mxu0 0
        %2193 = vmatprep.subr.bf16.mxu0 0
        %2194 = vmatpush1.bf16.xpose.msra.mxu0 0
        %2195 = vmatprep.subr.bf16.mxu0 0
        %2196 = vmatpush1.bf16.xpose.msra.mxu0 0
        %2197 = vmatprep.subr.bf16.mxu0 0
        %2198 = vmatpush1.bf16.xpose.msra.mxu0 0
        %2199 = vmatprep.subr.bf16.mxu0 0
        %2200 = vmatpush1.bf16.xpose.msra.mxu0 0
        %2201 = vmatprep.subr.bf16.mxu0 0
        %2202 = vmatpush1.bf16.xpose.msra.mxu0 0
        %2203 = vmatprep.subr.bf16.mxu0 0
        %2204 = vmatpush1.bf16.xpose.msra.mxu0 0
        %2205 = vmatprep.mubr.bf16.mxu0 0
        %2206 = vmatmul.mubr.bf16.gmra.mrb[0].mxu0 %v2168
        %v2207 = vpop.f32.mrb[0].mxu0
        %v2208 = vadd.f32 %v2056, %v2207
        %v2209 = vpop.f32.mrb[0].mxu0
        %v2210 = vpop.f32.mrb[0].mxu0
        %v2211 = vadd.f32 %v2057, %v2210
        %v2212 = vpop.f32.mrb[0].mxu0
        %2213 = vdwg.mxu0
        %2215 = vrot.lane.b32.xlu0 %v2054, 104
        %v2216 = vpop.permute.xlu0 %2215
        %2217 = vrot.lane.b32.xlu0 %v2054, 72
        %v2218 = vpop.permute.xlu0 %2217
        %v2220 = vsel %vm476, %v2216, 0
        %v2223 = vsel %vm476, %v2218, 0
        %2225 = vmatprep.subr.bf16.mxu0 0
        %2226 = vmatpush1.bf16.xpose.msra.mxu0 %v2223
        %2227 = vmatprep.subr.bf16.mxu0 0
        %2228 = vmatpush1.bf16.xpose.msra.mxu0 0
        %2229 = vmatprep.subr.bf16.mxu0 0
        %2230 = vmatpush1.bf16.xpose.msra.mxu0 0
        %2231 = vmatprep.subr.bf16.mxu0 0
        %2232 = vmatpush1.bf16.xpose.msra.mxu0 0
        %2233 = vmatprep.subr.bf16.mxu0 0
        %2234 = vmatpush1.bf16.xpose.msra.mxu0 0
        %2235 = vmatprep.subr.bf16.mxu0 0
        %2236 = vmatpush1.bf16.xpose.msra.mxu0 0
        %2237 = vmatprep.subr.bf16.mxu0 0
        %2238 = vmatpush1.bf16.xpose.msra.mxu0 0
        %2239 = vmatprep.subr.bf16.mxu0 0
        %2240 = vmatpush1.bf16.xpose.msra.mxu0 0
        %2241 = vmatprep.subr.bf16.mxu0 0
        %2242 = vmatpush1.bf16.xpose.msra.mxu0 0
        %2243 = vmatprep.subr.bf16.mxu0 0
        %2244 = vmatpush1.bf16.xpose.msra.mxu0 0
        %2245 = vmatprep.subr.bf16.mxu0 0
        %2246 = vmatpush1.bf16.xpose.msra.mxu0 0
        %2247 = vmatprep.subr.bf16.mxu0 0
        %2248 = vmatpush1.bf16.xpose.msra.mxu0 0
        %2249 = vmatprep.subr.bf16.mxu0 0
        %2250 = vmatpush1.bf16.xpose.msra.mxu0 0
        %2251 = vmatprep.subr.bf16.mxu0 0
        %2252 = vmatpush1.bf16.xpose.msra.mxu0 0
        %2253 = vmatprep.subr.bf16.mxu0 0
        %2254 = vmatpush1.bf16.xpose.msra.mxu0 0
        %2255 = vmatprep.subr.bf16.mxu0 0
        %2256 = vmatpush1.bf16.xpose.msra.mxu0 0
        %2257 = vmatprep.mubr.bf16.mxu0 0
        %2258 = vmatmul.mubr.bf16.gmra.mrb[0].mxu0 %v2220
        %v2259 = vpop.f32.mrb[0].mxu0
        %v2260 = vadd.f32 %v2056, %v2259
        %v2261 = vpop.f32.mrb[0].mxu0
        %v2262 = vpop.f32.mrb[0].mxu0
        %v2263 = vadd.f32 %v2057, %v2262
        %v2264 = vpop.f32.mrb[0].mxu0
        %2265 = vdwg.mxu0
        %v2266 = vld [vmem:[#allocation9] sm:$0xff]
        %v2267 = vld [vmem:[#allocation9 + $0x8] sm:$0xff]
        %v2268 = vld [vmem:[#allocation9 + $0x10] sm:$0xff]
        %v2269 = vld [vmem:[#allocation9 + $0x18] sm:$0xff]
        %v2270 = vld [vmem:[#allocation9 + $0x20] sm:$0xff]
        %v2271 = vld [vmem:[#allocation9 + $0x28] sm:$0xff]
        %v2272 = vld [vmem:[#allocation9 + $0x30] sm:$0xff]
        %v2273 = vld [vmem:[#allocation9 + $0x38] sm:$0xff]
        %v2274 = vadd.f32 %v2104, %v2266
        %v2275 = vadd.f32 %v2107, %v2267
        %v2276 = vadd.f32 %v2156, %v2268
        %v2277 = vadd.f32 %v2159, %v2269
        %v2278 = vadd.f32 %v2208, %v2270
        %v2279 = vadd.f32 %v2211, %v2271
        %v2280 = vadd.f32 %v2260, %v2272
        %v2281 = vadd.f32 %v2263, %v2273
        %v2282 = vsel %vm690, %v2274, -inf
        %2283 = vmax.xlane.f32.xlu0 %v2282
        %v2284 = vpop.xlane.xlu0 %2283
        %v2285 = vsel %vm690, %v2275, -inf
        %2286 = vmax.xlane.f32.xlu0 %v2285
        %v2287 = vpop.xlane.xlu0 %2286
        %v2288 = vsel %vm690, %v2276, -inf
        %2289 = vmax.xlane.f32.xlu0 %v2288
        %v2290 = vpop.xlane.xlu0 %2289
        %v2291 = vsel %vm690, %v2277, -inf
        %2292 = vmax.xlane.f32.xlu0 %v2291
        %v2293 = vpop.xlane.xlu0 %2292
        %v2294 = vsel %vm690, %v2278, -inf
        %2295 = vmax.xlane.f32.xlu0 %v2294
        %v2296 = vpop.xlane.xlu0 %2295
        %v2297 = vsel %vm690, %v2279, -inf
        %2298 = vmax.xlane.f32.xlu0 %v2297
        %v2299 = vpop.xlane.xlu0 %2298
        %v2300 = vsel %vm690, %v2280, -inf
        %2301 = vmax.xlane.f32.xlu0 %v2300
        %v2302 = vpop.xlane.xlu0 %2301
        %v2303 = vsel %vm690, %v2281, -inf
        %2304 = vmax.xlane.f32.xlu0 %v2303
        %v2305 = vpop.xlane.xlu0 %2304
        %v2306 = vsub.f32 %v2274, %v2284
        %v2307 = vsub.f32 %v2275, %v2287
        %v2308 = vsub.f32 %v2276, %v2290
        %v2309 = vsub.f32 %v2277, %v2293
        %v2310 = vsub.f32 %v2278, %v2296
        %v2311 = vsub.f32 %v2279, %v2299
        %v2312 = vsub.f32 %v2280, %v2302
        %v2313 = vsub.f32 %v2281, %v2305
        %v2314 = vmul.f32 %v2306, 1.442695
        %v2315 = vpow.pop %v2314
        %v2316 = vmul.f32 %v2307, 1.442695
        %v2317 = vpow.pop %v2316
        %v2318 = vmul.f32 %v2308, 1.442695
        %v2319 = vpow.pop %v2318
        %v2320 = vmul.f32 %v2309, 1.442695
        %v2321 = vpow.pop %v2320
        %v2322 = vmul.f32 %v2310, 1.442695
        %v2323 = vpow.pop %v2322
        %v2324 = vmul.f32 %v2311, 1.442695
        %v2325 = vpow.pop %v2324
        %v2326 = vmul.f32 %v2312, 1.442695
        %v2327 = vpow.pop %v2326
        %v2328 = vmul.f32 %v2313, 1.442695
        %v2329 = vpow.pop %v2328
        %v2330 = vsel %vm690, %v2315, 0.0
        %2331 = vadd.xlane.f32.xlu0 %v2330
        %v2332 = vpop.xlane.xlu0 %2331
        %v2333 = vsel %vm690, %v2317, 0.0
        %2334 = vadd.xlane.f32.xlu0 %v2333
        %v2335 = vpop.xlane.xlu0 %2334
        %v2336 = vsel %vm690, %v2319, 0.0
        %2337 = vadd.xlane.f32.xlu0 %v2336
        %v2338 = vpop.xlane.xlu0 %2337
        %v2339 = vsel %vm690, %v2321, 0.0
        %2340 = vadd.xlane.f32.xlu0 %v2339
        %v2341 = vpop.xlane.xlu0 %2340
        %v2342 = vsel %vm690, %v2323, 0.0
        %2343 = vadd.xlane.f32.xlu0 %v2342
        %v2344 = vpop.xlane.xlu0 %2343
        %v2345 = vsel %vm690, %v2325, 0.0
        %2346 = vadd.xlane.f32.xlu0 %v2345
        %v2347 = vpop.xlane.xlu0 %2346
        %v2348 = vsel %vm690, %v2327, 0.0
        %2349 = vadd.xlane.f32.xlu0 %v2348
        %v2350 = vpop.xlane.xlu0 %2349
        %v2351 = vsel %vm690, %v2329, 0.0
        %2352 = vadd.xlane.f32.xlu0 %v2351
        %v2353 = vpop.xlane.xlu0 %2352
        %v2354 = vrcp.pop %v2332
        %v2355 = vrcp.pop %v2335
        %v2356 = vrcp.pop %v2338
        %v2357 = vrcp.pop %v2341
        %v2358 = vrcp.pop %v2344
        %v2359 = vrcp.pop %v2347
        %v2360 = vrcp.pop %v2350
        %v2361 = vrcp.pop %v2353
        %v2362 = vmul.f32 %v2315, %v2354
        %v2363 = vmul.f32 %v2317, %v2355
        %v2364 = vmul.f32 %v2319, %v2356
        %v2365 = vmul.f32 %v2321, %v2357
        %v2366 = vmul.f32 %v2323, %v2358
        %v2367 = vmul.f32 %v2325, %v2359
        %v2368 = vmul.f32 %v2327, %v2360
        %v2369 = vmul.f32 %v2329, %v2361
        %v2370 = vpack.c.bf16 %v2363, %v2362
        %v2371 = vpack.c.bf16 %v2365, %v2364
        %v2372 = vpack.c.bf16 %v2367, %v2366
        %v2373 = vpack.c.bf16 %v2369, %v2368
        %2374 = vrot.lane.b32.xlu0 %v2051, 40
        %v2375 = vpop.permute.xlu0 %2374
        %v2378 = vsel %vm690, %v2370, 0
        %2380 = vmatprep.subr.bf16.mxu0 0
        %2381 = vmatpush1.bf16.msra.mxu0 %v2375
        %2382 = vmatprep.subr.bf16.mxu0 0
        %2383 = vmatpush1.bf16.msra.mxu0 0
        %2384 = vmatprep.subr.bf16.mxu0 0
        %2385 = vmatpush1.bf16.msra.mxu0 0
        %2386 = vmatprep.subr.bf16.mxu0 0
        %2387 = vmatpush1.bf16.msra.mxu0 0
        %2388 = vmatprep.subr.bf16.mxu0 0
        %2389 = vmatpush1.bf16.msra.mxu0 0
        %2390 = vmatprep.subr.bf16.mxu0 0
        %2391 = vmatpush1.bf16.msra.mxu0 0
        %2392 = vmatprep.subr.bf16.mxu0 0
        %2393 = vmatpush1.bf16.msra.mxu0 0
        %2394 = vmatprep.subr.bf16.mxu0 0
        %2395 = vmatpush1.bf16.msra.mxu0 0
        %2396 = vmatprep.subr.bf16.mxu0 0
        %2397 = vmatpush1.bf16.msra.mxu0 0
        %2398 = vmatprep.subr.bf16.mxu0 0
        %2399 = vmatpush1.bf16.msra.mxu0 0
        %2400 = vmatprep.subr.bf16.mxu0 0
        %2401 = vmatpush1.bf16.msra.mxu0 0
        %2402 = vmatprep.subr.bf16.mxu0 0
        %2403 = vmatpush1.bf16.msra.mxu0 0
        %2404 = vmatprep.subr.bf16.mxu0 0
        %2405 = vmatpush1.bf16.msra.mxu0 0
        %2406 = vmatprep.subr.bf16.mxu0 0
        %2407 = vmatpush1.bf16.msra.mxu0 0
        %2408 = vmatprep.subr.bf16.mxu0 0
        %2409 = vmatpush1.bf16.msra.mxu0 0
        %2410 = vmatprep.subr.bf16.mxu0 0
        %2411 = vmatpush1.bf16.msra.mxu0 0
        %2412 = vmatprep.mubr.bf16.mxu0 0
        %2413 = vmatmul.mubr.bf16.gmra.mrb[0].mxu0 %v2378
        %v2414 = vpop.f32.mrb[0].mxu0
        %v2415 = vadd.f32 0.0, %v2414
        %v2416 = vpop.f32.mrb[0].mxu0
        %v2417 = vpop.f32.mrb[0].mxu0
        %v2418 = vadd.f32 0.0, %v2417
        %v2419 = vpop.f32.mrb[0].mxu0
        %2420 = vdwg.mxu0
        %2421 = vrot.lane.b32.xlu0 %v2052, 40
        %v2422 = vpop.permute.xlu0 %2421
        %v2425 = vsel %vm690, %v2371, 0
        %2427 = vmatprep.subr.bf16.mxu0 0
        %2428 = vmatpush1.bf16.msra.mxu0 %v2422
        %2429 = vmatprep.subr.bf16.mxu0 0
        %2430 = vmatpush1.bf16.msra.mxu0 0
        %2431 = vmatprep.subr.bf16.mxu0 0
        %2432 = vmatpush1.bf16.msra.mxu0 0
        %2433 = vmatprep.subr.bf16.mxu0 0
        %2434 = vmatpush1.bf16.msra.mxu0 0
        %2435 = vmatprep.subr.bf16.mxu0 0
        %2436 = vmatpush1.bf16.msra.mxu0 0
        %2437 = vmatprep.subr.bf16.mxu0 0
        %2438 = vmatpush1.bf16.msra.mxu0 0
        %2439 = vmatprep.subr.bf16.mxu0 0
        %2440 = vmatpush1.bf16.msra.mxu0 0
        %2441 = vmatprep.subr.bf16.mxu0 0
        %2442 = vmatpush1.bf16.msra.mxu0 0
        %2443 = vmatprep.subr.bf16.mxu0 0
        %2444 = vmatpush1.bf16.msra.mxu0 0
        %2445 = vmatprep.subr.bf16.mxu0 0
        %2446 = vmatpush1.bf16.msra.mxu0 0
        %2447 = vmatprep.subr.bf16.mxu0 0
        %2448 = vmatpush1.bf16.msra.mxu0 0
        %2449 = vmatprep.subr.bf16.mxu0 0
        %2450 = vmatpush1.bf16.msra.mxu0 0
        %2451 = vmatprep.subr.bf16.mxu0 0
        %2452 = vmatpush1.bf16.msra.mxu0 0
        %2453 = vmatprep.subr.bf16.mxu0 0
        %2454 = vmatpush1.bf16.msra.mxu0 0
        %2455 = vmatprep.subr.bf16.mxu0 0
        %2456 = vmatpush1.bf16.msra.mxu0 0
        %2457 = vmatprep.subr.bf16.mxu0 0
        %2458 = vmatpush1.bf16.msra.mxu0 0
        %2459 = vmatprep.mubr.bf16.mxu0 0
        %2460 = vmatmul.mubr.bf16.gmra.mrb[0].mxu0 %v2425
        %v2461 = vpop.f32.mrb[0].mxu0
        %v2462 = vadd.f32 0.0, %v2461
        %v2463 = vpop.f32.mrb[0].mxu0
        %v2464 = vpop.f32.mrb[0].mxu0
        %v2465 = vadd.f32 0.0, %v2464
        %v2466 = vpop.f32.mrb[0].mxu0
        %2467 = vdwg.mxu0
        %2468 = vrot.lane.b32.xlu0 %v2053, 40
        %v2469 = vpop.permute.xlu0 %2468
        %v2472 = vsel %vm690, %v2372, 0
        %2474 = vmatprep.subr.bf16.mxu0 0
        %2475 = vmatpush1.bf16.msra.mxu0 %v2469
        %2476 = vmatprep.subr.bf16.mxu0 0
        %2477 = vmatpush1.bf16.msra.mxu0 0
        %2478 = vmatprep.subr.bf16.mxu0 0
        %2479 = vmatpush1.bf16.msra.mxu0 0
        %2480 = vmatprep.subr.bf16.mxu0 0
        %2481 = vmatpush1.bf16.msra.mxu0 0
        %2482 = vmatprep.subr.bf16.mxu0 0
        %2483 = vmatpush1.bf16.msra.mxu0 0
        %2484 = vmatprep.subr.bf16.mxu0 0
        %2485 = vmatpush1.bf16.msra.mxu0 0
        %2486 = vmatprep.subr.bf16.mxu0 0
        %2487 = vmatpush1.bf16.msra.mxu0 0
        %2488 = vmatprep.subr.bf16.mxu0 0
        %2489 = vmatpush1.bf16.msra.mxu0 0
        %2490 = vmatprep.subr.bf16.mxu0 0
        %2491 = vmatpush1.bf16.msra.mxu0 0
        %2492 = vmatprep.subr.bf16.mxu0 0
        %2493 = vmatpush1.bf16.msra.mxu0 0
        %2494 = vmatprep.subr.bf16.mxu0 0
        %2495 = vmatpush1.bf16.msra.mxu0 0
        %2496 = vmatprep.subr.bf16.mxu0 0
        %2497 = vmatpush1.bf16.msra.mxu0 0
        %2498 = vmatprep.subr.bf16.mxu0 0
        %2499 = vmatpush1.bf16.msra.mxu0 0
        %2500 = vmatprep.subr.bf16.mxu0 0
        %2501 = vmatpush1.bf16.msra.mxu0 0
        %2502 = vmatprep.subr.bf16.mxu0 0
        %2503 = vmatpush1.bf16.msra.mxu0 0
        %2504 = vmatprep.subr.bf16.mxu0 0
        %2505 = vmatpush1.bf16.msra.mxu0 0
        %2506 = vmatprep.mubr.bf16.mxu0 0
        %2507 = vmatmul.mubr.bf16.gmra.mrb[0].mxu0 %v2472
        %v2508 = vpop.f32.mrb[0].mxu0
        %v2509 = vadd.f32 0.0, %v2508
        %v2510 = vpop.f32.mrb[0].mxu0
        %v2511 = vpop.f32.mrb[0].mxu0
        %v2512 = vadd.f32 0.0, %v2511
        %v2513 = vpop.f32.mrb[0].mxu0
        %2514 = vdwg.mxu0
        %2515 = vrot.lane.b32.xlu0 %v2054, 40
        %v2516 = vpop.permute.xlu0 %2515
        %v2519 = vsel %vm690, %v2373, 0
        %2521 = vmatprep.subr.bf16.mxu0 0
        %2522 = vmatpush1.bf16.msra.mxu0 %v2516
        %2523 = vmatprep.subr.bf16.mxu0 0
        %2524 = vmatpush1.bf16.msra.mxu0 0
        %2525 = vmatprep.subr.bf16.mxu0 0
        %2526 = vmatpush1.bf16.msra.mxu0 0
        %2527 = vmatprep.subr.bf16.mxu0 0
        %2528 = vmatpush1.bf16.msra.mxu0 0
        %2529 = vmatprep.subr.bf16.mxu0 0
        %2530 = vmatpush1.bf16.msra.mxu0 0
        %2531 = vmatprep.subr.bf16.mxu0 0
        %2532 = vmatpush1.bf16.msra.mxu0 0
        %2533 = vmatprep.subr.bf16.mxu0 0
        %2534 = vmatpush1.bf16.msra.mxu0 0
        %2535 = vmatprep.subr.bf16.mxu0 0
        %2536 = vmatpush1.bf16.msra.mxu0 0
        %2537 = vmatprep.subr.bf16.mxu0 0
        %2538 = vmatpush1.bf16.msra.mxu0 0
        %2539 = vmatprep.subr.bf16.mxu0 0
        %2540 = vmatpush1.bf16.msra.mxu0 0
        %2541 = vmatprep.subr.bf16.mxu0 0
        %2542 = vmatpush1.bf16.msra.mxu0 0
        %2543 = vmatprep.subr.bf16.mxu0 0
        %2544 = vmatpush1.bf16.msra.mxu0 0
        %2545 = vmatprep.subr.bf16.mxu0 0
        %2546 = vmatpush1.bf16.msra.mxu0 0
        %2547 = vmatprep.subr.bf16.mxu0 0
        %2548 = vmatpush1.bf16.msra.mxu0 0
        %2549 = vmatprep.subr.bf16.mxu0 0
        %2550 = vmatpush1.bf16.msra.mxu0 0
        %2551 = vmatprep.subr.bf16.mxu0 0
        %2552 = vmatpush1.bf16.msra.mxu0 0
        %2553 = vmatprep.mubr.bf16.mxu0 0
        %2554 = vmatmul.mubr.bf16.gmra.mrb[0].mxu0 %v2519
        %v2555 = vpop.f32.mrb[0].mxu0
        %v2556 = vadd.f32 0.0, %v2555
        %v2557 = vpop.f32.mrb[0].mxu0
        %v2558 = vpop.f32.mrb[0].mxu0
        %v2559 = vadd.f32 0.0, %v2558
        %v2560 = vpop.f32.mrb[0].mxu0
        %2561 = vdwg.mxu0
        %v2562 = vpack.c.bf16 %v2418, %v2415
        %v2563 = vpack.c.bf16 %v2465, %v2462
        %v2564 = vpack.c.bf16 %v2512, %v2509
        %v2565 = vpack.c.bf16 %v2559, %v2556
        %2570 = vrot.lane.b32.xlu0 %v2562, 24
        %v2571 = vpop.permute.xlu0 %2570
        %2572 = vrot.lane.b32.xlu0 %v2563, 24
        %v2573 = vpop.permute.xlu0 %2572
        %2574 = vrot.lane.b32.xlu0 %v2564, 24
        %v2575 = vpop.permute.xlu0 %2574
        %2576 = vrot.lane.b32.xlu0 %v2565, 24
        %v2577 = vpop.permute.xlu0 %2576
        %vm2582 = vcmask 261312
        %2583 = vst.msk [vmem:[#allocation3] sm:$0xff] %vm2582, %v2571
        %2584 = vst.msk [vmem:[#allocation3 + $0x8] sm:$0xff] %vm2582, %v2573
        %2585 = vst.msk [vmem:[#allocation3 + $0x10] sm:$0xff] %vm2582, %v2575
        %2586 = vst.msk [vmem:[#allocation3 + $0x18] sm:$0xff] %vm2582, %v2577
        %v2587 = vld [vmem:[#allocation3] sm:$0xff]
        %v2588 = vld [vmem:[#allocation3 + $0x8] sm:$0xff]
        %v2589 = vld [vmem:[#allocation3 + $0x10] sm:$0xff]
        %v2590 = vld [vmem:[#allocation3 + $0x18] sm:$0xff]
        %v2591 = vld [vmem:[%s5] sm:$0xf]
        %v2592 = vld [vmem:[%s5 + $0x4] sm:$0xf]
        %v2593 = vld [vmem:[%s5 + $0x8] sm:$0xf]
        %v2594 = vld [vmem:[%s5 + $0xc] sm:$0xf]
        %v2595 = vld [vmem:[%s6] sm:$0x1]
        %v2597 = vlaneseq
        %v2598 = vshrl.u32 %v2597, 7
        %v2599 = vsub.s32 0, %v2598
        %v2600 = vrot.slane %v2595, %v2599
        %v2606 = vunpack.c.l.b16 %v2591
        %v2607 = vunpack.c.l.b16 %v2592
        %v2608 = vunpack.c.l.b16 %v2593
        %v2609 = vunpack.c.l.b16 %v2594
        %v2610 = vpack.c.b16 %v2607, %v2606
        %v2611 = vpack.c.b16 %v2609, %v2608
        %v2615 = vsel %vm380, %v2587, 0
        %v2618 = vsel %vm380, %v2588, 0
        %v2621 = vsel %vm380, %v2589, 0
        %v2624 = vsel %vm380, %v2590, 0
        %2626 = vmatprep.subr.bf16.mxu0 0
        %2627 = vmatpush1.bf16.msra.mxu0 %v2610
        %2628 = vmatprep.subr.bf16.mxu0 0
        %2629 = vmatpush1.bf16.msra.mxu0 %v2611
        %2630 = vmatprep.subr.bf16.mxu0 0
        %2631 = vmatpush1.bf16.msra.mxu0 0
        %2632 = vmatprep.subr.bf16.mxu0 0
        %2633 = vmatpush1.bf16.msra.mxu0 0
        %2634 = vmatprep.subr.bf16.mxu0 0
        %2635 = vmatpush1.bf16.msra.mxu0 0
        %2636 = vmatprep.subr.bf16.mxu0 0
        %2637 = vmatpush1.bf16.msra.mxu0 0
        %2638 = vmatprep.subr.bf16.mxu0 0
        %2639 = vmatpush1.bf16.msra.mxu0 0
        %2640 = vmatprep.subr.bf16.mxu0 0
        %2641 = vmatpush1.bf16.msra.mxu0 0
        %2642 = vmatprep.subr.bf16.mxu0 0
        %2643 = vmatpush1.bf16.msra.mxu0 0
        %2644 = vmatprep.subr.bf16.mxu0 0
        %2645 = vmatpush1.bf16.msra.mxu0 0
        %2646 = vmatprep.subr.bf16.mxu0 0
        %2647 = vmatpush1.bf16.msra.mxu0 0
        %2648 = vmatprep.subr.bf16.mxu0 0
        %2649 = vmatpush1.bf16.msra.mxu0 0
        %2650 = vmatprep.subr.bf16.mxu0 0
        %2651 = vmatpush1.bf16.msra.mxu0 0
        %2652 = vmatprep.subr.bf16.mxu0 0
        %2653 = vmatpush1.bf16.msra.mxu0 0
        %2654 = vmatprep.subr.bf16.mxu0 0
        %2655 = vmatpush1.bf16.msra.mxu0 0
        %2656 = vmatprep.subr.bf16.mxu0 0
        %2657 = vmatpush1.bf16.msra.mxu0 0
        %2658 = vmatprep.mubr.bf16.mxu0 0
        %2659 = vmatmul.mubr.bf16.gmra.mrb[0].mxu0 %v2615
        %v2660 = vpop.f32.mrb[0].mxu0
        %v2661 = vadd.f32 %v2600, %v2660
        %v2662 = vpop.f32.mrb[0].mxu0
        %v2663 = vpop.f32.mrb[0].mxu0
        %v2664 = vadd.f32 %v2600, %v2663
        %v2665 = vpop.f32.mrb[0].mxu0
        %2666 = vmatprep.mubr.bf16.mxu0 0
        %2667 = vmatmul.mubr.bf16.gmra.mrb[0].mxu0 %v2618
        %v2668 = vpop.f32.mrb[0].mxu0
        %v2669 = vadd.f32 %v2600, %v2668
        %v2670 = vpop.f32.mrb[0].mxu0
        %v2671 = vpop.f32.mrb[0].mxu0
        %v2672 = vadd.f32 %v2600, %v2671
        %v2673 = vpop.f32.mrb[0].mxu0
        %2674 = vmatprep.mubr.bf16.mxu0 0
        %2675 = vmatmul.mubr.bf16.gmra.mrb[0].mxu0 %v2621
        %v2676 = vpop.f32.mrb[0].mxu0
        %v2677 = vadd.f32 %v2600, %v2676
        %v2678 = vpop.f32.mrb[0].mxu0
        %v2679 = vpop.f32.mrb[0].mxu0
        %v2680 = vadd.f32 %v2600, %v2679
        %v2681 = vpop.f32.mrb[0].mxu0
        %2682 = vmatprep.mubr.bf16.mxu0 0
        %2683 = vmatmul.mubr.bf16.gmra.mrb[0].mxu0 %v2624
        %v2684 = vpop.f32.mrb[0].mxu0
        %v2685 = vadd.f32 %v2600, %v2684
        %v2686 = vpop.f32.mrb[0].mxu0
        %v2687 = vpop.f32.mrb[0].mxu0
        %v2688 = vadd.f32 %v2600, %v2687
        %v2689 = vpop.f32.mrb[0].mxu0
        %2690 = vdwg.mxu0
        %2691 = vst.msk [vmem:[%s341] sm:$0xff] %vm380, %v2661
        %2692 = vst.msk [vmem:[%s341 + $0x8] sm:$0xff] %vm380, %v2664
        %2693 = vst.msk [vmem:[%s341 + $0x10] sm:$0xff] %vm380, %v2669
        %2694 = vst.msk [vmem:[%s341 + $0x18] sm:$0xff] %vm380, %v2672
        %2695 = vst.msk [vmem:[%s341 + $0x20] sm:$0xff] %vm380, %v2677
        %2696 = vst.msk [vmem:[%s341 + $0x28] sm:$0xff] %vm380, %v2680
        %2697 = vst.msk [vmem:[%s341 + $0x30] sm:$0xff] %vm380, %v2685
        %2698 = vst.msk [vmem:[%s341 + $0x38] sm:$0xff] %vm380, %v2688
        %s2699 = sand.u32 %s186, 1
        %s2700 = scalar_lea.sflag [#allocation6], %s2699
        %s2701 = sand.u32 %s186, 1
        %s2702 = smul.addr %s2701, 64
        %s2703 = scalar_lea.vmem [#allocation12], %s2702
        // Predicated region
        $region65: #{tpu_custom_call.1} parent=47 // pred_check
          %p2704 = pneg %p196
        $region66: #{tpu_custom_call.1} parent=47 // pred_check_branch
          %2706 = sbr.rel (%p2704) target = $region68
        $region67: #{tpu_custom_call.1} parent=47 // pred_region
          %s2707 = smul.u32 4, %s26
          %s2709 = ssub.s32 1024, 1024
          %2710 = vsyncadd %s2700, %s2709
          %s2711 = smul.addr %s2707, 2
          %s2712 = smul.addr %s2711, 128
          %s2713 = scalar_lea.hbm %s7, %s2712
          %s2714 = sshll.u32 %s2703, 4
          %s2715 = int_to_ptr.vmem [resolvable:$true] %s2714
          %2720 = dma.vmem_to_hbm [thread:$0]  %s2715, 1024, %s2713, %s2700, 128, 128, 8
        $region68: #{tpu_custom_call.1} parent=47 // pred_fallthru
          _
      $region48: #{tpu_custom_call.1} parent=5 // pred_fallthru
        _
      %p2721 = scmp.le.s32.totalorder 2, %s21
      // Predicated region
      $region69: #{tpu_custom_call.1} parent=5 // pred_check
        %p2722 = pneg %p2721
      $region70: #{tpu_custom_call.1} parent=5 // pred_check_branch
        %2724 = sbr.rel (%p2722) target = $region72
      $region71: #{tpu_custom_call.1} parent=5 // pred_region
        %s2725 = ssub.s32 %s21, 2
        // Predicated region
        $region73: #{tpu_custom_call.1} parent=71 // pred_check
          %p2726 = pneg %p202
        $region74: #{tpu_custom_call.1} parent=71 // pred_check_branch
          %2728 = sbr.rel (%p2726) target = $region76
        $region75: #{tpu_custom_call.1} parent=71 // pred_region
          %s2729 = sand.u32 %s187, 1
          %s2730 = scalar_lea.sflag [#allocation6], %s2729
          %s2731 = sand.u32 %s187, 1
          %s2732 = smul.addr %s2731, 64
          %s2733 = scalar_lea.vmem [#allocation12], %s2732
          %2734 = dma.done %s2730, 1024
        $region76: #{tpu_custom_call.1} parent=71 // pred_fallthru
          _
      $region72: #{tpu_custom_call.1} parent=5 // pred_fallthru
        _
    $region6: #{tpu_custom_call.1} parent=1 // loop_footer
      %s25 = sadd.s32 1, %s21
    $region7: #{tpu_custom_call.1} parent=1 // loop_footer_branch
      %20 = sbr.rel target = $region3
    $region8: #{tpu_custom_call.1} parent=1 // loop_exit
      _
    %2735 = vsyncpa [#allocation5], 1
    %s2736 = scalar_lea.sflag [#allocation5], 1
    %2737 = vsyncpa %s2736, 1
    %2738 = vsyncpa [#allocation8], 1
    %2739 = vsyncpa [#allocation11], 1
    %2740 = vsyncpa [#allocation6], 1
    %s2741 = scalar_lea.sflag [#allocation6], 1
    %2742 = vsyncpa %s2741, 1

// kernel: tpu_custom_call.1
$region0: #{tpu_custom_call.1}
  #allocation0 [shape = 'u32[]', space=smem, size = 0x4, offset = 0x4, fixed_abs, tag = 'smem constant byte address 0x4 - core index']
  #allocation1 [shape = 'u32[144,128]{1,0:T(1,128)}', space=vmem, size = 0x12000, scoped, tag = 'internal scratch']
  #allocation2 [shape = 'bf16[4,16,96]{2,1,0:T(16,128)(2,1)}', space=vmem, size = 0x4000, scoped, tag = 'scratch operand']
  #allocation3 [shape = 'bf16[4,16,32]{2,1,0:T(16,128)(2,1)}', space=vmem, size = 0x4000, scoped, tag = 'scratch operand']
  %s0 = inlined_call_operand.hbm [shape: f32[16,16,32], index: 0, kind: input, shape index: {}]
  %s1 = inlined_call_operand.hbm [shape: f32[4,16,16], index: 1, kind: input, shape index: {}]
  %s2 = inlined_call_operand.hbm [shape: f32[4,16,16], index: 2, kind: input, shape index: {}]
  %s3 = inlined_call_operand.hbm [shape: bf16[32,96], index: 3, kind: input, shape index: {}]
  %s4 = inlined_call_operand.vmem [shape: f32[1,96], index: 4, kind: input, shape index: {}]
  %s5 = inlined_call_operand.vmem [shape: bf16[32,32], index: 5, kind: input, shape index: {}]
  %s6 = inlined_call_operand.vmem [shape: f32[1,32], index: 6, kind: input, shape index: {}]
  %s7 = inlined_call_operand.hbm [shape: f32[16,16,32], index: 7, kind: output, shape index: {}]
  %s8 = sld [smem:[#allocation0]]
  $region77: #{tpu_custom_call.1} parent=0
    _
  %s10 = ssub.s32 1, %s8
  %s11 = scalar_select 0, %s10, %s8
  $region1: #{tpu_custom_call.1} parent=0
    #allocation4 [shape = 'u8[65536]{0}', space=vmem, size = 0x10000, scoped, tag = 'input window, operand 0']
    #allocation5 [shape = 's32[2]{0}', space=sflag, size = 0x8, scoped, tag = 'scoped memory for tpu_custom_call.1']
    #allocation6 [shape = 's32[2]{0}', space=sflag, size = 0x8, scoped, tag = 'scoped memory for tpu_custom_call.1']
    #allocation7 [shape = 'u8[32768]{0}', space=vmem, size = 0x8000, scoped, tag = 'input window, operand 1, single buffered']
    #allocation8 [shape = 's32[1]{0}', space=sflag, size = 0x4, scoped, tag = 'scoped memory for tpu_custom_call.1']
    #allocation9 [shape = 'u8[32768]{0}', space=vmem, size = 0x8000, scoped, tag = 'input window, operand 2, single buffered']
    #allocation10 [shape = 'u8[8192]{0}', space=vmem, size = 0x2000, scoped, tag = 'input window, operand 3, single buffered']
    #allocation11 [shape = 's32[1]{0}', space=sflag, size = 0x4, scoped, tag = 'scoped memory for tpu_custom_call.1']
    #allocation12 [shape = 'u8[65536]{0}', space=vmem, size = 0x10000, scoped, tag = 'output window, operand 0']
    %12 = vsyncpa [#allocation5], 0
    %s13 = scalar_lea.sflag [#allocation5], 1
    %14 = vsyncpa %s13, 0
    %15 = vsyncpa [#allocation8], 0
    %16 = vsyncpa [#allocation11], 0
    %17 = vsyncpa [#allocation6], 0
    %s18 = scalar_lea.sflag [#allocation6], 1
    %19 = vsyncpa %s18, 0
    loop: start=0, step=1, limit=6
    $region2: #{tpu_custom_call.1} parent=1 // loop_pre_header
      _
    $region3: #{tpu_custom_call.1} parent=1 // loop_header
      %s21 = sphi 0, %s25
      %p22 = scmp.ge.s32.totalorder %s21, 6
      %s31 = sphi 0, %s33
      %s34 = sphi 0, %s31
      %s35 = sphi 0, %s34
      %s51 = sphi 0, %s35
      %s55 = sphi 0, %s55
      %s57 = sphi 0, %s55
      %s58 = sphi 0, %s57
      %s72 = sphi 0, %s58
      %s76 = sphi 0, %s76
      %s78 = sphi 0, %s76
      %s79 = sphi 0, %s78
      %s93 = sphi 0, %s79
      %s97 = sphi 0, %s97
      %s99 = sphi 0, %s97
      %s100 = sphi 0, %s99
      %s114 = sphi 0, %s100
      %s118 = sphi 0, %s118
      %s120 = sphi 0, %s118
      %s121 = sphi 0, %s120
      %s135 = sphi 0, %s121
      %s139 = sphi 0, %s139
      %s141 = sphi 0, %s139
      %s142 = sphi 0, %s141
      %s156 = sphi 0, %s142
      %s160 = sphi 0, %s160
      %s162 = sphi 0, %s160
      %s163 = sphi 0, %s162
      %s177 = sphi 0, %s163
      %s183 = sphi 0, %s185
      %s186 = sphi 0, %s183
      %s187 = sphi 0, %s186
      %s203 = sphi 0, %s187
    $region4: #{tpu_custom_call.1} parent=1 // loop_header_branch
      %24 = sbr.rel (%p22) target = $region8
    $region5: #{tpu_custom_call.1} parent=1 // loop_body
      %s26 = ssub.s32 %s21, 1
      %s27 = ssub.s32 %s21, 2
      %s28 = sadd.s32 %s21, 1
      %s29 = ssub.s32 %s21, %s28
      %p30 = scmp.eq.s32.totalorder %s29, 0
      %s32 = sadd.s32 %s31, 1
      %s33 = scalar_select %p30, %s31, %s32
      %p36 = pneg %p30
      %p37 = scmp.eq.s32.totalorder %s21, 3
      %p38 = por %p36, %p37
      %p39 = scmp.ne.s32.totalorder %s31, %s34
      %p40 = scmp.eq.s32.totalorder %s21, 0
      %p41 = por %p39, %p40
      %p42 = scmp.ne.s32.totalorder %s31, %s34
      %p43 = scmp.eq.s32.totalorder %s26, 3
      %p44 = por %p42, %p43
      %p45 = scmp.ne.s32.totalorder %s34, %s35
      %p46 = scmp.eq.s32.totalorder %s26, 0
      %p47 = por %p45, %p46
      %p48 = scmp.ne.s32.totalorder %s34, %s35
      %p49 = scmp.eq.s32.totalorder %s27, 3
      %p50 = por %p48, %p49
      %p52 = scmp.ne.s32.totalorder %s35, %s51
      %p53 = scmp.eq.s32.totalorder %s27, 0
      %p54 = por %p52, %p53
      %s56 = sadd.s32 %s55, 1
      %p59 = scmp.eq.s32.totalorder %s21, 3
      %p60 = scmp.ne.s32.totalorder %s55, %s57
      %p61 = scmp.eq.s32.totalorder %s21, 0
      %p62 = por %p60, %p61
      %p63 = scmp.ne.s32.totalorder %s55, %s57
      %p64 = scmp.eq.s32.totalorder %s26, 3
      %p65 = por %p63, %p64
      %p66 = scmp.ne.s32.totalorder %s57, %s58
      %p67 = scmp.eq.s32.totalorder %s26, 0
      %p68 = por %p66, %p67
      %p69 = scmp.ne.s32.totalorder %s57, %s58
      %p70 = scmp.eq.s32.totalorder %s27, 3
      %p71 = por %p69, %p70
      %p73 = scmp.ne.s32.totalorder %s58, %s72
      %p74 = scmp.eq.s32.totalorder %s27, 0
      %p75 = por %p73, %p74
      %s77 = sadd.s32 %s76, 1
      %p80 = scmp.eq.s32.totalorder %s21, 3
      %p81 = scmp.ne.s32.totalorder %s76, %s78
      %p82 = scmp.eq.s32.totalorder %s21, 0
      %p83 = por %p81, %p82
      %p84 = scmp.ne.s32.totalorder %s76, %s78
      %p85 = scmp.eq.s32.totalorder %s26, 3
      %p86 = por %p84, %p85
      %p87 = scmp.ne.s32.totalorder %s78, %s79
      %p88 = scmp.eq.s32.totalorder %s26, 0
      %p89 = por %p87, %p88
      %p90 = scmp.ne.s32.totalorder %s78, %s79
      %p91 = scmp.eq.s32.totalorder %s27, 3
      %p92 = por %p90, %p91
      %p94 = scmp.ne.s32.totalorder %s79, %s93
      %p95 = scmp.eq.s32.totalorder %s27, 0
      %p96 = por %p94, %p95
      %s98 = sadd.s32 %s97, 1
      %p101 = scmp.eq.s32.totalorder %s21, 3
      %p102 = scmp.ne.s32.totalorder %s97, %s99
      %p103 = scmp.eq.s32.totalorder %s21, 0
      %p104 = por %p102, %p103
      %p105 = scmp.ne.s32.totalorder %s97, %s99
      %p106 = scmp.eq.s32.totalorder %s26, 3
      %p107 = por %p105, %p106
      %p108 = scmp.ne.s32.totalorder %s99, %s100
      %p109 = scmp.eq.s32.totalorder %s26, 0
      %p110 = por %p108, %p109
      %p111 = scmp.ne.s32.totalorder %s99, %s100
      %p112 = scmp.eq.s32.totalorder %s27, 3
      %p113 = por %p111, %p112
      %p115 = scmp.ne.s32.totalorder %s100, %s114
      %p116 = scmp.eq.s32.totalorder %s27, 0
      %p117 = por %p115, %p116
      %s119 = sadd.s32 %s118, 1
      %p122 = scmp.eq.s32.totalorder %s21, 3
      %p123 = scmp.ne.s32.totalorder %s118, %s120
      %p124 = scmp.eq.s32.totalorder %s21, 0
      %p125 = por %p123, %p124
      %p126 = scmp.ne.s32.totalorder %s118, %s120
      %p127 = scmp.eq.s32.totalorder %s26, 3
      %p128 = por %p126, %p127
      %p129 = scmp.ne.s32.totalorder %s120, %s121
      %p130 = scmp.eq.s32.totalorder %s26, 0
      %p131 = por %p129, %p130
      %p132 = scmp.ne.s32.totalorder %s120, %s121
      %p133 = scmp.eq.s32.totalorder %s27, 3
      %p134 = por %p132, %p133
      %p136 = scmp.ne.s32.totalorder %s121, %s135
      %p137 = scmp.eq.s32.totalorder %s27, 0
      %p138 = por %p136, %p137
      %s140 = sadd.s32 %s139, 1
      %p143 = scmp.eq.s32.totalorder %s21, 3
      %p144 = scmp.ne.s32.totalorder %s139, %s141
      %p145 = scmp.eq.s32.totalorder %s21, 0
      %p146 = por %p144, %p145
      %p147 = scmp.ne.s32.totalorder %s139, %s141
      %p148 = scmp.eq.s32.totalorder %s26, 3
      %p149 = por %p147, %p148
      %p150 = scmp.ne.s32.totalorder %s141, %s142
      %p151 = scmp.eq.s32.totalorder %s26, 0
      %p152 = por %p150, %p151
      %p153 = scmp.ne.s32.totalorder %s141, %s142
      %p154 = scmp.eq.s32.totalorder %s27, 3
      %p155 = por %p153, %p154
      %p157 = scmp.ne.s32.totalorder %s142, %s156
      %p158 = scmp.eq.s32.totalorder %s27, 0
      %p159 = por %p157, %p158
      %s161 = sadd.s32 %s160, 1
      %p164 = scmp.eq.s32.totalorder %s21, 3
      %p165 = scmp.ne.s32.totalorder %s160, %s162
      %p166 = scmp.eq.s32.totalorder %s21, 0
      %p167 = por %p165, %p166
      %p168 = scmp.ne.s32.totalorder %s160, %s162
      %p169 = scmp.eq.s32.totalorder %s26, 3
      %p170 = por %p168, %p169
      %p171 = scmp.ne.s32.totalorder %s162, %s163
      %p172 = scmp.eq.s32.totalorder %s26, 0
      %p173 = por %p171, %p172
      %p174 = scmp.ne.s32.totalorder %s162, %s163
      %p175 = scmp.eq.s32.totalorder %s27, 3
      %p176 = por %p174, %p175
      %p178 = scmp.ne.s32.totalorder %s163, %s177
      %p179 = scmp.eq.s32.totalorder %s27, 0
      %p180 = por %p178, %p179
      %s181 = ssub.s32 %s21, %s28
      %p182 = scmp.eq.s32.totalorder %s181, 0
      %s184 = sadd.s32 %s183, 1
      %s185 = scalar_select %p182, %s183, %s184
      %p188 = pneg %p182
      %p189 = scmp.eq.s32.totalorder %s21, 3
      %p190 = por %p188, %p189
      %p191 = scmp.ne.s32.totalorder %s183, %s186
      %p192 = scmp.eq.s32.totalorder %s21, 0
      %p193 = por %p191, %p192
      %p194 = scmp.ne.s32.totalorder %s183, %s186
      %p195 = scmp.eq.s32.totalorder %s26, 3
      %p196 = por %p194, %p195
      %p197 = scmp.ne.s32.totalorder %s186, %s187
      %p198 = scmp.eq.s32.totalorder %s26, 0
      %p199 = por %p197, %p198
      %p200 = scmp.ne.s32.totalorder %s186, %s187
      %p201 = scmp.eq.s32.totalorder %s27, 3
      %p202 = por %p200, %p201
      %p204 = scmp.ne.s32.totalorder %s187, %s203
      %p205 = scmp.eq.s32.totalorder %s27, 0
      %p206 = por %p204, %p205
      %p207 = scmp.le.s32.totalorder 1, %s21
      %p208 = scmp.lt.s32.totalorder %s21, 5
      %p209 = pnand %p207, %p208
      %p210 = pneg %p209
      // Predicated region
      $region9: #{tpu_custom_call.1} parent=5 // pred_check
        _
      $region10: #{tpu_custom_call.1} parent=5 // pred_check_branch
        %212 = sbr.rel (%p209) target = $region12
      $region11: #{tpu_custom_call.1} parent=5 // pred_region
        %s213 = ssub.s32 %s21, 1
        // Predicated region
        $region13: #{tpu_custom_call.1} parent=11 // pred_check
          %p214 = pneg %p68
        $region14: #{tpu_custom_call.1} parent=11 // pred_check_branch
          %216 = sbr.rel (%p214) target = $region16
        $region15: #{tpu_custom_call.1} parent=11 // pred_region
          %s218 = ssub.s32 1024, 1024
          %219 = vsyncadd [#allocation8], %s218
          %s220 = sshll.u32 [#allocation7], 4
          %s221 = int_to_ptr.vmem [resolvable:$true] %s220
          %226 = dma.hbm_to_vmem [thread:$0]  %s1, 1024, %s221, [#allocation8], 128, 128, 8
        $region16: #{tpu_custom_call.1} parent=11 // pred_fallthru
          _
        // Predicated region
        $region17: #{tpu_custom_call.1} parent=11 // pred_check
          %p227 = pneg %p89
        $region18: #{tpu_custom_call.1} parent=11 // pred_check_branch
          %229 = sbr.rel (%p227) target = $region20
        $region19: #{tpu_custom_call.1} parent=11 // pred_region
          %s231 = ssub.s32 1024, 1024
          %232 = vsyncadd [#allocation8], %s231
          %s233 = sshll.u32 [#allocation9], 4
          %s234 = int_to_ptr.vmem [resolvable:$true] %s233
          %239 = dma.hbm_to_vmem [thread:$0]  %s2, 1024, %s234, [#allocation8], 128, 128, 8
        $region20: #{tpu_custom_call.1} parent=11 // pred_fallthru
          _
        // Predicated region
        $region21: #{tpu_custom_call.1} parent=11 // pred_check
          %p240 = pneg %p110
        $region22: #{tpu_custom_call.1} parent=11 // pred_check_branch
          %242 = sbr.rel (%p240) target = $region24
        $region23: #{tpu_custom_call.1} parent=11 // pred_region
          %s244 = ssub.s32 256, 256
          %245 = vsyncadd [#allocation11], %s244
          %s246 = sshll.u32 [#allocation10], 4
          %s247 = int_to_ptr.vmem [resolvable:$true] %s246
          %252 = dma.hbm_to_vmem [thread:$0]  %s3, 256, %s247, [#allocation11], 64, 64, 4
        $region24: #{tpu_custom_call.1} parent=11 // pred_fallthru
          _
        // Predicated region
        $region25: #{tpu_custom_call.1} parent=11 // pred_check
          %p253 = pneg %p131
        $region26: #{tpu_custom_call.1} parent=11 // pred_check_branch
          %255 = sbr.rel (%p253) target = $region28
        $region27: #{tpu_custom_call.1} parent=11 // pred_region
          _
        $region28: #{tpu_custom_call.1} parent=11 // pred_fallthru
          _
        // Predicated region
        $region29: #{tpu_custom_call.1} parent=11 // pred_check
          %p256 = pneg %p152
        $region30: #{tpu_custom_call.1} parent=11 // pred_check_branch
          %258 = sbr.rel (%p256) target = $region32
        $region31: #{tpu_custom_call.1} parent=11 // pred_region
          _
        $region32: #{tpu_custom_call.1} parent=11 // pred_fallthru
          _
        // Predicated region
        $region33: #{tpu_custom_call.1} parent=11 // pred_check
          %p259 = pneg %p173
        $region34: #{tpu_custom_call.1} parent=11 // pred_check_branch
          %261 = sbr.rel (%p259) target = $region36
        $region35: #{tpu_custom_call.1} parent=11 // pred_region
          _
        $region36: #{tpu_custom_call.1} parent=11 // pred_fallthru
          _
      $region12: #{tpu_custom_call.1} parent=5 // pred_fallthru
        _
      %p262 = scmp.lt.s32.totalorder %s21, 4
      // Predicated region
      $region37: #{tpu_custom_call.1} parent=5 // pred_check
        %p263 = pneg %p262
      $region38: #{tpu_custom_call.1} parent=5 // pred_check_branch
        %265 = sbr.rel (%p263) target = $region40
      $region39: #{tpu_custom_call.1} parent=5 // pred_region
        // Predicated region
        $region41: #{tpu_custom_call.1} parent=39 // pred_check
          %p266 = pneg %p41
        $region42: #{tpu_custom_call.1} parent=39 // pred_check_branch
          %268 = sbr.rel (%p266) target = $region44
        $region43: #{tpu_custom_call.1} parent=39 // pred_region
          %s269 = sand.u32 %s31, 1
          %s270 = scalar_lea.sflag [#allocation5], %s269
          %s271 = sand.u32 %s31, 1
          %s272 = smul.addr %s271, 64
          %s273 = scalar_lea.vmem [#allocation4], %s272
          %s274 = smul.u32 4, %s21
          %s276 = ssub.s32 1024, 1024
          %277 = vsyncadd %s270, %s276
          %s278 = smul.addr %s274, 2
          %s279 = smul.addr %s278, 128
          %s280 = scalar_lea.hbm %s0, %s279
          %s281 = sshll.u32 %s273, 4
          %s282 = int_to_ptr.vmem [resolvable:$true] %s281
          %287 = dma.hbm_to_vmem [thread:$0]  %s280, 1024, %s282, %s270, 128, 128, 8
        $region44: #{tpu_custom_call.1} parent=39 // pred_fallthru
          _
      $region40: #{tpu_custom_call.1} parent=5 // pred_fallthru
        _
      %p288 = scmp.le.s32.totalorder 1, %s21
      %p289 = scmp.lt.s32.totalorder %s21, 5
      %p290 = pnand %p288, %p289
      %p291 = pneg %p290
      // Predicated region
      $region45: #{tpu_custom_call.1} parent=5 // pred_check
        _
      $region46: #{tpu_custom_call.1} parent=5 // pred_check_branch
        %293 = sbr.rel (%p290) target = $region48
      $region47: #{tpu_custom_call.1} parent=5 // pred_region
        %s294 = ssub.s32 %s21, 1
        %s295 = sand.u32 %s34, 1
        %s296 = scalar_lea.sflag [#allocation5], %s295
        %s297 = sand.u32 %s34, 1
        %s298 = smul.addr %s297, 64
        %s299 = scalar_lea.vmem [#allocation4], %s298
        // Predicated region
        $region49: #{tpu_custom_call.1} parent=47 // pred_check
          %p300 = pneg %p47
        $region50: #{tpu_custom_call.1} parent=47 // pred_check_branch
          %302 = sbr.rel (%p300) target = $region52
        $region51: #{tpu_custom_call.1} parent=47 // pred_region
          %303 = dma.done %s296, 1024
        $region52: #{tpu_custom_call.1} parent=47 // pred_fallthru
          _
        // Predicated region
        $region53: #{tpu_custom_call.1} parent=47 // pred_check
          %p304 = pneg %p68
        $region54: #{tpu_custom_call.1} parent=47 // pred_check_branch
          %306 = sbr.rel (%p304) target = $region56
        $region55: #{tpu_custom_call.1} parent=47 // pred_region
          %307 = dma.done [#allocation8], 1024
        $region56: #{tpu_custom_call.1} parent=47 // pred_fallthru
          _
        // Predicated region
        $region57: #{tpu_custom_call.1} parent=47 // pred_check
          %p308 = pneg %p89
        $region58: #{tpu_custom_call.1} parent=47 // pred_check_branch
          %310 = sbr.rel (%p308) target = $region60
        $region59: #{tpu_custom_call.1} parent=47 // pred_region
          %311 = dma.done [#allocation8], 1024
        $region60: #{tpu_custom_call.1} parent=47 // pred_fallthru
          _
        // Predicated region
        $region61: #{tpu_custom_call.1} parent=47 // pred_check
          %p312 = pneg %p110
        $region62: #{tpu_custom_call.1} parent=47 // pred_check_branch
          %314 = sbr.rel (%p312) target = $region64
        $region63: #{tpu_custom_call.1} parent=47 // pred_region
          %315 = dma.done [#allocation11], 256
        $region64: #{tpu_custom_call.1} parent=47 // pred_fallthru
          _
        %s316 = sand.u32 %s34, 1
        %s317 = scalar_lea.sflag [#allocation5], %s316
        %s318 = sand.u32 %s34, 1
        %s319 = smul.addr %s318, 64
        %s320 = scalar_lea.vmem [#allocation4], %s319
        %p321 = pneg %p47
        %p322 = pneg %p44
        %p323 = pneg %p68
        %p324 = pneg %p65
        %p325 = pneg %p89
        %p326 = pneg %p86
        %p327 = pneg %p110
        %p328 = pneg %p107
        %p329 = pneg %p131
        %p330 = pneg %p128
        %p331 = pneg %p152
        %p332 = pneg %p149
        %p333 = pneg %p173
        %p334 = pneg %p170
        %p335 = pneg %p199
        %p336 = pneg %p196
        %s337 = sand.u32 %s186, 1
        %s338 = scalar_lea.sflag [#allocation6], %s337
        %s339 = sand.u32 %s186, 1
        %s340 = smul.addr %s339, 64
        %s341 = scalar_lea.vmem [#allocation12], %s340
        %s342 = smul.u32 4, %s26
        %s343 = smul.u32 4, %s26
        %v345 = vld [vmem:[%s299] sm:$0xff]
        %v346 = vld [vmem:[%s299 + $0x8] sm:$0xff]
        %v347 = vld [vmem:[%s299 + $0x10] sm:$0xff]
        %v348 = vld [vmem:[%s299 + $0x18] sm:$0xff]
        %v349 = vld [vmem:[%s299 + $0x20] sm:$0xff]
        %v350 = vld [vmem:[%s299 + $0x28] sm:$0xff]
        %v351 = vld [vmem:[%s299 + $0x30] sm:$0xff]
        %v352 = vld [vmem:[%s299 + $0x38] sm:$0xff]
        %v353 = vpack.c.bf16 %v346, %v345
        %v354 = vpack.c.bf16 %v348, %v347
        %v355 = vpack.c.bf16 %v350, %v349
        %v356 = vpack.c.bf16 %v352, %v351
        %v357 = vld [vmem:[#allocation10] sm:$0xf]
        %v358 = vld [vmem:[#allocation10 + $0x4] sm:$0xf]
        %v359 = vld [vmem:[#allocation10 + $0x8] sm:$0xf]
        %v360 = vld [vmem:[#allocation10 + $0xc] sm:$0xf]
        %v361 = vld [vmem:[%s4] sm:$0x1]
        %v363 = vlaneseq
        %v364 = vshrl.u32 %v363, 7
        %v365 = vsub.s32 0, %v364
        %v366 = vrot.slane %v361, %v365
        %v372 = vunpack.c.l.b16 %v357
        %v373 = vunpack.c.l.b16 %v358
        %v374 = vunpack.c.l.b16 %v359
        %v375 = vunpack.c.l.b16 %v360
        %v376 = vpack.c.b16 %v373, %v372
        %v377 = vpack.c.b16 %v375, %v374
        %vm380 = vcmask 261120
        %v382 = vsel %vm380, %v353, 0
        %v385 = vsel %vm380, %v354, 0
        %v388 = vsel %vm380, %v355, 0
        %v391 = vsel %vm380, %v356, 0
        %393 = vmatprep.subr.bf16.mxu0 0
        %394 = vmatpush1.bf16.msra.mxu0 %v376
        %395 = vmatprep.subr.bf16.mxu0 0
        %396 = vmatpush1.bf16.msra.mxu0 %v377
        %397 = vmatprep.subr.bf16.mxu0 0
        %398 = vmatpush1.bf16.msra.mxu0 0
        %399 = vmatprep.subr.bf16.mxu0 0
        %400 = vmatpush1.bf16.msra.mxu0 0
        %401 = vmatprep.subr.bf16.mxu0 0
        %402 = vmatpush1.bf16.msra.mxu0 0
        %403 = vmatprep.subr.bf16.mxu0 0
        %404 = vmatpush1.bf16.msra.mxu0 0
        %405 = vmatprep.subr.bf16.mxu0 0
        %406 = vmatpush1.bf16.msra.mxu0 0
        %407 = vmatprep.subr.bf16.mxu0 0
        %408 = vmatpush1.bf16.msra.mxu0 0
        %409 = vmatprep.subr.bf16.mxu0 0
        %410 = vmatpush1.bf16.msra.mxu0 0
        %411 = vmatprep.subr.bf16.mxu0 0
        %412 = vmatpush1.bf16.msra.mxu0 0
        %413 = vmatprep.subr.bf16.mxu0 0
        %414 = vmatpush1.bf16.msra.mxu0 0
        %415 = vmatprep.subr.bf16.mxu0 0
        %416 = vmatpush1.bf16.msra.mxu0 0
        %417 = vmatprep.subr.bf16.mxu0 0
        %418 = vmatpush1.bf16.msra.mxu0 0
        %419 = vmatprep.subr.bf16.mxu0 0
        %420 = vmatpush1.bf16.msra.mxu0 0
        %421 = vmatprep.subr.bf16.mxu0 0
        %422 = vmatpush1.bf16.msra.mxu0 0
        %423 = vmatprep.subr.bf16.mxu0 0
        %424 = vmatpush1.bf16.msra.mxu0 0
        %425 = vmatprep.mubr.bf16.mxu0 0
        %426 = vmatmul.mubr.bf16.gmra.mrb[0].mxu0 %v382
        %v427 = vpop.f32.mrb[0].mxu0
        %v428 = vadd.f32 %v366, %v427
        %v429 = vpop.f32.mrb[0].mxu0
        %v430 = vpop.f32.mrb[0].mxu0
        %v431 = vadd.f32 %v366, %v430
        %v432 = vpop.f32.mrb[0].mxu0
        %433 = vmatprep.mubr.bf16.mxu0 0
        %434 = vmatmul.mubr.bf16.gmra.mrb[0].mxu0 %v385
        %v435 = vpop.f32.mrb[0].mxu0
        %v436 = vadd.f32 %v366, %v435
        %v437 = vpop.f32.mrb[0].mxu0
        %v438 = vpop.f32.mrb[0].mxu0
        %v439 = vadd.f32 %v366, %v438
        %v440 = vpop.f32.mrb[0].mxu0
        %441 = vmatprep.mubr.bf16.mxu0 0
        %442 = vmatmul.mubr.bf16.gmra.mrb[0].mxu0 %v388
        %v443 = vpop.f32.mrb[0].mxu0
        %v444 = vadd.f32 %v366, %v443
        %v445 = vpop.f32.mrb[0].mxu0
        %v446 = vpop.f32.mrb[0].mxu0
        %v447 = vadd.f32 %v366, %v446
        %v448 = vpop.f32.mrb[0].mxu0
        %449 = vmatprep.mubr.bf16.mxu0 0
        %450 = vmatmul.mubr.bf16.gmra.mrb[0].mxu0 %v391
        %v451 = vpop.f32.mrb[0].mxu0
        %v452 = vadd.f32 %v366, %v451
        %v453 = vpop.f32.mrb[0].mxu0
        %v454 = vpop.f32.mrb[0].mxu0
        %v455 = vadd.f32 %v366, %v454
        %v456 = vpop.f32.mrb[0].mxu0
        %457 = vdwg.mxu0
        %v458 = vpack.c.bf16 %v431, %v428
        %v459 = vpack.c.bf16 %v439, %v436
        %v460 = vpack.c.bf16 %v447, %v444
        %v461 = vpack.c.bf16 %v455, %v452
        %vm462 = vcmask 785408
        %463 = vst.msk [vmem:[#allocation2] sm:$0xff] %vm462, %v458
        %464 = vst.msk [vmem:[#allocation2 + $0x8] sm:$0xff] %vm462, %v459
        %465 = vst.msk [vmem:[#allocation2 + $0x10] sm:$0xff] %vm462, %v460
        %466 = vst.msk [vmem:[#allocation2 + $0x18] sm:$0xff] %vm462, %v461
        %v467 = vld [vmem:[#allocation2] sm:$0xff]
        %v468 = vld [vmem:[#allocation2 + $0x8] sm:$0xff]
        %v469 = vld [vmem:[#allocation2 + $0x10] sm:$0xff]
        %v470 = vld [vmem:[#allocation2 + $0x18] sm:$0xff]
        %v471 = vld [vmem:[#allocation7] sm:$0xff]
        %v472 = vld [vmem:[#allocation7 + $0x8] sm:$0xff]
        %474 = vrot.lane.b32.xlu0 %v467, 96
        %v475 = vpop.permute.xlu0 %474
        %vm476 = vcmask 64512
        %v478 = vsel %vm476, %v467, 0
        %v481 = vsel %vm476, %v475, 0
        %483 = vmatprep.subr.bf16.mxu0 0
        %484 = vmatpush1.bf16.xpose.msra.mxu0 %v481
        %485 = vmatprep.subr.bf16.mxu0 0
        %486 = vmatpush1.bf16.xpose.msra.mxu0 0
        %487 = vmatprep.subr.bf16.mxu0 0
        %488 = vmatpush1.bf16.xpose.msra.mxu0 0
        %489 = vmatprep.subr.bf16.mxu0 0
        %490 = vmatpush1.bf16.xpose.msra.mxu0 0
        %491 = vmatprep.subr.bf16.mxu0 0
        %492 = vmatpush1.bf16.xpose.msra.mxu0 0
        %493 = vmatprep.subr.bf16.mxu0 0
        %494 = vmatpush1.bf16.xpose.msra.mxu0 0
        %495 = vmatprep.subr.bf16.mxu0 0
        %496 = vmatpush1.bf16.xpose.msra.mxu0 0
        %497 = vmatprep.subr.bf16.mxu0 0
        %498 = vmatpush1.bf16.xpose.msra.mxu0 0
        %499 = vmatprep.subr.bf16.mxu0 0
        %500 = vmatpush1.bf16.xpose.msra.mxu0 0
        %501 = vmatprep.subr.bf16.mxu0 0
        %502 = vmatpush1.bf16.xpose.msra.mxu0 0
        %503 = vmatprep.subr.bf16.mxu0 0
        %504 = vmatpush1.bf16.xpose.msra.mxu0 0
        %505 = vmatprep.subr.bf16.mxu0 0
        %506 = vmatpush1.bf16.xpose.msra.mxu0 0
        %507 = vmatprep.subr.bf16.mxu0 0
        %508 = vmatpush1.bf16.xpose.msra.mxu0 0
        %509 = vmatprep.subr.bf16.mxu0 0
        %510 = vmatpush1.bf16.xpose.msra.mxu0 0
        %511 = vmatprep.subr.bf16.mxu0 0
        %512 = vmatpush1.bf16.xpose.msra.mxu0 0
        %513 = vmatprep.subr.bf16.mxu0 0
        %514 = vmatpush1.bf16.xpose.msra.mxu0 0
        %515 = vmatprep.mubr.bf16.mxu0 0
        %516 = vmatmul.mubr.bf16.gmra.mrb[0].mxu0 %v478
        %v517 = vpop.f32.mrb[0].mxu0
        %v518 = vadd.f32 %v471, %v517
        %v519 = vpop.f32.mrb[0].mxu0
        %v520 = vpop.f32.mrb[0].mxu0
        %v521 = vadd.f32 %v472, %v520
        %v522 = vpop.f32.mrb[0].mxu0
        %523 = vdwg.mxu0
        %525 = vrot.lane.b32.xlu0 %v468, 96
        %v526 = vpop.permute.xlu0 %525
        %v528 = vsel %vm476, %v468, 0
        %v531 = vsel %vm476, %v526, 0
        %533 = vmatprep.subr.bf16.mxu0 0
        %534 = vmatpush1.bf16.xpose.msra.mxu0 %v531
        %535 = vmatprep.subr.bf16.mxu0 0
        %536 = vmatpush1.bf16.xpose.msra.mxu0 0
        %537 = vmatprep.subr.bf16.mxu0 0
        %538 = vmatpush1.bf16.xpose.msra.mxu0 0
        %539 = vmatprep.subr.bf16.mxu0 0
        %540 = vmatpush1.bf16.xpose.msra.mxu0 0
        %541 = vmatprep.subr.bf16.mxu0 0
        %542 = vmatpush1.bf16.xpose.msra.mxu0 0
        %543 = vmatprep.subr.bf16.mxu0 0
        %544 = vmatpush1.bf16.xpose.msra.mxu0 0
        %545 = vmatprep.subr.bf16.mxu0 0
        %546 = vmatpush1.bf16.xpose.msra.mxu0 0
        %547 = vmatprep.subr.bf16.mxu0 0
        %548 = vmatpush1.bf16.xpose.msra.mxu0 0
        %549 = vmatprep.subr.bf16.mxu0 0
        %550 = vmatpush1.bf16.xpose.msra.mxu0 0
        %551 = vmatprep.subr.bf16.mxu0 0
        %552 = vmatpush1.bf16.xpose.msra.mxu0 0
        %553 = vmatprep.subr.bf16.mxu0 0
        %554 = vmatpush1.bf16.xpose.msra.mxu0 0
        %555 = vmatprep.subr.bf16.mxu0 0
        %556 = vmatpush1.bf16.xpose.msra.mxu0 0
        %557 = vmatprep.subr.bf16.mxu0 0
        %558 = vmatpush1.bf16.xpose.msra.mxu0 0
        %559 = vmatprep.subr.bf16.mxu0 0
        %560 = vmatpush1.bf16.xpose.msra.mxu0 0
        %561 = vmatprep.subr.bf16.mxu0 0
        %562 = vmatpush1.bf16.xpose.msra.mxu0 0
        %563 = vmatprep.subr.bf16.mxu0 0
        %564 = vmatpush1.bf16.xpose.msra.mxu0 0
        %565 = vmatprep.mubr.bf16.mxu0 0
        %566 = vmatmul.mubr.bf16.gmra.mrb[0].mxu0 %v528
        %v567 = vpop.f32.mrb[0].mxu0
        %v568 = vadd.f32 %v471, %v567
        %v569 = vpop.f32.mrb[0].mxu0
        %v570 = vpop.f32.mrb[0].mxu0
        %v571 = vadd.f32 %v472, %v570
        %v572 = vpop.f32.mrb[0].mxu0
        %573 = vdwg.mxu0
        %575 = vrot.lane.b32.xlu0 %v469, 96
        %v576 = vpop.permute.xlu0 %575
        %v578 = vsel %vm476, %v469, 0
        %v581 = vsel %vm476, %v576, 0
        %583 = vmatprep.subr.bf16.mxu0 0
        %584 = vmatpush1.bf16.xpose.msra.mxu0 %v581
        %585 = vmatprep.subr.bf16.mxu0 0
        %586 = vmatpush1.bf16.xpose.msra.mxu0 0
        %587 = vmatprep.subr.bf16.mxu0 0
        %588 = vmatpush1.bf16.xpose.msra.mxu0 0
        %589 = vmatprep.subr.bf16.mxu0 0
        %590 = vmatpush1.bf16.xpose.msra.mxu0 0
        %591 = vmatprep.subr.bf16.mxu0 0
        %592 = vmatpush1.bf16.xpose.msra.mxu0 0
        %593 = vmatprep.subr.bf16.mxu0 0
        %594 = vmatpush1.bf16.xpose.msra.mxu0 0
        %595 = vmatprep.subr.bf16.mxu0 0
        %596 = vmatpush1.bf16.xpose.msra.mxu0 0
        %597 = vmatprep.subr.bf16.mxu0 0
        %598 = vmatpush1.bf16.xpose.msra.mxu0 0
        %599 = vmatprep.subr.bf16.mxu0 0
        %600 = vmatpush1.bf16.xpose.msra.mxu0 0
        %601 = vmatprep.subr.bf16.mxu0 0
        %602 = vmatpush1.bf16.xpose.msra.mxu0 0
        %603 = vmatprep.subr.bf16.mxu0 0
        %604 = vmatpush1.bf16.xpose.msra.mxu0 0
        %605 = vmatprep.subr.bf16.mxu0 0
        %606 = vmatpush1.bf16.xpose.msra.mxu0 0
        %607 = vmatprep.subr.bf16.mxu0 0
        %608 = vmatpush1.bf16.xpose.msra.mxu0 0
        %609 = vmatprep.subr.bf16.mxu0 0
        %610 = vmatpush1.bf16.xpose.msra.mxu0 0
        %611 = vmatprep.subr.bf16.mxu0 0
        %612 = vmatpush1.bf16.xpose.msra.mxu0 0
        %613 = vmatprep.subr.bf16.mxu0 0
        %614 = vmatpush1.bf16.xpose.msra.mxu0 0
        %615 = vmatprep.mubr.bf16.mxu0 0
        %616 = vmatmul.mubr.bf16.gmra.mrb[0].mxu0 %v578
        %v617 = vpop.f32.mrb[0].mxu0
        %v618 = vadd.f32 %v471, %v617
        %v619 = vpop.f32.mrb[0].mxu0
        %v620 = vpop.f32.mrb[0].mxu0
        %v621 = vadd.f32 %v472, %v620
        %v622 = vpop.f32.mrb[0].mxu0
        %623 = vdwg.mxu0
        %625 = vrot.lane.b32.xlu0 %v470, 96
        %v626 = vpop.permute.xlu0 %625
        %v628 = vsel %vm476, %v470, 0
        %v631 = vsel %vm476, %v626, 0
        %633 = vmatprep.subr.bf16.mxu0 0
        %634 = vmatpush1.bf16.xpose.msra.mxu0 %v631
        %635 = vmatprep.subr.bf16.mxu0 0
        %636 = vmatpush1.bf16.xpose.msra.mxu0 0
        %637 = vmatprep.subr.bf16.mxu0 0
        %638 = vmatpush1.bf16.xpose.msra.mxu0 0
        %639 = vmatprep.subr.bf16.mxu0 0
        %640 = vmatpush1.bf16.xpose.msra.mxu0 0
        %641 = vmatprep.subr.bf16.mxu0 0
        %642 = vmatpush1.bf16.xpose.msra.mxu0 0
        %643 = vmatprep.subr.bf16.mxu0 0
        %644 = vmatpush1.bf16.xpose.msra.mxu0 0
        %645 = vmatprep.subr.bf16.mxu0 0
        %646 = vmatpush1.bf16.xpose.msra.mxu0 0
        %647 = vmatprep.subr.bf16.mxu0 0
        %648 = vmatpush1.bf16.xpose.msra.mxu0 0
        %649 = vmatprep.subr.bf16.mxu0 0
        %650 = vmatpush1.bf16.xpose.msra.mxu0 0
        %651 = vmatprep.subr.bf16.mxu0 0
        %652 = vmatpush1.bf16.xpose.msra.mxu0 0
        %653 = vmatprep.subr.bf16.mxu0 0
        %654 = vmatpush1.bf16.xpose.msra.mxu0 0
        %655 = vmatprep.subr.bf16.mxu0 0
        %656 = vmatpush1.bf16.xpose.msra.mxu0 0
        %657 = vmatprep.subr.bf16.mxu0 0
        %658 = vmatpush1.bf16.xpose.msra.mxu0 0
        %659 = vmatprep.subr.bf16.mxu0 0
        %660 = vmatpush1.bf16.xpose.msra.mxu0 0
        %661 = vmatprep.subr.bf16.mxu0 0
        %662 = vmatpush1.bf16.xpose.msra.mxu0 0
        %663 = vmatprep.subr.bf16.mxu0 0
        %664 = vmatpush1.bf16.xpose.msra.mxu0 0
        %665 = vmatprep.mubr.bf16.mxu0 0
        %666 = vmatmul.mubr.bf16.gmra.mrb[0].mxu0 %v628
        %v667 = vpop.f32.mrb[0].mxu0
        %v668 = vadd.f32 %v471, %v667
        %v669 = vpop.f32.mrb[0].mxu0
        %v670 = vpop.f32.mrb[0].mxu0
        %v671 = vadd.f32 %v472, %v670
        %v672 = vpop.f32.mrb[0].mxu0
        %673 = vdwg.mxu0
        %v674 = vld [vmem:[#allocation9] sm:$0xff]
        %v675 = vld [vmem:[#allocation9 + $0x8] sm:$0xff]
        %v676 = vld [vmem:[#allocation9 + $0x10] sm:$0xff]
        %v677 = vld [vmem:[#allocation9 + $0x18] sm:$0xff]
        %v678 = vld [vmem:[#allocation9 + $0x20] sm:$0xff]
        %v679 = vld [vmem:[#allocation9 + $0x28] sm:$0xff]
        %v680 = vld [vmem:[#allocation9 + $0x30] sm:$0xff]
        %v681 = vld [vmem:[#allocation9 + $0x38] sm:$0xff]
        %v682 = vadd.f32 %v518, %v674
        %v683 = vadd.f32 %v521, %v675
        %v684 = vadd.f32 %v568, %v676
        %v685 = vadd.f32 %v571, %v677
        %v686 = vadd.f32 %v618, %v678
        %v687 = vadd.f32 %v621, %v679
        %v688 = vadd.f32 %v668, %v680
        %v689 = vadd.f32 %v671, %v681
        %vm690 = vcmask 130048
        %v691 = vsel %vm690, %v682, -inf
        %692 = vmax.xlane.f32.xlu0 %v691
        %v693 = vpop.xlane.xlu0 %692
        %v694 = vsel %vm690, %v683, -inf
        %695 = vmax.xlane.f32.xlu0 %v694
        %v696 = vpop.xlane.xlu0 %695
        %v697 = vsel %vm690, %v684, -inf
        %698 = vmax.xlane.f32.xlu0 %v697
        %v699 = vpop.xlane.xlu0 %698
        %v700 = vsel %vm690, %v685, -inf
        %701 = vmax.xlane.f32.xlu0 %v700
        %v702 = vpop.xlane.xlu0 %701
        %v703 = vsel %vm690, %v686, -inf
        %704 = vmax.xlane.f32.xlu0 %v703
        %v705 = vpop.xlane.xlu0 %704
        %v706 = vsel %vm690, %v687, -inf
        %707 = vmax.xlane.f32.xlu0 %v706
        %v708 = vpop.xlane.xlu0 %707
        %v709 = vsel %vm690, %v688, -inf
        %710 = vmax.xlane.f32.xlu0 %v709
        %v711 = vpop.xlane.xlu0 %710
        %v712 = vsel %vm690, %v689, -inf
        %713 = vmax.xlane.f32.xlu0 %v712
        %v714 = vpop.xlane.xlu0 %713
        %v715 = vsub.f32 %v682, %v693
        %v716 = vsub.f32 %v683, %v696
        %v717 = vsub.f32 %v684, %v699
        %v718 = vsub.f32 %v685, %v702
        %v719 = vsub.f32 %v686, %v705
        %v720 = vsub.f32 %v687, %v708
        %v721 = vsub.f32 %v688, %v711
        %v722 = vsub.f32 %v689, %v714
        %v723 = vmul.f32 %v715, 1.442695
        %v724 = vpow.pop %v723
        %v725 = vmul.f32 %v716, 1.442695
        %v726 = vpow.pop %v725
        %v727 = vmul.f32 %v717, 1.442695
        %v728 = vpow.pop %v727
        %v729 = vmul.f32 %v718, 1.442695
        %v730 = vpow.pop %v729
        %v731 = vmul.f32 %v719, 1.442695
        %v732 = vpow.pop %v731
        %v733 = vmul.f32 %v720, 1.442695
        %v734 = vpow.pop %v733
        %v735 = vmul.f32 %v721, 1.442695
        %v736 = vpow.pop %v735
        %v737 = vmul.f32 %v722, 1.442695
        %v738 = vpow.pop %v737
        %v739 = vsel %vm690, %v724, 0.0
        %740 = vadd.xlane.f32.xlu0 %v739
        %v741 = vpop.xlane.xlu0 %740
        %v742 = vsel %vm690, %v726, 0.0
        %743 = vadd.xlane.f32.xlu0 %v742
        %v744 = vpop.xlane.xlu0 %743
        %v745 = vsel %vm690, %v728, 0.0
        %746 = vadd.xlane.f32.xlu0 %v745
        %v747 = vpop.xlane.xlu0 %746
        %v748 = vsel %vm690, %v730, 0.0
        %749 = vadd.xlane.f32.xlu0 %v748
        %v750 = vpop.xlane.xlu0 %749
        %v751 = vsel %vm690, %v732, 0.0
        %752 = vadd.xlane.f32.xlu0 %v751
        %v753 = vpop.xlane.xlu0 %752
        %v754 = vsel %vm690, %v734, 0.0
        %755 = vadd.xlane.f32.xlu0 %v754
        %v756 = vpop.xlane.xlu0 %755
        %v757 = vsel %vm690, %v736, 0.0
        %758 = vadd.xlane.f32.xlu0 %v757
        %v759 = vpop.xlane.xlu0 %758
        %v760 = vsel %vm690, %v738, 0.0
        %761 = vadd.xlane.f32.xlu0 %v760
        %v762 = vpop.xlane.xlu0 %761
        %v763 = vrcp.pop %v741
        %v764 = vrcp.pop %v744
        %v765 = vrcp.pop %v747
        %v766 = vrcp.pop %v750
        %v767 = vrcp.pop %v753
        %v768 = vrcp.pop %v756
        %v769 = vrcp.pop %v759
        %v770 = vrcp.pop %v762
        %v771 = vmul.f32 %v724, %v763
        %v772 = vmul.f32 %v726, %v764
        %v773 = vmul.f32 %v728, %v765
        %v774 = vmul.f32 %v730, %v766
        %v775 = vmul.f32 %v732, %v767
        %v776 = vmul.f32 %v734, %v768
        %v777 = vmul.f32 %v736, %v769
        %v778 = vmul.f32 %v738, %v770
        %v779 = vpack.c.bf16 %v772, %v771
        %v780 = vpack.c.bf16 %v774, %v773
        %v781 = vpack.c.bf16 %v776, %v775
        %v782 = vpack.c.bf16 %v778, %v777
        %783 = vrot.lane.b32.xlu0 %v467, 64
        %v784 = vpop.permute.xlu0 %783
        %v787 = vsel %vm690, %v779, 0
        %789 = vmatprep.subr.bf16.mxu0 0
        %790 = vmatpush1.bf16.msra.mxu0 %v784
        %791 = vmatprep.subr.bf16.mxu0 0
        %792 = vmatpush1.bf16.msra.mxu0 0
        %793 = vmatprep.subr.bf16.mxu0 0
        %794 = vmatpush1.bf16.msra.mxu0 0
        %795 = vmatprep.subr.bf16.mxu0 0
        %796 = vmatpush1.bf16.msra.mxu0 0
        %797 = vmatprep.subr.bf16.mxu0 0
        %798 = vmatpush1.bf16.msra.mxu0 0
        %799 = vmatprep.subr.bf16.mxu0 0
        %800 = vmatpush1.bf16.msra.mxu0 0
        %801 = vmatprep.subr.bf16.mxu0 0
        %802 = vmatpush1.bf16.msra.mxu0 0
        %803 = vmatprep.subr.bf16.mxu0 0
        %804 = vmatpush1.bf16.msra.mxu0 0
        %805 = vmatprep.subr.bf16.mxu0 0
        %806 = vmatpush1.bf16.msra.mxu0 0
        %807 = vmatprep.subr.bf16.mxu0 0
        %808 = vmatpush1.bf16.msra.mxu0 0
        %809 = vmatprep.subr.bf16.mxu0 0
        %810 = vmatpush1.bf16.msra.mxu0 0
        %811 = vmatprep.subr.bf16.mxu0 0
        %812 = vmatpush1.bf16.msra.mxu0 0
        %813 = vmatprep.subr.bf16.mxu0 0
        %814 = vmatpush1.bf16.msra.mxu0 0
        %815 = vmatprep.subr.bf16.mxu0 0
        %816 = vmatpush1.bf16.msra.mxu0 0
        %817 = vmatprep.subr.bf16.mxu0 0
        %818 = vmatpush1.bf16.msra.mxu0 0
        %819 = vmatprep.subr.bf16.mxu0 0
        %820 = vmatpush1.bf16.msra.mxu0 0
        %821 = vmatprep.mubr.bf16.mxu0 0
        %822 = vmatmul.mubr.bf16.gmra.mrb[0].mxu0 %v787
        %v823 = vpop.f32.mrb[0].mxu0
        %v824 = vadd.f32 0.0, %v823
        %v825 = vpop.f32.mrb[0].mxu0
        %v826 = vpop.f32.mrb[0].mxu0
        %v827 = vadd.f32 0.0, %v826
        %v828 = vpop.f32.mrb[0].mxu0
        %829 = vdwg.mxu0
        %830 = vrot.lane.b32.xlu0 %v468, 64
        %v831 = vpop.permute.xlu0 %830
        %v834 = vsel %vm690, %v780, 0
        %836 = vmatprep.subr.bf16.mxu0 0
        %837 = vmatpush1.bf16.msra.mxu0 %v831
        %838 = vmatprep.subr.bf16.mxu0 0
        %839 = vmatpush1.bf16.msra.mxu0 0
        %840 = vmatprep.subr.bf16.mxu0 0
        %841 = vmatpush1.bf16.msra.mxu0 0
        %842 = vmatprep.subr.bf16.mxu0 0
        %843 = vmatpush1.bf16.msra.mxu0 0
        %844 = vmatprep.subr.bf16.mxu0 0
        %845 = vmatpush1.bf16.msra.mxu0 0
        %846 = vmatprep.subr.bf16.mxu0 0
        %847 = vmatpush1.bf16.msra.mxu0 0
        %848 = vmatprep.subr.bf16.mxu0 0
        %849 = vmatpush1.bf16.msra.mxu0 0
        %850 = vmatprep.subr.bf16.mxu0 0
        %851 = vmatpush1.bf16.msra.mxu0 0
        %852 = vmatprep.subr.bf16.mxu0 0
        %853 = vmatpush1.bf16.msra.mxu0 0
        %854 = vmatprep.subr.bf16.mxu0 0
        %855 = vmatpush1.bf16.msra.mxu0 0
        %856 = vmatprep.subr.bf16.mxu0 0
        %857 = vmatpush1.bf16.msra.mxu0 0
        %858 = vmatprep.subr.bf16.mxu0 0
        %859 = vmatpush1.bf16.msra.mxu0 0
        %860 = vmatprep.subr.bf16.mxu0 0
        %861 = vmatpush1.bf16.msra.mxu0 0
        %862 = vmatprep.subr.bf16.mxu0 0
        %863 = vmatpush1.bf16.msra.mxu0 0
        %864 = vmatprep.subr.bf16.mxu0 0
        %865 = vmatpush1.bf16.msra.mxu0 0
        %866 = vmatprep.subr.bf16.mxu0 0
        %867 = vmatpush1.bf16.msra.mxu0 0
        %868 = vmatprep.mubr.bf16.mxu0 0
        %869 = vmatmul.mubr.bf16.gmra.mrb[0].mxu0 %v834
        %v870 = vpop.f32.mrb[0].mxu0
        %v871 = vadd.f32 0.0, %v870
        %v872 = vpop.f32.mrb[0].mxu0
        %v873 = vpop.f32.mrb[0].mxu0
        %v874 = vadd.f32 0.0, %v873
        %v875 = vpop.f32.mrb[0].mxu0
        %876 = vdwg.mxu0
        %877 = vrot.lane.b32.xlu0 %v469, 64
        %v878 = vpop.permute.xlu0 %877
        %v881 = vsel %vm690, %v781, 0
        %883 = vmatprep.subr.bf16.mxu0 0
        %884 = vmatpush1.bf16.msra.mxu0 %v878
        %885 = vmatprep.subr.bf16.mxu0 0
        %886 = vmatpush1.bf16.msra.mxu0 0
        %887 = vmatprep.subr.bf16.mxu0 0
        %888 = vmatpush1.bf16.msra.mxu0 0
        %889 = vmatprep.subr.bf16.mxu0 0
        %890 = vmatpush1.bf16.msra.mxu0 0
        %891 = vmatprep.subr.bf16.mxu0 0
        %892 = vmatpush1.bf16.msra.mxu0 0
        %893 = vmatprep.subr.bf16.mxu0 0
        %894 = vmatpush1.bf16.msra.mxu0 0
        %895 = vmatprep.subr.bf16.mxu0 0
        %896 = vmatpush1.bf16.msra.mxu0 0
        %897 = vmatprep.subr.bf16.mxu0 0
        %898 = vmatpush1.bf16.msra.mxu0 0
        %899 = vmatprep.subr.bf16.mxu0 0
        %900 = vmatpush1.bf16.msra.mxu0 0
        %901 = vmatprep.subr.bf16.mxu0 0
        %902 = vmatpush1.bf16.msra.mxu0 0
        %903 = vmatprep.subr.bf16.mxu0 0
        %904 = vmatpush1.bf16.msra.mxu0 0
        %905 = vmatprep.subr.bf16.mxu0 0
        %906 = vmatpush1.bf16.msra.mxu0 0
        %907 = vmatprep.subr.bf16.mxu0 0
        %908 = vmatpush1.bf16.msra.mxu0 0
        %909 = vmatprep.subr.bf16.mxu0 0
        %910 = vmatpush1.bf16.msra.mxu0 0
        %911 = vmatprep.subr.bf16.mxu0 0
        %912 = vmatpush1.bf16.msra.mxu0 0
        %913 = vmatprep.subr.bf16.mxu0 0
        %914 = vmatpush1.bf16.msra.mxu0 0
        %915 = vmatprep.mubr.bf16.mxu0 0
        %916 = vmatmul.mubr.bf16.gmra.mrb[0].mxu0 %v881
        %v917 = vpop.f32.mrb[0].mxu0
        %v918 = vadd.f32 0.0, %v917
        %v919 = vpop.f32.mrb[0].mxu0
        %v920 = vpop.f32.mrb[0].mxu0
        %v921 = vadd.f32 0.0, %v920
        %v922 = vpop.f32.mrb[0].mxu0
        %923 = vdwg.mxu0
        %924 = vrot.lane.b32.xlu0 %v470, 64
        %v925 = vpop.permute.xlu0 %924
        %v928 = vsel %vm690, %v782, 0
        %930 = vmatprep.subr.bf16.mxu0 0
        %931 = vmatpush1.bf16.msra.mxu0 %v925
        %932 = vmatprep.subr.bf16.mxu0 0
        %933 = vmatpush1.bf16.msra.mxu0 0
        %934 = vmatprep.subr.bf16.mxu0 0
        %935 = vmatpush1.bf16.msra.mxu0 0
        %936 = vmatprep.subr.bf16.mxu0 0
        %937 = vmatpush1.bf16.msra.mxu0 0
        %938 = vmatprep.subr.bf16.mxu0 0
        %939 = vmatpush1.bf16.msra.mxu0 0
        %940 = vmatprep.subr.bf16.mxu0 0
        %941 = vmatpush1.bf16.msra.mxu0 0
        %942 = vmatprep.subr.bf16.mxu0 0
        %943 = vmatpush1.bf16.msra.mxu0 0
        %944 = vmatprep.subr.bf16.mxu0 0
        %945 = vmatpush1.bf16.msra.mxu0 0
        %946 = vmatprep.subr.bf16.mxu0 0
        %947 = vmatpush1.bf16.msra.mxu0 0
        %948 = vmatprep.subr.bf16.mxu0 0
        %949 = vmatpush1.bf16.msra.mxu0 0
        %950 = vmatprep.subr.bf16.mxu0 0
        %951 = vmatpush1.bf16.msra.mxu0 0
        %952 = vmatprep.subr.bf16.mxu0 0
        %953 = vmatpush1.bf16.msra.mxu0 0
        %954 = vmatprep.subr.bf16.mxu0 0
        %955 = vmatpush1.bf16.msra.mxu0 0
        %956 = vmatprep.subr.bf16.mxu0 0
        %957 = vmatpush1.bf16.msra.mxu0 0
        %958 = vmatprep.subr.bf16.mxu0 0
        %959 = vmatpush1.bf16.msra.mxu0 0
        %960 = vmatprep.subr.bf16.mxu0 0
        %961 = vmatpush1.bf16.msra.mxu0 0
        %962 = vmatprep.mubr.bf16.mxu0 0
        %963 = vmatmul.mubr.bf16.gmra.mrb[0].mxu0 %v928
        %v964 = vpop.f32.mrb[0].mxu0
        %v965 = vadd.f32 0.0, %v964
        %v966 = vpop.f32.mrb[0].mxu0
        %v967 = vpop.f32.mrb[0].mxu0
        %v968 = vadd.f32 0.0, %v967
        %v969 = vpop.f32.mrb[0].mxu0
        %970 = vdwg.mxu0
        %v971 = vpack.c.bf16 %v827, %v824
        %v972 = vpack.c.bf16 %v874, %v871
        %v973 = vpack.c.bf16 %v921, %v918
        %v974 = vpack.c.bf16 %v968, %v965
        %975 = vst.msk [vmem:[#allocation3] sm:$0xff] %vm476, %v971
        %976 = vst.msk [vmem:[#allocation3 + $0x8] sm:$0xff] %vm476, %v972
        %977 = vst.msk [vmem:[#allocation3 + $0x10] sm:$0xff] %vm476, %v973
        %978 = vst.msk [vmem:[#allocation3 + $0x18] sm:$0xff] %vm476, %v974
        %v979 = vld [vmem:[#allocation2] sm:$0xff]
        %v980 = vld [vmem:[#allocation2 + $0x8] sm:$0xff]
        %v981 = vld [vmem:[#allocation2 + $0x10] sm:$0xff]
        %v982 = vld [vmem:[#allocation2 + $0x18] sm:$0xff]
        %s983 = scalar_lea.vmem [#allocation7], 16
        %v984 = vld [vmem:[%s983] sm:$0xff]
        %v985 = vld [vmem:[%s983 + $0x8] sm:$0xff]
        %987 = vrot.lane.b32.xlu0 %v979, 120
        %v988 = vpop.permute.xlu0 %987
        %989 = vrot.lane.b32.xlu0 %v979, 88
        %v990 = vpop.permute.xlu0 %989
        %v992 = vsel %vm476, %v988, 0
        %v995 = vsel %vm476, %v990, 0
        %997 = vmatprep.subr.bf16.mxu0 0
        %998 = vmatpush1.bf16.xpose.msra.mxu0 %v995
        %999 = vmatprep.subr.bf16.mxu0 0
        %1000 = vmatpush1.bf16.xpose.msra.mxu0 0
        %1001 = vmatprep.subr.bf16.mxu0 0
        %1002 = vmatpush1.bf16.xpose.msra.mxu0 0
        %1003 = vmatprep.subr.bf16.mxu0 0
        %1004 = vmatpush1.bf16.xpose.msra.mxu0 0
        %1005 = vmatprep.subr.bf16.mxu0 0
        %1006 = vmatpush1.bf16.xpose.msra.mxu0 0
        %1007 = vmatprep.subr.bf16.mxu0 0
        %1008 = vmatpush1.bf16.xpose.msra.mxu0 0
        %1009 = vmatprep.subr.bf16.mxu0 0
        %1010 = vmatpush1.bf16.xpose.msra.mxu0 0
        %1011 = vmatprep.subr.bf16.mxu0 0
        %1012 = vmatpush1.bf16.xpose.msra.mxu0 0
        %1013 = vmatprep.subr.bf16.mxu0 0
        %1014 = vmatpush1.bf16.xpose.msra.mxu0 0
        %1015 = vmatprep.subr.bf16.mxu0 0
        %1016 = vmatpush1.bf16.xpose.msra.mxu0 0
        %1017 = vmatprep.subr.bf16.mxu0 0
        %1018 = vmatpush1.bf16.xpose.msra.mxu0 0
        %1019 = vmatprep.subr.bf16.mxu0 0
        %1020 = vmatpush1.bf16.xpose.msra.mxu0 0
        %1021 = vmatprep.subr.bf16.mxu0 0
        %1022 = vmatpush1.bf16.xpose.msra.mxu0 0
        %1023 = vmatprep.subr.bf16.mxu0 0
        %1024 = vmatpush1.bf16.xpose.msra.mxu0 0
        %1025 = vmatprep.subr.bf16.mxu0 0
        %1026 = vmatpush1.bf16.xpose.msra.mxu0 0
        %1027 = vmatprep.subr.bf16.mxu0 0
        %1028 = vmatpush1.bf16.xpose.msra.mxu0 0
        %1029 = vmatprep.mubr.bf16.mxu0 0
        %1030 = vmatmul.mubr.bf16.gmra.mrb[0].mxu0 %v992
        %v1031 = vpop.f32.mrb[0].mxu0
        %v1032 = vadd.f32 %v984, %v1031
        %v1033 = vpop.f32.mrb[0].mxu0
        %v1034 = vpop.f32.mrb[0].mxu0
        %v1035 = vadd.f32 %v985, %v1034
        %v1036 = vpop.f32.mrb[0].mxu0
        %1037 = vdwg.mxu0
        %1039 = vrot.lane.b32.xlu0 %v980, 120
        %v1040 = vpop.permute.xlu0 %1039
        %1041 = vrot.lane.b32.xlu0 %v980, 88
        %v1042 = vpop.permute.xlu0 %1041
        %v1044 = vsel %vm476, %v1040, 0
        %v1047 = vsel %vm476, %v1042, 0
        %1049 = vmatprep.subr.bf16.mxu0 0
        %1050 = vmatpush1.bf16.xpose.msra.mxu0 %v1047
        %1051 = vmatprep.subr.bf16.mxu0 0
        %1052 = vmatpush1.bf16.xpose.msra.mxu0 0
        %1053 = vmatprep.subr.bf16.mxu0 0
        %1054 = vmatpush1.bf16.xpose.msra.mxu0 0
        %1055 = vmatprep.subr.bf16.mxu0 0
        %1056 = vmatpush1.bf16.xpose.msra.mxu0 0
        %1057 = vmatprep.subr.bf16.mxu0 0
        %1058 = vmatpush1.bf16.xpose.msra.mxu0 0
        %1059 = vmatprep.subr.bf16.mxu0 0
        %1060 = vmatpush1.bf16.xpose.msra.mxu0 0
        %1061 = vmatprep.subr.bf16.mxu0 0
        %1062 = vmatpush1.bf16.xpose.msra.mxu0 0
        %1063 = vmatprep.subr.bf16.mxu0 0
        %1064 = vmatpush1.bf16.xpose.msra.mxu0 0
        %1065 = vmatprep.subr.bf16.mxu0 0
        %1066 = vmatpush1.bf16.xpose.msra.mxu0 0
        %1067 = vmatprep.subr.bf16.mxu0 0
        %1068 = vmatpush1.bf16.xpose.msra.mxu0 0
        %1069 = vmatprep.subr.bf16.mxu0 0
        %1070 = vmatpush1.bf16.xpose.msra.mxu0 0
        %1071 = vmatprep.subr.bf16.mxu0 0
        %1072 = vmatpush1.bf16.xpose.msra.mxu0 0
        %1073 = vmatprep.subr.bf16.mxu0 0
        %1074 = vmatpush1.bf16.xpose.msra.mxu0 0
        %1075 = vmatprep.subr.bf16.mxu0 0
        %1076 = vmatpush1.bf16.xpose.msra.mxu0 0
        %1077 = vmatprep.subr.bf16.mxu0 0
        %1078 = vmatpush1.bf16.xpose.msra.mxu0 0
        %1079 = vmatprep.subr.bf16.mxu0 0
        %1080 = vmatpush1.bf16.xpose.msra.mxu0 0
        %1081 = vmatprep.mubr.bf16.mxu0 0
        %1082 = vmatmul.mubr.bf16.gmra.mrb[0].mxu0 %v1044
        %v1083 = vpop.f32.mrb[0].mxu0
        %v1084 = vadd.f32 %v984, %v1083
        %v1085 = vpop.f32.mrb[0].mxu0
        %v1086 = vpop.f32.mrb[0].mxu0
        %v1087 = vadd.f32 %v985, %v1086
        %v1088 = vpop.f32.mrb[0].mxu0
        %1089 = vdwg.mxu0
        %1091 = vrot.lane.b32.xlu0 %v981, 120
        %v1092 = vpop.permute.xlu0 %1091
        %1093 = vrot.lane.b32.xlu0 %v981, 88
        %v1094 = vpop.permute.xlu0 %1093
        %v1096 = vsel %vm476, %v1092, 0
        %v1099 = vsel %vm476, %v1094, 0
        %1101 = vmatprep.subr.bf16.mxu0 0
        %1102 = vmatpush1.bf16.xpose.msra.mxu0 %v1099
        %1103 = vmatprep.subr.bf16.mxu0 0
        %1104 = vmatpush1.bf16.xpose.msra.mxu0 0
        %1105 = vmatprep.subr.bf16.mxu0 0
        %1106 = vmatpush1.bf16.xpose.msra.mxu0 0
        %1107 = vmatprep.subr.bf16.mxu0 0
        %1108 = vmatpush1.bf16.xpose.msra.mxu0 0
        %1109 = vmatprep.subr.bf16.mxu0 0
        %1110 = vmatpush1.bf16.xpose.msra.mxu0 0
        %1111 = vmatprep.subr.bf16.mxu0 0
        %1112 = vmatpush1.bf16.xpose.msra.mxu0 0
        %1113 = vmatprep.subr.bf16.mxu0 0
        %1114 = vmatpush1.bf16.xpose.msra.mxu0 0
        %1115 = vmatprep.subr.bf16.mxu0 0
        %1116 = vmatpush1.bf16.xpose.msra.mxu0 0
        %1117 = vmatprep.subr.bf16.mxu0 0
        %1118 = vmatpush1.bf16.xpose.msra.mxu0 0
        %1119 = vmatprep.subr.bf16.mxu0 0
        %1120 = vmatpush1.bf16.xpose.msra.mxu0 0
        %1121 = vmatprep.subr.bf16.mxu0 0
        %1122 = vmatpush1.bf16.xpose.msra.mxu0 0
        %1123 = vmatprep.subr.bf16.mxu0 0
        %1124 = vmatpush1.bf16.xpose.msra.mxu0 0
        %1125 = vmatprep.subr.bf16.mxu0 0
        %1126 = vmatpush1.bf16.xpose.msra.mxu0 0
        %1127 = vmatprep.subr.bf16.mxu0 0
        %1128 = vmatpush1.bf16.xpose.msra.mxu0 0
        %1129 = vmatprep.subr.bf16.mxu0 0
        %1130 = vmatpush1.bf16.xpose.msra.mxu0 0
        %1131 = vmatprep.subr.bf16.mxu0 0
        %1132 = vmatpush1.bf16.xpose.msra.mxu0 0
        %1133 = vmatprep.mubr.bf16.mxu0 0
        %1134 = vmatmul.mubr.bf16.gmra.mrb[0].mxu0 %v1096
        %v1135 = vpop.f32.mrb[0].mxu0
        %v1136 = vadd.f32 %v984, %v1135
        %v1137 = vpop.f32.mrb[0].mxu0
        %v1138 = vpop.f32.mrb[0].mxu0
        %v1139 = vadd.f32 %v985, %v1138
        %v1140 = vpop.f32.mrb[0].mxu0
        %1141 = vdwg.mxu0
        %1143 = vrot.lane.b32.xlu0 %v982, 120
        %v1144 = vpop.permute.xlu0 %1143
        %1145 = vrot.lane.b32.xlu0 %v982, 88
        %v1146 = vpop.permute.xlu0 %1145
        %v1148 = vsel %vm476, %v1144, 0
        %v1151 = vsel %vm476, %v1146, 0
        %1153 = vmatprep.subr.bf16.mxu0 0
        %1154 = vmatpush1.bf16.xpose.msra.mxu0 %v1151
        %1155 = vmatprep.subr.bf16.mxu0 0
        %1156 = vmatpush1.bf16.xpose.msra.mxu0 0
        %1157 = vmatprep.subr.bf16.mxu0 0
        %1158 = vmatpush1.bf16.xpose.msra.mxu0 0
        %1159 = vmatprep.subr.bf16.mxu0 0
        %1160 = vmatpush1.bf16.xpose.msra.mxu0 0
        %1161 = vmatprep.subr.bf16.mxu0 0
        %1162 = vmatpush1.bf16.xpose.msra.mxu0 0
        %1163 = vmatprep.subr.bf16.mxu0 0
        %1164 = vmatpush1.bf16.xpose.msra.mxu0 0
        %1165 = vmatprep.subr.bf16.mxu0 0
        %1166 = vmatpush1.bf16.xpose.msra.mxu0 0
        %1167 = vmatprep.subr.bf16.mxu0 0
        %1168 = vmatpush1.bf16.xpose.msra.mxu0 0
        %1169 = vmatprep.subr.bf16.mxu0 0
        %1170 = vmatpush1.bf16.xpose.msra.mxu0 0
        %1171 = vmatprep.subr.bf16.mxu0 0
        %1172 = vmatpush1.bf16.xpose.msra.mxu0 0
        %1173 = vmatprep.subr.bf16.mxu0 0
        %1174 = vmatpush1.bf16.xpose.msra.mxu0 0
        %1175 = vmatprep.subr.bf16.mxu0 0
        %1176 = vmatpush1.bf16.xpose.msra.mxu0 0
        %1177 = vmatprep.subr.bf16.mxu0 0
        %1178 = vmatpush1.bf16.xpose.msra.mxu0 0
        %1179 = vmatprep.subr.bf16.mxu0 0
        %1180 = vmatpush1.bf16.xpose.msra.mxu0 0
        %1181 = vmatprep.subr.bf16.mxu0 0
        %1182 = vmatpush1.bf16.xpose.msra.mxu0 0
        %1183 = vmatprep.subr.bf16.mxu0 0
        %1184 = vmatpush1.bf16.xpose.msra.mxu0 0
        %1185 = vmatprep.mubr.bf16.mxu0 0
        %1186 = vmatmul.mubr.bf16.gmra.mrb[0].mxu0 %v1148
        %v1187 = vpop.f32.mrb[0].mxu0
        %v1188 = vadd.f32 %v984, %v1187
        %v1189 = vpop.f32.mrb[0].mxu0
        %v1190 = vpop.f32.mrb[0].mxu0
        %v1191 = vadd.f32 %v985, %v1190
        %v1192 = vpop.f32.mrb[0].mxu0
        %1193 = vdwg.mxu0
        %v1194 = vld [vmem:[#allocation9] sm:$0xff]
        %v1195 = vld [vmem:[#allocation9 + $0x8] sm:$0xff]
        %v1196 = vld [vmem:[#allocation9 + $0x10] sm:$0xff]
        %v1197 = vld [vmem:[#allocation9 + $0x18] sm:$0xff]
        %v1198 = vld [vmem:[#allocation9 + $0x20] sm:$0xff]
        %v1199 = vld [vmem:[#allocation9 + $0x28] sm:$0xff]
        %v1200 = vld [vmem:[#allocation9 + $0x30] sm:$0xff]
        %v1201 = vld [vmem:[#allocation9 + $0x38] sm:$0xff]
        %v1202 = vadd.f32 %v1032, %v1194
        %v1203 = vadd.f32 %v1035, %v1195
        %v1204 = vadd.f32 %v1084, %v1196
        %v1205 = vadd.f32 %v1087, %v1197
        %v1206 = vadd.f32 %v1136, %v1198
        %v1207 = vadd.f32 %v1139, %v1199
        %v1208 = vadd.f32 %v1188, %v1200
        %v1209 = vadd.f32 %v1191, %v1201
        %v1210 = vsel %vm690, %v1202, -inf
        %1211 = vmax.xlane.f32.xlu0 %v1210
        %v1212 = vpop.xlane.xlu0 %1211
        %v1213 = vsel %vm690, %v1203, -inf
        %1214 = vmax.xlane.f32.xlu0 %v1213
        %v1215 = vpop.xlane.xlu0 %1214
        %v1216 = vsel %vm690, %v1204, -inf
        %1217 = vmax.xlane.f32.xlu0 %v1216
        %v1218 = vpop.xlane.xlu0 %1217
        %v1219 = vsel %vm690, %v1205, -inf
        %1220 = vmax.xlane.f32.xlu0 %v1219
        %v1221 = vpop.xlane.xlu0 %1220
        %v1222 = vsel %vm690, %v1206, -inf
        %1223 = vmax.xlane.f32.xlu0 %v1222
        %v1224 = vpop.xlane.xlu0 %1223
        %v1225 = vsel %vm690, %v1207, -inf
        %1226 = vmax.xlane.f32.xlu0 %v1225
        %v1227 = vpop.xlane.xlu0 %1226
        %v1228 = vsel %vm690, %v1208, -inf
        %1229 = vmax.xlane.f32.xlu0 %v1228
        %v1230 = vpop.xlane.xlu0 %1229
        %v1231 = vsel %vm690, %v1209, -inf
        %1232 = vmax.xlane.f32.xlu0 %v1231
        %v1233 = vpop.xlane.xlu0 %1232
        %v1234 = vsub.f32 %v1202, %v1212
        %v1235 = vsub.f32 %v1203, %v1215
        %v1236 = vsub.f32 %v1204, %v1218
        %v1237 = vsub.f32 %v1205, %v1221
        %v1238 = vsub.f32 %v1206, %v1224
        %v1239 = vsub.f32 %v1207, %v1227
        %v1240 = vsub.f32 %v1208, %v1230
        %v1241 = vsub.f32 %v1209, %v1233
        %v1242 = vmul.f32 %v1234, 1.442695
        %v1243 = vpow.pop %v1242
        %v1244 = vmul.f32 %v1235, 1.442695
        %v1245 = vpow.pop %v1244
        %v1246 = vmul.f32 %v1236, 1.442695
        %v1247 = vpow.pop %v1246
        %v1248 = vmul.f32 %v1237, 1.442695
        %v1249 = vpow.pop %v1248
        %v1250 = vmul.f32 %v1238, 1.442695
        %v1251 = vpow.pop %v1250
        %v1252 = vmul.f32 %v1239, 1.442695
        %v1253 = vpow.pop %v1252
        %v1254 = vmul.f32 %v1240, 1.442695
        %v1255 = vpow.pop %v1254
        %v1256 = vmul.f32 %v1241, 1.442695
        %v1257 = vpow.pop %v1256
        %v1258 = vsel %vm690, %v1243, 0.0
        %1259 = vadd.xlane.f32.xlu0 %v1258
        %v1260 = vpop.xlane.xlu0 %1259
        %v1261 = vsel %vm690, %v1245, 0.0
        %1262 = vadd.xlane.f32.xlu0 %v1261
        %v1263 = vpop.xlane.xlu0 %1262
        %v1264 = vsel %vm690, %v1247, 0.0
        %1265 = vadd.xlane.f32.xlu0 %v1264
        %v1266 = vpop.xlane.xlu0 %1265
        %v1267 = vsel %vm690, %v1249, 0.0
        %1268 = vadd.xlane.f32.xlu0 %v1267
        %v1269 = vpop.xlane.xlu0 %1268
        %v1270 = vsel %vm690, %v1251, 0.0
        %1271 = vadd.xlane.f32.xlu0 %v1270
        %v1272 = vpop.xlane.xlu0 %1271
        %v1273 = vsel %vm690, %v1253, 0.0
        %1274 = vadd.xlane.f32.xlu0 %v1273
        %v1275 = vpop.xlane.xlu0 %1274
        %v1276 = vsel %vm690, %v1255, 0.0
        %1277 = vadd.xlane.f32.xlu0 %v1276
        %v1278 = vpop.xlane.xlu0 %1277
        %v1279 = vsel %vm690, %v1257, 0.0
        %1280 = vadd.xlane.f32.xlu0 %v1279
        %v1281 = vpop.xlane.xlu0 %1280
        %v1282 = vrcp.pop %v1260
        %v1283 = vrcp.pop %v1263
        %v1284 = vrcp.pop %v1266
        %v1285 = vrcp.pop %v1269
        %v1286 = vrcp.pop %v1272
        %v1287 = vrcp.pop %v1275
        %v1288 = vrcp.pop %v1278
        %v1289 = vrcp.pop %v1281
        %v1290 = vmul.f32 %v1243, %v1282
        %v1291 = vmul.f32 %v1245, %v1283
        %v1292 = vmul.f32 %v1247, %v1284
        %v1293 = vmul.f32 %v1249, %v1285
        %v1294 = vmul.f32 %v1251, %v1286
        %v1295 = vmul.f32 %v1253, %v1287
        %v1296 = vmul.f32 %v1255, %v1288
        %v1297 = vmul.f32 %v1257, %v1289
        %v1298 = vpack.c.bf16 %v1291, %v1290
        %v1299 = vpack.c.bf16 %v1293, %v1292
        %v1300 = vpack.c.bf16 %v1295, %v1294
        %v1301 = vpack.c.bf16 %v1297, %v1296
        %1302 = vrot.lane.b32.xlu0 %v979, 56
        %v1303 = vpop.permute.xlu0 %1302
        %v1306 = vsel %vm690, %v1298, 0
        %1308 = vmatprep.subr.bf16.mxu0 0
        %1309 = vmatpush1.bf16.msra.mxu0 %v1303
        %1310 = vmatprep.subr.bf16.mxu0 0
        %1311 = vmatpush1.bf16.msra.mxu0 0
        %1312 = vmatprep.subr.bf16.mxu0 0
        %1313 = vmatpush1.bf16.msra.mxu0 0
        %1314 = vmatprep.subr.bf16.mxu0 0
        %1315 = vmatpush1.bf16.msra.mxu0 0
        %1316 = vmatprep.subr.bf16.mxu0 0
        %1317 = vmatpush1.bf16.msra.mxu0 0
        %1318 = vmatprep.subr.bf16.mxu0 0
        %1319 = vmatpush1.bf16.msra.mxu0 0
        %1320 = vmatprep.subr.bf16.mxu0 0
        %1321 = vmatpush1.bf16.msra.mxu0 0
        %1322 = vmatprep.subr.bf16.mxu0 0
        %1323 = vmatpush1.bf16.msra.mxu0 0
        %1324 = vmatprep.subr.bf16.mxu0 0
        %1325 = vmatpush1.bf16.msra.mxu0 0
        %1326 = vmatprep.subr.bf16.mxu0 0
        %1327 = vmatpush1.bf16.msra.mxu0 0
        %1328 = vmatprep.subr.bf16.mxu0 0
        %1329 = vmatpush1.bf16.msra.mxu0 0
        %1330 = vmatprep.subr.bf16.mxu0 0
        %1331 = vmatpush1.bf16.msra.mxu0 0
        %1332 = vmatprep.subr.bf16.mxu0 0
        %1333 = vmatpush1.bf16.msra.mxu0 0
        %1334 = vmatprep.subr.bf16.mxu0 0
        %1335 = vmatpush1.bf16.msra.mxu0 0
        %1336 = vmatprep.subr.bf16.mxu0 0
        %1337 = vmatpush1.bf16.msra.mxu0 0
        %1338 = vmatprep.subr.bf16.mxu0 0
        %1339 = vmatpush1.bf16.msra.mxu0 0
        %1340 = vmatprep.mubr.bf16.mxu0 0
        %1341 = vmatmul.mubr.bf16.gmra.mrb[0].mxu0 %v1306
        %v1342 = vpop.f32.mrb[0].mxu0
        %v1343 = vadd.f32 0.0, %v1342
        %v1344 = vpop.f32.mrb[0].mxu0
        %v1345 = vpop.f32.mrb[0].mxu0
        %v1346 = vadd.f32 0.0, %v1345
        %v1347 = vpop.f32.mrb[0].mxu0
        %1348 = vdwg.mxu0
        %1349 = vrot.lane.b32.xlu0 %v980, 56
        %v1350 = vpop.permute.xlu0 %1349
        %v1353 = vsel %vm690, %v1299, 0
        %1355 = vmatprep.subr.bf16.mxu0 0
        %1356 = vmatpush1.bf16.msra.mxu0 %v1350
        %1357 = vmatprep.subr.bf16.mxu0 0
        %1358 = vmatpush1.bf16.msra.mxu0 0
        %1359 = vmatprep.subr.bf16.mxu0 0
        %1360 = vmatpush1.bf16.msra.mxu0 0
        %1361 = vmatprep.subr.bf16.mxu0 0
        %1362 = vmatpush1.bf16.msra.mxu0 0
        %1363 = vmatprep.subr.bf16.mxu0 0
        %1364 = vmatpush1.bf16.msra.mxu0 0
        %1365 = vmatprep.subr.bf16.mxu0 0
        %1366 = vmatpush1.bf16.msra.mxu0 0
        %1367 = vmatprep.subr.bf16.mxu0 0
        %1368 = vmatpush1.bf16.msra.mxu0 0
        %1369 = vmatprep.subr.bf16.mxu0 0
        %1370 = vmatpush1.bf16.msra.mxu0 0
        %1371 = vmatprep.subr.bf16.mxu0 0
        %1372 = vmatpush1.bf16.msra.mxu0 0
        %1373 = vmatprep.subr.bf16.mxu0 0
        %1374 = vmatpush1.bf16.msra.mxu0 0
        %1375 = vmatprep.subr.bf16.mxu0 0
        %1376 = vmatpush1.bf16.msra.mxu0 0
        %1377 = vmatprep.subr.bf16.mxu0 0
        %1378 = vmatpush1.bf16.msra.mxu0 0
        %1379 = vmatprep.subr.bf16.mxu0 0
        %1380 = vmatpush1.bf16.msra.mxu0 0
        %1381 = vmatprep.subr.bf16.mxu0 0
        %1382 = vmatpush1.bf16.msra.mxu0 0
        %1383 = vmatprep.subr.bf16.mxu0 0
        %1384 = vmatpush1.bf16.msra.mxu0 0
        %1385 = vmatprep.subr.bf16.mxu0 0
        %1386 = vmatpush1.bf16.msra.mxu0 0
        %1387 = vmatprep.mubr.bf16.mxu0 0
        %1388 = vmatmul.mubr.bf16.gmra.mrb[0].mxu0 %v1353
        %v1389 = vpop.f32.mrb[0].mxu0
        %v1390 = vadd.f32 0.0, %v1389
        %v1391 = vpop.f32.mrb[0].mxu0
        %v1392 = vpop.f32.mrb[0].mxu0
        %v1393 = vadd.f32 0.0, %v1392
        %v1394 = vpop.f32.mrb[0].mxu0
        %1395 = vdwg.mxu0
        %1396 = vrot.lane.b32.xlu0 %v981, 56
        %v1397 = vpop.permute.xlu0 %1396
        %v1400 = vsel %vm690, %v1300, 0
        %1402 = vmatprep.subr.bf16.mxu0 0
        %1403 = vmatpush1.bf16.msra.mxu0 %v1397
        %1404 = vmatprep.subr.bf16.mxu0 0
        %1405 = vmatpush1.bf16.msra.mxu0 0
        %1406 = vmatprep.subr.bf16.mxu0 0
        %1407 = vmatpush1.bf16.msra.mxu0 0
        %1408 = vmatprep.subr.bf16.mxu0 0
        %1409 = vmatpush1.bf16.msra.mxu0 0
        %1410 = vmatprep.subr.bf16.mxu0 0
        %1411 = vmatpush1.bf16.msra.mxu0 0
        %1412 = vmatprep.subr.bf16.mxu0 0
        %1413 = vmatpush1.bf16.msra.mxu0 0
        %1414 = vmatprep.subr.bf16.mxu0 0
        %1415 = vmatpush1.bf16.msra.mxu0 0
        %1416 = vmatprep.subr.bf16.mxu0 0
        %1417 = vmatpush1.bf16.msra.mxu0 0
        %1418 = vmatprep.subr.bf16.mxu0 0
        %1419 = vmatpush1.bf16.msra.mxu0 0
        %1420 = vmatprep.subr.bf16.mxu0 0
        %1421 = vmatpush1.bf16.msra.mxu0 0
        %1422 = vmatprep.subr.bf16.mxu0 0
        %1423 = vmatpush1.bf16.msra.mxu0 0
        %1424 = vmatprep.subr.bf16.mxu0 0
        %1425 = vmatpush1.bf16.msra.mxu0 0
        %1426 = vmatprep.subr.bf16.mxu0 0
        %1427 = vmatpush1.bf16.msra.mxu0 0
        %1428 = vmatprep.subr.bf16.mxu0 0
        %1429 = vmatpush1.bf16.msra.mxu0 0
        %1430 = vmatprep.subr.bf16.mxu0 0
        %1431 = vmatpush1.bf16.msra.mxu0 0
        %1432 = vmatprep.subr.bf16.mxu0 0
        %1433 = vmatpush1.bf16.msra.mxu0 0
        %1434 = vmatprep.mubr.bf16.mxu0 0
        %1435 = vmatmul.mubr.bf16.gmra.mrb[0].mxu0 %v1400
        %v1436 = vpop.f32.mrb[0].mxu0
        %v1437 = vadd.f32 0.0, %v1436
        %v1438 = vpop.f32.mrb[0].mxu0
        %v1439 = vpop.f32.mrb[0].mxu0
        %v1440 = vadd.f32 0.0, %v1439
        %v1441 = vpop.f32.mrb[0].mxu0
        %1442 = vdwg.mxu0
        %1443 = vrot.lane.b32.xlu0 %v982, 56
        %v1444 = vpop.permute.xlu0 %1443
        %v1447 = vsel %vm690, %v1301, 0
        %1449 = vmatprep.subr.bf16.mxu0 0
        %1450 = vmatpush1.bf16.msra.mxu0 %v1444
        %1451 = vmatprep.subr.bf16.mxu0 0
        %1452 = vmatpush1.bf16.msra.mxu0 0
        %1453 = vmatprep.subr.bf16.mxu0 0
        %1454 = vmatpush1.bf16.msra.mxu0 0
        %1455 = vmatprep.subr.bf16.mxu0 0
        %1456 = vmatpush1.bf16.msra.mxu0 0
        %1457 = vmatprep.subr.bf16.mxu0 0
        %1458 = vmatpush1.bf16.msra.mxu0 0
        %1459 = vmatprep.subr.bf16.mxu0 0
        %1460 = vmatpush1.bf16.msra.mxu0 0
        %1461 = vmatprep.subr.bf16.mxu0 0
        %1462 = vmatpush1.bf16.msra.mxu0 0
        %1463 = vmatprep.subr.bf16.mxu0 0
        %1464 = vmatpush1.bf16.msra.mxu0 0
        %1465 = vmatprep.subr.bf16.mxu0 0
        %1466 = vmatpush1.bf16.msra.mxu0 0
        %1467 = vmatprep.subr.bf16.mxu0 0
        %1468 = vmatpush1.bf16.msra.mxu0 0
        %1469 = vmatprep.subr.bf16.mxu0 0
        %1470 = vmatpush1.bf16.msra.mxu0 0
        %1471 = vmatprep.subr.bf16.mxu0 0
        %1472 = vmatpush1.bf16.msra.mxu0 0
        %1473 = vmatprep.subr.bf16.mxu0 0
        %1474 = vmatpush1.bf16.msra.mxu0 0
        %1475 = vmatprep.subr.bf16.mxu0 0
        %1476 = vmatpush1.bf16.msra.mxu0 0
        %1477 = vmatprep.subr.bf16.mxu0 0
        %1478 = vmatpush1.bf16.msra.mxu0 0
        %1479 = vmatprep.subr.bf16.mxu0 0
        %1480 = vmatpush1.bf16.msra.mxu0 0
        %1481 = vmatprep.mubr.bf16.mxu0 0
        %1482 = vmatmul.mubr.bf16.gmra.mrb[0].mxu0 %v1447
        %v1483 = vpop.f32.mrb[0].mxu0
        %v1484 = vadd.f32 0.0, %v1483
        %v1485 = vpop.f32.mrb[0].mxu0
        %v1486 = vpop.f32.mrb[0].mxu0
        %v1487 = vadd.f32 0.0, %v1486
        %v1488 = vpop.f32.mrb[0].mxu0
        %1489 = vdwg.mxu0
        %v1490 = vpack.c.bf16 %v1346, %v1343
        %v1491 = vpack.c.bf16 %v1393, %v1390
        %v1492 = vpack.c.bf16 %v1440, %v1437
        %v1493 = vpack.c.bf16 %v1487, %v1484
        %1498 = vrot.lane.b32.xlu0 %v1490, 8
        %v1499 = vpop.permute.xlu0 %1498
        %1500 = vrot.lane.b32.xlu0 %v1491, 8
        %v1501 = vpop.permute.xlu0 %1500
        %1502 = vrot.lane.b32.xlu0 %v1492, 8
        %v1503 = vpop.permute.xlu0 %1502
        %1504 = vrot.lane.b32.xlu0 %v1493, 8
        %v1505 = vpop.permute.xlu0 %1504
        %vm1510 = vcmask 130112
        %1511 = vst.msk [vmem:[#allocation3] sm:$0xff] %vm1510, %v1499
        %1512 = vst.msk [vmem:[#allocation3 + $0x8] sm:$0xff] %vm1510, %v1501
        %1513 = vst.msk [vmem:[#allocation3 + $0x10] sm:$0xff] %vm1510, %v1503
        %1514 = vst.msk [vmem:[#allocation3 + $0x18] sm:$0xff] %vm1510, %v1505
        %v1515 = vld [vmem:[#allocation2] sm:$0xff]
        %v1516 = vld [vmem:[#allocation2 + $0x8] sm:$0xff]
        %v1517 = vld [vmem:[#allocation2 + $0x10] sm:$0xff]
        %v1518 = vld [vmem:[#allocation2 + $0x18] sm:$0xff]
        %s1519 = scalar_lea.vmem [#allocation7], 32
        %v1520 = vld [vmem:[%s1519] sm:$0xff]
        %v1521 = vld [vmem:[%s1519 + $0x8] sm:$0xff]
        %1523 = vrot.lane.b32.xlu0 %v1515, 112
        %v1524 = vpop.permute.xlu0 %1523
        %1525 = vrot.lane.b32.xlu0 %v1515, 80
        %v1526 = vpop.permute.xlu0 %1525
        %v1528 = vsel %vm476, %v1524, 0
        %v1531 = vsel %vm476, %v1526, 0
        %1533 = vmatprep.subr.bf16.mxu0 0
        %1534 = vmatpush1.bf16.xpose.msra.mxu0 %v1531
        %1535 = vmatprep.subr.bf16.mxu0 0
        %1536 = vmatpush1.bf16.xpose.msra.mxu0 0
        %1537 = vmatprep.subr.bf16.mxu0 0
        %1538 = vmatpush1.bf16.xpose.msra.mxu0 0
        %1539 = vmatprep.subr.bf16.mxu0 0
        %1540 = vmatpush1.bf16.xpose.msra.mxu0 0
        %1541 = vmatprep.subr.bf16.mxu0 0
        %1542 = vmatpush1.bf16.xpose.msra.mxu0 0
        %1543 = vmatprep.subr.bf16.mxu0 0
        %1544 = vmatpush1.bf16.xpose.msra.mxu0 0
        %1545 = vmatprep.subr.bf16.mxu0 0
        %1546 = vmatpush1.bf16.xpose.msra.mxu0 0
        %1547 = vmatprep.subr.bf16.mxu0 0
        %1548 = vmatpush1.bf16.xpose.msra.mxu0 0
        %1549 = vmatprep.subr.bf16.mxu0 0
        %1550 = vmatpush1.bf16.xpose.msra.mxu0 0
        %1551 = vmatprep.subr.bf16.mxu0 0
        %1552 = vmatpush1.bf16.xpose.msra.mxu0 0
        %1553 = vmatprep.subr.bf16.mxu0 0
        %1554 = vmatpush1.bf16.xpose.msra.mxu0 0
        %1555 = vmatprep.subr.bf16.mxu0 0
        %1556 = vmatpush1.bf16.xpose.msra.mxu0 0
        %1557 = vmatprep.subr.bf16.mxu0 0
        %1558 = vmatpush1.bf16.xpose.msra.mxu0 0
        %1559 = vmatprep.subr.bf16.mxu0 0
        %1560 = vmatpush1.bf16.xpose.msra.mxu0 0
        %1561 = vmatprep.subr.bf16.mxu0 0
        %1562 = vmatpush1.bf16.xpose.msra.mxu0 0
        %1563 = vmatprep.subr.bf16.mxu0 0
        %1564 = vmatpush1.bf16.xpose.msra.mxu0 0
        %1565 = vmatprep.mubr.bf16.mxu0 0
        %1566 = vmatmul.mubr.bf16.gmra.mrb[0].mxu0 %v1528
        %v1567 = vpop.f32.mrb[0].mxu0
        %v1568 = vadd.f32 %v1520, %v1567
        %v1569 = vpop.f32.mrb[0].mxu0
        %v1570 = vpop.f32.mrb[0].mxu0
        %v1571 = vadd.f32 %v1521, %v1570
        %v1572 = vpop.f32.mrb[0].mxu0
        %1573 = vdwg.mxu0
        %1575 = vrot.lane.b32.xlu0 %v1516, 112
        %v1576 = vpop.permute.xlu0 %1575
        %1577 = vrot.lane.b32.xlu0 %v1516, 80
        %v1578 = vpop.permute.xlu0 %1577
        %v1580 = vsel %vm476, %v1576, 0
        %v1583 = vsel %vm476, %v1578, 0
        %1585 = vmatprep.subr.bf16.mxu0 0
        %1586 = vmatpush1.bf16.xpose.msra.mxu0 %v1583
        %1587 = vmatprep.subr.bf16.mxu0 0
        %1588 = vmatpush1.bf16.xpose.msra.mxu0 0
        %1589 = vmatprep.subr.bf16.mxu0 0
        %1590 = vmatpush1.bf16.xpose.msra.mxu0 0
        %1591 = vmatprep.subr.bf16.mxu0 0
        %1592 = vmatpush1.bf16.xpose.msra.mxu0 0
        %1593 = vmatprep.subr.bf16.mxu0 0
        %1594 = vmatpush1.bf16.xpose.msra.mxu0 0
        %1595 = vmatprep.subr.bf16.mxu0 0
        %1596 = vmatpush1.bf16.xpose.msra.mxu0 0
        %1597 = vmatprep.subr.bf16.mxu0 0
        %1598 = vmatpush1.bf16.xpose.msra.mxu0 0
        %1599 = vmatprep.subr.bf16.mxu0 0
        %1600 = vmatpush1.bf16.xpose.msra.mxu0 0
        %1601 = vmatprep.subr.bf16.mxu0 0
        %1602 = vmatpush1.bf16.xpose.msra.mxu0 0
        %1603 = vmatprep.subr.bf16.mxu0 0
        %1604 = vmatpush1.bf16.xpose.msra.mxu0 0
        %1605 = vmatprep.subr.bf16.mxu0 0
        %1606 = vmatpush1.bf16.xpose.msra.mxu0 0
        %1607 = vmatprep.subr.bf16.mxu0 0
        %1608 = vmatpush1.bf16.xpose.msra.mxu0 0
        %1609 = vmatprep.subr.bf16.mxu0 0
        %1610 = vmatpush1.bf16.xpose.msra.mxu0 0
        %1611 = vmatprep.subr.bf16.mxu0 0
        %1612 = vmatpush1.bf16.xpose.msra.mxu0 0
        %1613 = vmatprep.subr.bf16.mxu0 0
        %1614 = vmatpush1.bf16.xpose.msra.mxu0 0
        %1615 = vmatprep.subr.bf16.mxu0 0
        %1616 = vmatpush1.bf16.xpose.msra.mxu0 0
        %1617 = vmatprep.mubr.bf16.mxu0 0
        %1618 = vmatmul.mubr.bf16.gmra.mrb[0].mxu0 %v1580
        %v1619 = vpop.f32.mrb[0].mxu0
        %v1620 = vadd.f32 %v1520, %v1619
        %v1621 = vpop.f32.mrb[0].mxu0
        %v1622 = vpop.f32.mrb[0].mxu0
        %v1623 = vadd.f32 %v1521, %v1622
        %v1624 = vpop.f32.mrb[0].mxu0
        %1625 = vdwg.mxu0
        %1627 = vrot.lane.b32.xlu0 %v1517, 112
        %v1628 = vpop.permute.xlu0 %1627
        %1629 = vrot.lane.b32.xlu0 %v1517, 80
        %v1630 = vpop.permute.xlu0 %1629
        %v1632 = vsel %vm476, %v1628, 0
        %v1635 = vsel %vm476, %v1630, 0
        %1637 = vmatprep.subr.bf16.mxu0 0
        %1638 = vmatpush1.bf16.xpose.msra.mxu0 %v1635
        %1639 = vmatprep.subr.bf16.mxu0 0
        %1640 = vmatpush1.bf16.xpose.msra.mxu0 0
        %1641 = vmatprep.subr.bf16.mxu0 0
        %1642 = vmatpush1.bf16.xpose.msra.mxu0 0
        %1643 = vmatprep.subr.bf16.mxu0 0
        %1644 = vmatpush1.bf16.xpose.msra.mxu0 0
        %1645 = vmatprep.subr.bf16.mxu0 0
        %1646 = vmatpush1.bf16.xpose.msra.mxu0 0
        %1647 = vmatprep.subr.bf16.mxu0 0
        %1648 = vmatpush1.bf16.xpose.msra.mxu0 0
        %1649 = vmatprep.subr.bf16.mxu0 0
        %1650 = vmatpush1.bf16.xpose.msra.mxu0 0
        %1651 = vmatprep.subr.bf16.mxu0 0
        %1652 = vmatpush1.bf16.xpose.msra.mxu0 0
        %1653 = vmatprep.subr.bf16.mxu0 0
        %1654 = vmatpush1.bf16.xpose.msra.mxu0 0
        %1655 = vmatprep.subr.bf16.mxu0 0
        %1656 = vmatpush1.bf16.xpose.msra.mxu0 0
        %1657 = vmatprep.subr.bf16.mxu0 0
        %1658 = vmatpush1.bf16.xpose.msra.mxu0 0
        %1659 = vmatprep.subr.bf16.mxu0 0
        %1660 = vmatpush1.bf16.xpose.msra.mxu0 0
        %1661 = vmatprep.subr.bf16.mxu0 0
        %1662 = vmatpush1.bf16.xpose.msra.mxu0 0
        %1663 = vmatprep.subr.bf16.mxu0 0
        %1664 = vmatpush1.bf16.xpose.msra.mxu0 0
        %1665 = vmatprep.subr.bf16.mxu0 0
        %1666 = vmatpush1.bf16.xpose.msra.mxu0 0
        %1667 = vmatprep.subr.bf16.mxu0 0
        %1668 = vmatpush1.bf16.xpose.msra.mxu0 0
        %1669 = vmatprep.mubr.bf16.mxu0 0
        %1670 = vmatmul.mubr.bf16.gmra.mrb[0].mxu0 %v1632
        %v1671 = vpop.f32.mrb[0].mxu0
        %v1672 = vadd.f32 %v1520, %v1671
        %v1673 = vpop.f32.mrb[0].mxu0
        %v1674 = vpop.f32.mrb[0].mxu0
        %v1675 = vadd.f32 %v1521, %v1674
        %v1676 = vpop.f32.mrb[0].mxu0
        %1677 = vdwg.mxu0
        %1679 = vrot.lane.b32.xlu0 %v1518, 112
        %v1680 = vpop.permute.xlu0 %1679
        %1681 = vrot.lane.b32.xlu0 %v1518, 80
        %v1682 = vpop.permute.xlu0 %1681
        %v1684 = vsel %vm476, %v1680, 0
        %v1687 = vsel %vm476, %v1682, 0
        %1689 = vmatprep.subr.bf16.mxu0 0
        %1690 = vmatpush1.bf16.xpose.msra.mxu0 %v1687
        %1691 = vmatprep.subr.bf16.mxu0 0
        %1692 = vmatpush1.bf16.xpose.msra.mxu0 0
        %1693 = vmatprep.subr.bf16.mxu0 0
        %1694 = vmatpush1.bf16.xpose.msra.mxu0 0
        %1695 = vmatprep.subr.bf16.mxu0 0
        %1696 = vmatpush1.bf16.xpose.msra.mxu0 0
        %1697 = vmatprep.subr.bf16.mxu0 0
        %1698 = vmatpush1.bf16.xpose.msra.mxu0 0
        %1699 = vmatprep.subr.bf16.mxu0 0
        %1700 = vmatpush1.bf16.xpose.msra.mxu0 0
        %1701 = vmatprep.subr.bf16.mxu0 0
        %1702 = vmatpush1.bf16.xpose.msra.mxu0 0
        %1703 = vmatprep.subr.bf16.mxu0 0
        %1704 = vmatpush1.bf16.xpose.msra.mxu0 0
        %1705 = vmatprep.subr.bf16.mxu0 0
        %1706 = vmatpush1.bf16.xpose.msra.mxu0 0
        %1707 = vmatprep.subr.bf16.mxu0 0
        %1708 = vmatpush1.bf16.xpose.msra.mxu0 0
        %1709 = vmatprep.subr.bf16.mxu0 0
        %1710 = vmatpush1.bf16.xpose.msra.mxu0 0
        %1711 = vmatprep.subr.bf16.mxu0 0
        %1712 = vmatpush1.bf16.xpose.msra.mxu0 0
        %1713 = vmatprep.subr.bf16.mxu0 0
        %1714 = vmatpush1.bf16.xpose.msra.mxu0 0
        %1715 = vmatprep.subr.bf16.mxu0 0
        %1716 = vmatpush1.bf16.xpose.msra.mxu0 0
        %1717 = vmatprep.subr.bf16.mxu0 0
        %1718 = vmatpush1.bf16.xpose.msra.mxu0 0
        %1719 = vmatprep.subr.bf16.mxu0 0
        %1720 = vmatpush1.bf16.xpose.msra.mxu0 0
        %1721 = vmatprep.mubr.bf16.mxu0 0
        %1722 = vmatmul.mubr.bf16.gmra.mrb[0].mxu0 %v1684
        %v1723 = vpop.f32.mrb[0].mxu0
        %v1724 = vadd.f32 %v1520, %v1723
        %v1725 = vpop.f32.mrb[0].mxu0
        %v1726 = vpop.f32.mrb[0].mxu0
        %v1727 = vadd.f32 %v1521, %v1726
        %v1728 = vpop.f32.mrb[0].mxu0
        %1729 = vdwg.mxu0
        %v1730 = vld [vmem:[#allocation9] sm:$0xff]
        %v1731 = vld [vmem:[#allocation9 + $0x8] sm:$0xff]
        %v1732 = vld [vmem:[#allocation9 + $0x10] sm:$0xff]
        %v1733 = vld [vmem:[#allocation9 + $0x18] sm:$0xff]
        %v1734 = vld [vmem:[#allocation9 + $0x20] sm:$0xff]
        %v1735 = vld [vmem:[#allocation9 + $0x28] sm:$0xff]
        %v1736 = vld [vmem:[#allocation9 + $0x30] sm:$0xff]
        %v1737 = vld [vmem:[#allocation9 + $0x38] sm:$0xff]
        %v1738 = vadd.f32 %v1568, %v1730
        %v1739 = vadd.f32 %v1571, %v1731
        %v1740 = vadd.f32 %v1620, %v1732
        %v1741 = vadd.f32 %v1623, %v1733
        %v1742 = vadd.f32 %v1672, %v1734
        %v1743 = vadd.f32 %v1675, %v1735
        %v1744 = vadd.f32 %v1724, %v1736
        %v1745 = vadd.f32 %v1727, %v1737
        %v1746 = vsel %vm690, %v1738, -inf
        %1747 = vmax.xlane.f32.xlu0 %v1746
        %v1748 = vpop.xlane.xlu0 %1747
        %v1749 = vsel %vm690, %v1739, -inf
        %1750 = vmax.xlane.f32.xlu0 %v1749
        %v1751 = vpop.xlane.xlu0 %1750
        %v1752 = vsel %vm690, %v1740, -inf
        %1753 = vmax.xlane.f32.xlu0 %v1752
        %v1754 = vpop.xlane.xlu0 %1753
        %v1755 = vsel %vm690, %v1741, -inf
        %1756 = vmax.xlane.f32.xlu0 %v1755
        %v1757 = vpop.xlane.xlu0 %1756
        %v1758 = vsel %vm690, %v1742, -inf
        %1759 = vmax.xlane.f32.xlu0 %v1758
        %v1760 = vpop.xlane.xlu0 %1759
        %v1761 = vsel %vm690, %v1743, -inf
        %1762 = vmax.xlane.f32.xlu0 %v1761
        %v1763 = vpop.xlane.xlu0 %1762
        %v1764 = vsel %vm690, %v1744, -inf
        %1765 = vmax.xlane.f32.xlu0 %v1764
        %v1766 = vpop.xlane.xlu0 %1765
        %v1767 = vsel %vm690, %v1745, -inf
        %1768 = vmax.xlane.f32.xlu0 %v1767
        %v1769 = vpop.xlane.xlu0 %1768
        %v1770 = vsub.f32 %v1738, %v1748
        %v1771 = vsub.f32 %v1739, %v1751
        %v1772 = vsub.f32 %v1740, %v1754
        %v1773 = vsub.f32 %v1741, %v1757
        %v1774 = vsub.f32 %v1742, %v1760
        %v1775 = vsub.f32 %v1743, %v1763
        %v1776 = vsub.f32 %v1744, %v1766
        %v1777 = vsub.f32 %v1745, %v1769
        %v1778 = vmul.f32 %v1770, 1.442695
        %v1779 = vpow.pop %v1778
        %v1780 = vmul.f32 %v1771, 1.442695
        %v1781 = vpow.pop %v1780
        %v1782 = vmul.f32 %v1772, 1.442695
        %v1783 = vpow.pop %v1782
        %v1784 = vmul.f32 %v1773, 1.442695
        %v1785 = vpow.pop %v1784
        %v1786 = vmul.f32 %v1774, 1.442695
        %v1787 = vpow.pop %v1786
        %v1788 = vmul.f32 %v1775, 1.442695
        %v1789 = vpow.pop %v1788
        %v1790 = vmul.f32 %v1776, 1.442695
        %v1791 = vpow.pop %v1790
        %v1792 = vmul.f32 %v1777, 1.442695
        %v1793 = vpow.pop %v1792
        %v1794 = vsel %vm690, %v1779, 0.0
        %1795 = vadd.xlane.f32.xlu0 %v1794
        %v1796 = vpop.xlane.xlu0 %1795
        %v1797 = vsel %vm690, %v1781, 0.0
        %1798 = vadd.xlane.f32.xlu0 %v1797
        %v1799 = vpop.xlane.xlu0 %1798
        %v1800 = vsel %vm690, %v1783, 0.0
        %1801 = vadd.xlane.f32.xlu0 %v1800
        %v1802 = vpop.xlane.xlu0 %1801
        %v1803 = vsel %vm690, %v1785, 0.0
        %1804 = vadd.xlane.f32.xlu0 %v1803
        %v1805 = vpop.xlane.xlu0 %1804
        %v1806 = vsel %vm690, %v1787, 0.0
        %1807 = vadd.xlane.f32.xlu0 %v1806
        %v1808 = vpop.xlane.xlu0 %1807
        %v1809 = vsel %vm690, %v1789, 0.0
        %1810 = vadd.xlane.f32.xlu0 %v1809
        %v1811 = vpop.xlane.xlu0 %1810
        %v1812 = vsel %vm690, %v1791, 0.0
        %1813 = vadd.xlane.f32.xlu0 %v1812
        %v1814 = vpop.xlane.xlu0 %1813
        %v1815 = vsel %vm690, %v1793, 0.0
        %1816 = vadd.xlane.f32.xlu0 %v1815
        %v1817 = vpop.xlane.xlu0 %1816
        %v1818 = vrcp.pop %v1796
        %v1819 = vrcp.pop %v1799
        %v1820 = vrcp.pop %v1802
        %v1821 = vrcp.pop %v1805
        %v1822 = vrcp.pop %v1808
        %v1823 = vrcp.pop %v1811
        %v1824 = vrcp.pop %v1814
        %v1825 = vrcp.pop %v1817
        %v1826 = vmul.f32 %v1779, %v1818
        %v1827 = vmul.f32 %v1781, %v1819
        %v1828 = vmul.f32 %v1783, %v1820
        %v1829 = vmul.f32 %v1785, %v1821
        %v1830 = vmul.f32 %v1787, %v1822
        %v1831 = vmul.f32 %v1789, %v1823
        %v1832 = vmul.f32 %v1791, %v1824
        %v1833 = vmul.f32 %v1793, %v1825
        %v1834 = vpack.c.bf16 %v1827, %v1826
        %v1835 = vpack.c.bf16 %v1829, %v1828
        %v1836 = vpack.c.bf16 %v1831, %v1830
        %v1837 = vpack.c.bf16 %v1833, %v1832
        %1838 = vrot.lane.b32.xlu0 %v1515, 48
        %v1839 = vpop.permute.xlu0 %1838
        %v1842 = vsel %vm690, %v1834, 0
        %1844 = vmatprep.subr.bf16.mxu0 0
        %1845 = vmatpush1.bf16.msra.mxu0 %v1839
        %1846 = vmatprep.subr.bf16.mxu0 0
        %1847 = vmatpush1.bf16.msra.mxu0 0
        %1848 = vmatprep.subr.bf16.mxu0 0
        %1849 = vmatpush1.bf16.msra.mxu0 0
        %1850 = vmatprep.subr.bf16.mxu0 0
        %1851 = vmatpush1.bf16.msra.mxu0 0
        %1852 = vmatprep.subr.bf16.mxu0 0
        %1853 = vmatpush1.bf16.msra.mxu0 0
        %1854 = vmatprep.subr.bf16.mxu0 0
        %1855 = vmatpush1.bf16.msra.mxu0 0
        %1856 = vmatprep.subr.bf16.mxu0 0
        %1857 = vmatpush1.bf16.msra.mxu0 0
        %1858 = vmatprep.subr.bf16.mxu0 0
        %1859 = vmatpush1.bf16.msra.mxu0 0
        %1860 = vmatprep.subr.bf16.mxu0 0
        %1861 = vmatpush1.bf16.msra.mxu0 0
        %1862 = vmatprep.subr.bf16.mxu0 0
        %1863 = vmatpush1.bf16.msra.mxu0 0
        %1864 = vmatprep.subr.bf16.mxu0 0
        %1865 = vmatpush1.bf16.msra.mxu0 0
        %1866 = vmatprep.subr.bf16.mxu0 0
        %1867 = vmatpush1.bf16.msra.mxu0 0
        %1868 = vmatprep.subr.bf16.mxu0 0
        %1869 = vmatpush1.bf16.msra.mxu0 0
        %1870 = vmatprep.subr.bf16.mxu0 0
        %1871 = vmatpush1.bf16.msra.mxu0 0
        %1872 = vmatprep.subr.bf16.mxu0 0
        %1873 = vmatpush1.bf16.msra.mxu0 0
        %1874 = vmatprep.subr.bf16.mxu0 0
        %1875 = vmatpush1.bf16.msra.mxu0 0
        %1876 = vmatprep.mubr.bf16.mxu0 0
        %1877 = vmatmul.mubr.bf16.gmra.mrb[0].mxu0 %v1842
        %v1878 = vpop.f32.mrb[0].mxu0
        %v1879 = vadd.f32 0.0, %v1878
        %v1880 = vpop.f32.mrb[0].mxu0
        %v1881 = vpop.f32.mrb[0].mxu0
        %v1882 = vadd.f32 0.0, %v1881
        %v1883 = vpop.f32.mrb[0].mxu0
        %1884 = vdwg.mxu0
        %1885 = vrot.lane.b32.xlu0 %v1516, 48
        %v1886 = vpop.permute.xlu0 %1885
        %v1889 = vsel %vm690, %v1835, 0
        %1891 = vmatprep.subr.bf16.mxu0 0
        %1892 = vmatpush1.bf16.msra.mxu0 %v1886
        %1893 = vmatprep.subr.bf16.mxu0 0
        %1894 = vmatpush1.bf16.msra.mxu0 0
        %1895 = vmatprep.subr.bf16.mxu0 0
        %1896 = vmatpush1.bf16.msra.mxu0 0
        %1897 = vmatprep.subr.bf16.mxu0 0
        %1898 = vmatpush1.bf16.msra.mxu0 0
        %1899 = vmatprep.subr.bf16.mxu0 0
        %1900 = vmatpush1.bf16.msra.mxu0 0
        %1901 = vmatprep.subr.bf16.mxu0 0
        %1902 = vmatpush1.bf16.msra.mxu0 0
        %1903 = vmatprep.subr.bf16.mxu0 0
        %1904 = vmatpush1.bf16.msra.mxu0 0
        %1905 = vmatprep.subr.bf16.mxu0 0
        %1906 = vmatpush1.bf16.msra.mxu0 0
        %1907 = vmatprep.subr.bf16.mxu0 0
        %1908 = vmatpush1.bf16.msra.mxu0 0
        %1909 = vmatprep.subr.bf16.mxu0 0
        %1910 = vmatpush1.bf16.msra.mxu0 0
        %1911 = vmatprep.subr.bf16.mxu0 0
        %1912 = vmatpush1.bf16.msra.mxu0 0
        %1913 = vmatprep.subr.bf16.mxu0 0
        %1914 = vmatpush1.bf16.msra.mxu0 0
        %1915 = vmatprep.subr.bf16.mxu0 0
        %1916 = vmatpush1.bf16.msra.mxu0 0
        %1917 = vmatprep.subr.bf16.mxu0 0
        %1918 = vmatpush1.bf16.msra.mxu0 0
        %1919 = vmatprep.subr.bf16.mxu0 0
        %1920 = vmatpush1.bf16.msra.mxu0 0
        %1921 = vmatprep.subr.bf16.mxu0 0
        %1922 = vmatpush1.bf16.msra.mxu0 0
        %1923 = vmatprep.mubr.bf16.mxu0 0
        %1924 = vmatmul.mubr.bf16.gmra.mrb[0].mxu0 %v1889
        %v1925 = vpop.f32.mrb[0].mxu0
        %v1926 = vadd.f32 0.0, %v1925
        %v1927 = vpop.f32.mrb[0].mxu0
        %v1928 = vpop.f32.mrb[0].mxu0
        %v1929 = vadd.f32 0.0, %v1928
        %v1930 = vpop.f32.mrb[0].mxu0
        %1931 = vdwg.mxu0
        %1932 = vrot.lane.b32.xlu0 %v1517, 48
        %v1933 = vpop.permute.xlu0 %1932
        %v1936 = vsel %vm690, %v1836, 0
        %1938 = vmatprep.subr.bf16.mxu0 0
        %1939 = vmatpush1.bf16.msra.mxu0 %v1933
        %1940 = vmatprep.subr.bf16.mxu0 0
        %1941 = vmatpush1.bf16.msra.mxu0 0
        %1942 = vmatprep.subr.bf16.mxu0 0
        %1943 = vmatpush1.bf16.msra.mxu0 0
        %1944 = vmatprep.subr.bf16.mxu0 0
        %1945 = vmatpush1.bf16.msra.mxu0 0
        %1946 = vmatprep.subr.bf16.mxu0 0
        %1947 = vmatpush1.bf16.msra.mxu0 0
        %1948 = vmatprep.subr.bf16.mxu0 0
        %1949 = vmatpush1.bf16.msra.mxu0 0
        %1950 = vmatprep.subr.bf16.mxu0 0
        %1951 = vmatpush1.bf16.msra.mxu0 0
        %1952 = vmatprep.subr.bf16.mxu0 0
        %1953 = vmatpush1.bf16.msra.mxu0 0
        %1954 = vmatprep.subr.bf16.mxu0 0
        %1955 = vmatpush1.bf16.msra.mxu0 0
        %1956 = vmatprep.subr.bf16.mxu0 0
        %1957 = vmatpush1.bf16.msra.mxu0 0
        %1958 = vmatprep.subr.bf16.mxu0 0
        %1959 = vmatpush1.bf16.msra.mxu0 0
        %1960 = vmatprep.subr.bf16.mxu0 0
        %1961 = vmatpush1.bf16.msra.mxu0 0
        %1962 = vmatprep.subr.bf16.mxu0 0
        %1963 = vmatpush1.bf16.msra.mxu0 0
        %1964 = vmatprep.subr.bf16.mxu0 0
        %1965 = vmatpush1.bf16.msra.mxu0 0
        %1966 = vmatprep.subr.bf16.mxu0 0
        %1967 = vmatpush1.bf16.msra.mxu0 0
        %1968 = vmatprep.subr.bf16.mxu0 0
        %1969 = vmatpush1.bf16.msra.mxu0 0
        %1970 = vmatprep.mubr.bf16.mxu0 0
        %1971 = vmatmul.mubr.bf16.gmra.mrb[0].mxu0 %v1936
        %v1972 = vpop.f32.mrb[0].mxu0
        %v1973 = vadd.f32 0.0, %v1972
        %v1974 = vpop.f32.mrb[0].mxu0
        %v1975 = vpop.f32.mrb[0].mxu0
        %v1976 = vadd.f32 0.0, %v1975
        %v1977 = vpop.f32.mrb[0].mxu0
        %1978 = vdwg.mxu0
        %1979 = vrot.lane.b32.xlu0 %v1518, 48
        %v1980 = vpop.permute.xlu0 %1979
        %v1983 = vsel %vm690, %v1837, 0
        %1985 = vmatprep.subr.bf16.mxu0 0
        %1986 = vmatpush1.bf16.msra.mxu0 %v1980
        %1987 = vmatprep.subr.bf16.mxu0 0
        %1988 = vmatpush1.bf16.msra.mxu0 0
        %1989 = vmatprep.subr.bf16.mxu0 0
        %1990 = vmatpush1.bf16.msra.mxu0 0
        %1991 = vmatprep.subr.bf16.mxu0 0
        %1992 = vmatpush1.bf16.msra.mxu0 0
        %1993 = vmatprep.subr.bf16.mxu0 0
        %1994 = vmatpush1.bf16.msra.mxu0 0
        %1995 = vmatprep.subr.bf16.mxu0 0
        %1996 = vmatpush1.bf16.msra.mxu0 0
        %1997 = vmatprep.subr.bf16.mxu0 0
        %1998 = vmatpush1.bf16.msra.mxu0 0
        %1999 = vmatprep.subr.bf16.mxu0 0
        %2000 = vmatpush1.bf16.msra.mxu0 0
        %2001 = vmatprep.subr.bf16.mxu0 0
        %2002 = vmatpush1.bf16.msra.mxu0 0
        %2003 = vmatprep.subr.bf16.mxu0 0
        %2004 = vmatpush1.bf16.msra.mxu0 0
        %2005 = vmatprep.subr.bf16.mxu0 0
        %2006 = vmatpush1.bf16.msra.mxu0 0
        %2007 = vmatprep.subr.bf16.mxu0 0
        %2008 = vmatpush1.bf16.msra.mxu0 0
        %2009 = vmatprep.subr.bf16.mxu0 0
        %2010 = vmatpush1.bf16.msra.mxu0 0
        %2011 = vmatprep.subr.bf16.mxu0 0
        %2012 = vmatpush1.bf16.msra.mxu0 0
        %2013 = vmatprep.subr.bf16.mxu0 0
        %2014 = vmatpush1.bf16.msra.mxu0 0
        %2015 = vmatprep.subr.bf16.mxu0 0
        %2016 = vmatpush1.bf16.msra.mxu0 0
        %2017 = vmatprep.mubr.bf16.mxu0 0
        %2018 = vmatmul.mubr.bf16.gmra.mrb[0].mxu0 %v1983
        %v2019 = vpop.f32.mrb[0].mxu0
        %v2020 = vadd.f32 0.0, %v2019
        %v2021 = vpop.f32.mrb[0].mxu0
        %v2022 = vpop.f32.mrb[0].mxu0
        %v2023 = vadd.f32 0.0, %v2022
        %v2024 = vpop.f32.mrb[0].mxu0
        %2025 = vdwg.mxu0
        %v2026 = vpack.c.bf16 %v1882, %v1879
        %v2027 = vpack.c.bf16 %v1929, %v1926
        %v2028 = vpack.c.bf16 %v1976, %v1973
        %v2029 = vpack.c.bf16 %v2023, %v2020
        %2034 = vrot.lane.b32.xlu0 %v2026, 16
        %v2035 = vpop.permute.xlu0 %2034
        %2036 = vrot.lane.b32.xlu0 %v2027, 16
        %v2037 = vpop.permute.xlu0 %2036
        %2038 = vrot.lane.b32.xlu0 %v2028, 16
        %v2039 = vpop.permute.xlu0 %2038
        %2040 = vrot.lane.b32.xlu0 %v2029, 16
        %v2041 = vpop.permute.xlu0 %2040
        %vm2046 = vcmask 195712
        %2047 = vst.msk [vmem:[#allocation3] sm:$0xff] %vm2046, %v2035
        %2048 = vst.msk [vmem:[#allocation3 + $0x8] sm:$0xff] %vm2046, %v2037
        %2049 = vst.msk [vmem:[#allocation3 + $0x10] sm:$0xff] %vm2046, %v2039
        %2050 = vst.msk [vmem:[#allocation3 + $0x18] sm:$0xff] %vm2046, %v2041
        %v2051 = vld [vmem:[#allocation2] sm:$0xff]
        %v2052 = vld [vmem:[#allocation2 + $0x8] sm:$0xff]
        %v2053 = vld [vmem:[#allocation2 + $0x10] sm:$0xff]
        %v2054 = vld [vmem:[#allocation2 + $0x18] sm:$0xff]
        %s2055 = scalar_lea.vmem [#allocation7], 48
        %v2056 = vld [vmem:[%s2055] sm:$0xff]
        %v2057 = vld [vmem:[%s2055 + $0x8] sm:$0xff]
        %2059 = vrot.lane.b32.xlu0 %v2051, 104
        %v2060 = vpop.permute.xlu0 %2059
        %2061 = vrot.lane.b32.xlu0 %v2051, 72
        %v2062 = vpop.permute.xlu0 %2061
        %v2064 = vsel %vm476, %v2060, 0
        %v2067 = vsel %vm476, %v2062, 0
        %2069 = vmatprep.subr.bf16.mxu0 0
        %2070 = vmatpush1.bf16.xpose.msra.mxu0 %v2067
        %2071 = vmatprep.subr.bf16.mxu0 0
        %2072 = vmatpush1.bf16.xpose.msra.mxu0 0
        %2073 = vmatprep.subr.bf16.mxu0 0
        %2074 = vmatpush1.bf16.xpose.msra.mxu0 0
        %2075 = vmatprep.subr.bf16.mxu0 0
        %2076 = vmatpush1.bf16.xpose.msra.mxu0 0
        %2077 = vmatprep.subr.bf16.mxu0 0
        %2078 = vmatpush1.bf16.xpose.msra.mxu0 0
        %2079 = vmatprep.subr.bf16.mxu0 0
        %2080 = vmatpush1.bf16.xpose.msra.mxu0 0
        %2081 = vmatprep.subr.bf16.mxu0 0
        %2082 = vmatpush1.bf16.xpose.msra.mxu0 0
        %2083 = vmatprep.subr.bf16.mxu0 0
        %2084 = vmatpush1.bf16.xpose.msra.mxu0 0
        %2085 = vmatprep.subr.bf16.mxu0 0
        %2086 = vmatpush1.bf16.xpose.msra.mxu0 0
        %2087 = vmatprep.subr.bf16.mxu0 0
        %2088 = vmatpush1.bf16.xpose.msra.mxu0 0
        %2089 = vmatprep.subr.bf16.mxu0 0
        %2090 = vmatpush1.bf16.xpose.msra.mxu0 0
        %2091 = vmatprep.subr.bf16.mxu0 0
        %2092 = vmatpush1.bf16.xpose.msra.mxu0 0
        %2093 = vmatprep.subr.bf16.mxu0 0
        %2094 = vmatpush1.bf16.xpose.msra.mxu0 0
        %2095 = vmatprep.subr.bf16.mxu0 0
        %2096 = vmatpush1.bf16.xpose.msra.mxu0 0
        %2097 = vmatprep.subr.bf16.mxu0 0
        %2098 = vmatpush1.bf16.xpose.msra.mxu0 0
        %2099 = vmatprep.subr.bf16.mxu0 0
        %2100 = vmatpush1.bf16.xpose.msra.mxu0 0
        %2101 = vmatprep.mubr.bf16.mxu0 0
        %2102 = vmatmul.mubr.bf16.gmra.mrb[0].mxu0 %v2064
        %v2103 = vpop.f32.mrb[0].mxu0
        %v2104 = vadd.f32 %v2056, %v2103
        %v2105 = vpop.f32.mrb[0].mxu0
        %v2106 = vpop.f32.mrb[0].mxu0
        %v2107 = vadd.f32 %v2057, %v2106
        %v2108 = vpop.f32.mrb[0].mxu0
        %2109 = vdwg.mxu0
        %2111 = vrot.lane.b32.xlu0 %v2052, 104
        %v2112 = vpop.permute.xlu0 %2111
        %2113 = vrot.lane.b32.xlu0 %v2052, 72
        %v2114 = vpop.permute.xlu0 %2113
        %v2116 = vsel %vm476, %v2112, 0
        %v2119 = vsel %vm476, %v2114, 0
        %2121 = vmatprep.subr.bf16.mxu0 0
        %2122 = vmatpush1.bf16.xpose.msra.mxu0 %v2119
        %2123 = vmatprep.subr.bf16.mxu0 0
        %2124 = vmatpush1.bf16.xpose.msra.mxu0 0
        %2125 = vmatprep.subr.bf16.mxu0 0
        %2126 = vmatpush1.bf16.xpose.msra.mxu0 0
        %2127 = vmatprep.subr.bf16.mxu0 0
        %2128 = vmatpush1.bf16.xpose.msra.mxu0 0
        %2129 = vmatprep.subr.bf16.mxu0 0
        %2130 = vmatpush1.bf16.xpose.msra.mxu0 0
        %2131 = vmatprep.subr.bf16.mxu0 0
        %2132 = vmatpush1.bf16.xpose.msra.mxu0 0
        %2133 = vmatprep.subr.bf16.mxu0 0
        %2134 = vmatpush1.bf16.xpose.msra.mxu0 0
        %2135 = vmatprep.subr.bf16.mxu0 0
        %2136 = vmatpush1.bf16.xpose.msra.mxu0 0
        %2137 = vmatprep.subr.bf16.mxu0 0
        %2138 = vmatpush1.bf16.xpose.msra.mxu0 0
        %2139 = vmatprep.subr.bf16.mxu0 0
        %2140 = vmatpush1.bf16.xpose.msra.mxu0 0
        %2141 = vmatprep.subr.bf16.mxu0 0
        %2142 = vmatpush1.bf16.xpose.msra.mxu0 0
        %2143 = vmatprep.subr.bf16.mxu0 0
        %2144 = vmatpush1.bf16.xpose.msra.mxu0 0
        %2145 = vmatprep.subr.bf16.mxu0 0
        %2146 = vmatpush1.bf16.xpose.msra.mxu0 0
        %2147 = vmatprep.subr.bf16.mxu0 0
        %2148 = vmatpush1.bf16.xpose.msra.mxu0 0
        %2149 = vmatprep.subr.bf16.mxu0 0
        %2150 = vmatpush1.bf16.xpose.msra.mxu0 0
        %2151 = vmatprep.subr.bf16.mxu0 0
        %2152 = vmatpush1.bf16.xpose.msra.mxu0 0
        %2153 = vmatprep.mubr.bf16.mxu0 0
        %2154 = vmatmul.mubr.bf16.gmra.mrb[0].mxu0 %v2116
        %v2155 = vpop.f32.mrb[0].mxu0
        %v2156 = vadd.f32 %v2056, %v2155
        %v2157 = vpop.f32.mrb[0].mxu0
        %v2158 = vpop.f32.mrb[0].mxu0
        %v2159 = vadd.f32 %v2057, %v2158
        %v2160 = vpop.f32.mrb[0].mxu0
        %2161 = vdwg.mxu0
        %2163 = vrot.lane.b32.xlu0 %v2053, 104
        %v2164 = vpop.permute.xlu0 %2163
        %2165 = vrot.lane.b32.xlu0 %v2053, 72
        %v2166 = vpop.permute.xlu0 %2165
        %v2168 = vsel %vm476, %v2164, 0
        %v2171 = vsel %vm476, %v2166, 0
        %2173 = vmatprep.subr.bf16.mxu0 0
        %2174 = vmatpush1.bf16.xpose.msra.mxu0 %v2171
        %2175 = vmatprep.subr.bf16.mxu0 0
        %2176 = vmatpush1.bf16.xpose.msra.mxu0 0
        %2177 = vmatprep.subr.bf16.mxu0 0
        %2178 = vmatpush1.bf16.xpose.msra.mxu0 0
        %2179 = vmatprep.subr.bf16.mxu0 0
        %2180 = vmatpush1.bf16.xpose.msra.mxu0 0
        %2181 = vmatprep.subr.bf16.mxu0 0
        %2182 = vmatpush1.bf16.xpose.msra.mxu0 0
        %2183 = vmatprep.subr.bf16.mxu0 0
        %2184 = vmatpush1.bf16.xpose.msra.mxu0 0
        %2185 = vmatprep.subr.bf16.mxu0 0
        %2186 = vmatpush1.bf16.xpose.msra.mxu0 0
        %2187 = vmatprep.subr.bf16.mxu0 0
        %2188 = vmatpush1.bf16.xpose.msra.mxu0 0
        %2189 = vmatprep.subr.bf16.mxu0 0
        %2190 = vmatpush1.bf16.xpose.msra.mxu0 0
        %2191 = vmatprep.subr.bf16.mxu0 0
        %2192 = vmatpush1.bf16.xpose.msra.mxu0 0
        %2193 = vmatprep.subr.bf16.mxu0 0
        %2194 = vmatpush1.bf16.xpose.msra.mxu0 0
        %2195 = vmatprep.subr.bf16.mxu0 0
        %2196 = vmatpush1.bf16.xpose.msra.mxu0 0
        %2197 = vmatprep.subr.bf16.mxu0 0
        %2198 = vmatpush1.bf16.xpose.msra.mxu0 0
        %2199 = vmatprep.subr.bf16.mxu0 0
        %2200 = vmatpush1.bf16.xpose.msra.mxu0 0
        %2201 = vmatprep.subr.bf16.mxu0 0
        %2202 = vmatpush1.bf16.xpose.msra.mxu0 0
        %2203 = vmatprep.subr.bf16.mxu0 0
        %2204 = vmatpush1.bf16.xpose.msra.mxu0 0
        %2205 = vmatprep.mubr.bf16.mxu0 0
        %2206 = vmatmul.mubr.bf16.gmra.mrb[0].mxu0 %v2168
        %v2207 = vpop.f32.mrb[0].mxu0
        %v2208 = vadd.f32 %v2056, %v2207
        %v2209 = vpop.f32.mrb[0].mxu0
        %v2210 = vpop.f32.mrb[0].mxu0
        %v2211 = vadd.f32 %v2057, %v2210
        %v2212 = vpop.f32.mrb[0].mxu0
        %2213 = vdwg.mxu0
        %2215 = vrot.lane.b32.xlu0 %v2054, 104
        %v2216 = vpop.permute.xlu0 %2215
        %2217 = vrot.lane.b32.xlu0 %v2054, 72
        %v2218 = vpop.permute.xlu0 %2217
        %v2220 = vsel %vm476, %v2216, 0
        %v2223 = vsel %vm476, %v2218, 0
        %2225 = vmatprep.subr.bf16.mxu0 0
        %2226 = vmatpush1.bf16.xpose.msra.mxu0 %v2223
        %2227 = vmatprep.subr.bf16.mxu0 0
        %2228 = vmatpush1.bf16.xpose.msra.mxu0 0
        %2229 = vmatprep.subr.bf16.mxu0 0
        %2230 = vmatpush1.bf16.xpose.msra.mxu0 0
        %2231 = vmatprep.subr.bf16.mxu0 0
        %2232 = vmatpush1.bf16.xpose.msra.mxu0 0
        %2233 = vmatprep.subr.bf16.mxu0 0
        %2234 = vmatpush1.bf16.xpose.msra.mxu0 0
        %2235 = vmatprep.subr.bf16.mxu0 0
        %2236 = vmatpush1.bf16.xpose.msra.mxu0 0
        %2237 = vmatprep.subr.bf16.mxu0 0
        %2238 = vmatpush1.bf16.xpose.msra.mxu0 0
        %2239 = vmatprep.subr.bf16.mxu0 0
        %2240 = vmatpush1.bf16.xpose.msra.mxu0 0
        %2241 = vmatprep.subr.bf16.mxu0 0
        %2242 = vmatpush1.bf16.xpose.msra.mxu0 0
        %2243 = vmatprep.subr.bf16.mxu0 0
        %2244 = vmatpush1.bf16.xpose.msra.mxu0 0
        %2245 = vmatprep.subr.bf16.mxu0 0
        %2246 = vmatpush1.bf16.xpose.msra.mxu0 0
        %2247 = vmatprep.subr.bf16.mxu0 0
        %2248 = vmatpush1.bf16.xpose.msra.mxu0 0
        %2249 = vmatprep.subr.bf16.mxu0 0
        %2250 = vmatpush1.bf16.xpose.msra.mxu0 0
        %2251 = vmatprep.subr.bf16.mxu0 0
        %2252 = vmatpush1.bf16.xpose.msra.mxu0 0
        %2253 = vmatprep.subr.bf16.mxu0 0
        %2254 = vmatpush1.bf16.xpose.msra.mxu0 0
        %2255 = vmatprep.subr.bf16.mxu0 0
        %2256 = vmatpush1.bf16.xpose.msra.mxu0 0
        %2257 = vmatprep.mubr.bf16.mxu0 0
        %2258 = vmatmul.mubr.bf16.gmra.mrb[0].mxu0 %v2220
        %v2259 = vpop.f32.mrb[0].mxu0
        %v2260 = vadd.f32 %v2056, %v2259
        %v2261 = vpop.f32.mrb[0].mxu0
        %v2262 = vpop.f32.mrb[0].mxu0
        %v2263 = vadd.f32 %v2057, %v2262
        %v2264 = vpop.f32.mrb[0].mxu0
        %2265 = vdwg.mxu0
        %v2266 = vld [vmem:[#allocation9] sm:$0xff]
        %v2267 = vld [vmem:[#allocation9 + $0x8] sm:$0xff]
        %v2268 = vld [vmem:[#allocation9 + $0x10] sm:$0xff]
        %v2269 = vld [vmem:[#allocation9 + $0x18] sm:$0xff]
        %v2270 = vld [vmem:[#allocation9 + $0x20] sm:$0xff]
        %v2271 = vld [vmem:[#allocation9 + $0x28] sm:$0xff]
        %v2272 = vld [vmem:[#allocation9 + $0x30] sm:$0xff]
        %v2273 = vld [vmem:[#allocation9 + $0x38] sm:$0xff]
        %v2274 = vadd.f32 %v2104, %v2266
        %v2275 = vadd.f32 %v2107, %v2267
        %v2276 = vadd.f32 %v2156, %v2268
        %v2277 = vadd.f32 %v2159, %v2269
        %v2278 = vadd.f32 %v2208, %v2270
        %v2279 = vadd.f32 %v2211, %v2271
        %v2280 = vadd.f32 %v2260, %v2272
        %v2281 = vadd.f32 %v2263, %v2273
        %v2282 = vsel %vm690, %v2274, -inf
        %2283 = vmax.xlane.f32.xlu0 %v2282
        %v2284 = vpop.xlane.xlu0 %2283
        %v2285 = vsel %vm690, %v2275, -inf
        %2286 = vmax.xlane.f32.xlu0 %v2285
        %v2287 = vpop.xlane.xlu0 %2286
        %v2288 = vsel %vm690, %v2276, -inf
        %2289 = vmax.xlane.f32.xlu0 %v2288
        %v2290 = vpop.xlane.xlu0 %2289
        %v2291 = vsel %vm690, %v2277, -inf
        %2292 = vmax.xlane.f32.xlu0 %v2291
        %v2293 = vpop.xlane.xlu0 %2292
        %v2294 = vsel %vm690, %v2278, -inf
        %2295 = vmax.xlane.f32.xlu0 %v2294
        %v2296 = vpop.xlane.xlu0 %2295
        %v2297 = vsel %vm690, %v2279, -inf
        %2298 = vmax.xlane.f32.xlu0 %v2297
        %v2299 = vpop.xlane.xlu0 %2298
        %v2300 = vsel %vm690, %v2280, -inf
        %2301 = vmax.xlane.f32.xlu0 %v2300
        %v2302 = vpop.xlane.xlu0 %2301
        %v2303 = vsel %vm690, %v2281, -inf
        %2304 = vmax.xlane.f32.xlu0 %v2303
        %v2305 = vpop.xlane.xlu0 %2304
        %v2306 = vsub.f32 %v2274, %v2284
        %v2307 = vsub.f32 %v2275, %v2287
        %v2308 = vsub.f32 %v2276, %v2290
        %v2309 = vsub.f32 %v2277, %v2293
        %v2310 = vsub.f32 %v2278, %v2296
        %v2311 = vsub.f32 %v2279, %v2299
        %v2312 = vsub.f32 %v2280, %v2302
        %v2313 = vsub.f32 %v2281, %v2305
        %v2314 = vmul.f32 %v2306, 1.442695
        %v2315 = vpow.pop %v2314
        %v2316 = vmul.f32 %v2307, 1.442695
        %v2317 = vpow.pop %v2316
        %v2318 = vmul.f32 %v2308, 1.442695
        %v2319 = vpow.pop %v2318
        %v2320 = vmul.f32 %v2309, 1.442695
        %v2321 = vpow.pop %v2320
        %v2322 = vmul.f32 %v2310, 1.442695
        %v2323 = vpow.pop %v2322
        %v2324 = vmul.f32 %v2311, 1.442695
        %v2325 = vpow.pop %v2324
        %v2326 = vmul.f32 %v2312, 1.442695
        %v2327 = vpow.pop %v2326
        %v2328 = vmul.f32 %v2313, 1.442695
        %v2329 = vpow.pop %v2328
        %v2330 = vsel %vm690, %v2315, 0.0
        %2331 = vadd.xlane.f32.xlu0 %v2330
        %v2332 = vpop.xlane.xlu0 %2331
        %v2333 = vsel %vm690, %v2317, 0.0
        %2334 = vadd.xlane.f32.xlu0 %v2333
        %v2335 = vpop.xlane.xlu0 %2334
        %v2336 = vsel %vm690, %v2319, 0.0
        %2337 = vadd.xlane.f32.xlu0 %v2336
        %v2338 = vpop.xlane.xlu0 %2337
        %v2339 = vsel %vm690, %v2321, 0.0
        %2340 = vadd.xlane.f32.xlu0 %v2339
        %v2341 = vpop.xlane.xlu0 %2340
        %v2342 = vsel %vm690, %v2323, 0.0
        %2343 = vadd.xlane.f32.xlu0 %v2342
        %v2344 = vpop.xlane.xlu0 %2343
        %v2345 = vsel %vm690, %v2325, 0.0
        %2346 = vadd.xlane.f32.xlu0 %v2345
        %v2347 = vpop.xlane.xlu0 %2346
        %v2348 = vsel %vm690, %v2327, 0.0
        %2349 = vadd.xlane.f32.xlu0 %v2348
        %v2350 = vpop.xlane.xlu0 %2349
        %v2351 = vsel %vm690, %v2329, 0.0
        %2352 = vadd.xlane.f32.xlu0 %v2351
        %v2353 = vpop.xlane.xlu0 %2352
        %v2354 = vrcp.pop %v2332
        %v2355 = vrcp.pop %v2335
        %v2356 = vrcp.pop %v2338
        %v2357 = vrcp.pop %v2341
        %v2358 = vrcp.pop %v2344
        %v2359 = vrcp.pop %v2347
        %v2360 = vrcp.pop %v2350
        %v2361 = vrcp.pop %v2353
        %v2362 = vmul.f32 %v2315, %v2354
        %v2363 = vmul.f32 %v2317, %v2355
        %v2364 = vmul.f32 %v2319, %v2356
        %v2365 = vmul.f32 %v2321, %v2357
        %v2366 = vmul.f32 %v2323, %v2358
        %v2367 = vmul.f32 %v2325, %v2359
        %v2368 = vmul.f32 %v2327, %v2360
        %v2369 = vmul.f32 %v2329, %v2361
        %v2370 = vpack.c.bf16 %v2363, %v2362
        %v2371 = vpack.c.bf16 %v2365, %v2364
        %v2372 = vpack.c.bf16 %v2367, %v2366
        %v2373 = vpack.c.bf16 %v2369, %v2368
        %2374 = vrot.lane.b32.xlu0 %v2051, 40
        %v2375 = vpop.permute.xlu0 %2374
        %v2378 = vsel %vm690, %v2370, 0
        %2380 = vmatprep.subr.bf16.mxu0 0
        %2381 = vmatpush1.bf16.msra.mxu0 %v2375
        %2382 = vmatprep.subr.bf16.mxu0 0
        %2383 = vmatpush1.bf16.msra.mxu0 0
        %2384 = vmatprep.subr.bf16.mxu0 0
        %2385 = vmatpush1.bf16.msra.mxu0 0
        %2386 = vmatprep.subr.bf16.mxu0 0
        %2387 = vmatpush1.bf16.msra.mxu0 0
        %2388 = vmatprep.subr.bf16.mxu0 0
        %2389 = vmatpush1.bf16.msra.mxu0 0
        %2390 = vmatprep.subr.bf16.mxu0 0
        %2391 = vmatpush1.bf16.msra.mxu0 0
        %2392 = vmatprep.subr.bf16.mxu0 0
        %2393 = vmatpush1.bf16.msra.mxu0 0
        %2394 = vmatprep.subr.bf16.mxu0 0
        %2395 = vmatpush1.bf16.msra.mxu0 0
        %2396 = vmatprep.subr.bf16.mxu0 0
        %2397 = vmatpush1.bf16.msra.mxu0 0
        %2398 = vmatprep.subr.bf16.mxu0 0
        %2399 = vmatpush1.bf16.msra.mxu0 0
        %2400 = vmatprep.subr.bf16.mxu0 0
        %2401 = vmatpush1.bf16.msra.mxu0 0
        %2402 = vmatprep.subr.bf16.mxu0 0
        %2403 = vmatpush1.bf16.msra.mxu0 0
        %2404 = vmatprep.subr.bf16.mxu0 0
        %2405 = vmatpush1.bf16.msra.mxu0 0
        %2406 = vmatprep.subr.bf16.mxu0 0
        %2407 = vmatpush1.bf16.msra.mxu0 0
        %2408 = vmatprep.subr.bf16.mxu0 0
        %2409 = vmatpush1.bf16.msra.mxu0 0
        %2410 = vmatprep.subr.bf16.mxu0 0
        %2411 = vmatpush1.bf16.msra.mxu0 0
        %2412 = vmatprep.mubr.bf16.mxu0 0
        %2413 = vmatmul.mubr.bf16.gmra.mrb[0].mxu0 %v2378
        %v2414 = vpop.f32.mrb[0].mxu0
        %v2415 = vadd.f32 0.0, %v2414
        %v2416 = vpop.f32.mrb[0].mxu0
        %v2417 = vpop.f32.mrb[0].mxu0
        %v2418 = vadd.f32 0.0, %v2417
        %v2419 = vpop.f32.mrb[0].mxu0
        %2420 = vdwg.mxu0
        %2421 = vrot.lane.b32.xlu0 %v2052, 40
        %v2422 = vpop.permute.xlu0 %2421
        %v2425 = vsel %vm690, %v2371, 0
        %2427 = vmatprep.subr.bf16.mxu0 0
        %2428 = vmatpush1.bf16.msra.mxu0 %v2422
        %2429 = vmatprep.subr.bf16.mxu0 0
        %2430 = vmatpush1.bf16.msra.mxu0 0
        %2431 = vmatprep.subr.bf16.mxu0 0
        %2432 = vmatpush1.bf16.msra.mxu0 0
        %2433 = vmatprep.subr.bf16.mxu0 0
        %2434 = vmatpush1.bf16.msra.mxu0 0
        %2435 = vmatprep.subr.bf16.mxu0 0
        %2436 = vmatpush1.bf16.msra.mxu0 0
        %2437 = vmatprep.subr.bf16.mxu0 0
        %2438 = vmatpush1.bf16.msra.mxu0 0
        %2439 = vmatprep.subr.bf16.mxu0 0
        %2440 = vmatpush1.bf16.msra.mxu0 0
        %2441 = vmatprep.subr.bf16.mxu0 0
        %2442 = vmatpush1.bf16.msra.mxu0 0
        %2443 = vmatprep.subr.bf16.mxu0 0
        %2444 = vmatpush1.bf16.msra.mxu0 0
        %2445 = vmatprep.subr.bf16.mxu0 0
        %2446 = vmatpush1.bf16.msra.mxu0 0
        %2447 = vmatprep.subr.bf16.mxu0 0
        %2448 = vmatpush1.bf16.msra.mxu0 0
        %2449 = vmatprep.subr.bf16.mxu0 0
        %2450 = vmatpush1.bf16.msra.mxu0 0
        %2451 = vmatprep.subr.bf16.mxu0 0
        %2452 = vmatpush1.bf16.msra.mxu0 0
        %2453 = vmatprep.subr.bf16.mxu0 0
        %2454 = vmatpush1.bf16.msra.mxu0 0
        %2455 = vmatprep.subr.bf16.mxu0 0
        %2456 = vmatpush1.bf16.msra.mxu0 0
        %2457 = vmatprep.subr.bf16.mxu0 0
        %2458 = vmatpush1.bf16.msra.mxu0 0
        %2459 = vmatprep.mubr.bf16.mxu0 0
        %2460 = vmatmul.mubr.bf16.gmra.mrb[0].mxu0 %v2425
        %v2461 = vpop.f32.mrb[0].mxu0
        %v2462 = vadd.f32 0.0, %v2461
        %v2463 = vpop.f32.mrb[0].mxu0
        %v2464 = vpop.f32.mrb[0].mxu0
        %v2465 = vadd.f32 0.0, %v2464
        %v2466 = vpop.f32.mrb[0].mxu0
        %2467 = vdwg.mxu0
        %2468 = vrot.lane.b32.xlu0 %v2053, 40
        %v2469 = vpop.permute.xlu0 %2468
        %v2472 = vsel %vm690, %v2372, 0
        %2474 = vmatprep.subr.bf16.mxu0 0
        %2475 = vmatpush1.bf16.msra.mxu0 %v2469
        %2476 = vmatprep.subr.bf16.mxu0 0
        %2477 = vmatpush1.bf16.msra.mxu0 0
        %2478 = vmatprep.subr.bf16.mxu0 0
        %2479 = vmatpush1.bf16.msra.mxu0 0
        %2480 = vmatprep.subr.bf16.mxu0 0
        %2481 = vmatpush1.bf16.msra.mxu0 0
        %2482 = vmatprep.subr.bf16.mxu0 0
        %2483 = vmatpush1.bf16.msra.mxu0 0
        %2484 = vmatprep.subr.bf16.mxu0 0
        %2485 = vmatpush1.bf16.msra.mxu0 0
        %2486 = vmatprep.subr.bf16.mxu0 0
        %2487 = vmatpush1.bf16.msra.mxu0 0
        %2488 = vmatprep.subr.bf16.mxu0 0
        %2489 = vmatpush1.bf16.msra.mxu0 0
        %2490 = vmatprep.subr.bf16.mxu0 0
        %2491 = vmatpush1.bf16.msra.mxu0 0
        %2492 = vmatprep.subr.bf16.mxu0 0
        %2493 = vmatpush1.bf16.msra.mxu0 0
        %2494 = vmatprep.subr.bf16.mxu0 0
        %2495 = vmatpush1.bf16.msra.mxu0 0
        %2496 = vmatprep.subr.bf16.mxu0 0
        %2497 = vmatpush1.bf16.msra.mxu0 0
        %2498 = vmatprep.subr.bf16.mxu0 0
        %2499 = vmatpush1.bf16.msra.mxu0 0
        %2500 = vmatprep.subr.bf16.mxu0 0
        %2501 = vmatpush1.bf16.msra.mxu0 0
        %2502 = vmatprep.subr.bf16.mxu0 0
        %2503 = vmatpush1.bf16.msra.mxu0 0
        %2504 = vmatprep.subr.bf16.mxu0 0
        %2505 = vmatpush1.bf16.msra.mxu0 0
        %2506 = vmatprep.mubr.bf16.mxu0 0
        %2507 = vmatmul.mubr.bf16.gmra.mrb[0].mxu0 %v2472
        %v2508 = vpop.f32.mrb[0].mxu0
        %v2509 = vadd.f32 0.0, %v2508
        %v2510 = vpop.f32.mrb[0].mxu0
        %v2511 = vpop.f32.mrb[0].mxu0
        %v2512 = vadd.f32 0.0, %v2511
        %v2513 = vpop.f32.mrb[0].mxu0
        %2514 = vdwg.mxu0
        %2515 = vrot.lane.b32.xlu0 %v2054, 40
        %v2516 = vpop.permute.xlu0 %2515
        %v2519 = vsel %vm690, %v2373, 0
        %2521 = vmatprep.subr.bf16.mxu0 0
        %2522 = vmatpush1.bf16.msra.mxu0 %v2516
        %2523 = vmatprep.subr.bf16.mxu0 0
        %2524 = vmatpush1.bf16.msra.mxu0 0
        %2525 = vmatprep.subr.bf16.mxu0 0
        %2526 = vmatpush1.bf16.msra.mxu0 0
        %2527 = vmatprep.subr.bf16.mxu0 0
        %2528 = vmatpush1.bf16.msra.mxu0 0
        %2529 = vmatprep.subr.bf16.mxu0 0
        %2530 = vmatpush1.bf16.msra.mxu0 0
        %2531 = vmatprep.subr.bf16.mxu0 0
        %2532 = vmatpush1.bf16.msra.mxu0 0
        %2533 = vmatprep.subr.bf16.mxu0 0
        %2534 = vmatpush1.bf16.msra.mxu0 0
        %2535 = vmatprep.subr.bf16.mxu0 0
        %2536 = vmatpush1.bf16.msra.mxu0 0
        %2537 = vmatprep.subr.bf16.mxu0 0
        %2538 = vmatpush1.bf16.msra.mxu0 0
        %2539 = vmatprep.subr.bf16.mxu0 0
        %2540 = vmatpush1.bf16.msra.mxu0 0
        %2541 = vmatprep.subr.bf16.mxu0 0
        %2542 = vmatpush1.bf16.msra.mxu0 0
        %2543 = vmatprep.subr.bf16.mxu0 0
        %2544 = vmatpush1.bf16.msra.mxu0 0
        %2545 = vmatprep.subr.bf16.mxu0 0
        %2546 = vmatpush1.bf16.msra.mxu0 0
        %2547 = vmatprep.subr.bf16.mxu0 0
        %2548 = vmatpush1.bf16.msra.mxu0 0
        %2549 = vmatprep.subr.bf16.mxu0 0
        %2550 = vmatpush1.bf16.msra.mxu0 0
        %2551 = vmatprep.subr.bf16.mxu0 0
        %2552 = vmatpush1.bf16.msra.mxu0 0
        %2553 = vmatprep.mubr.bf16.mxu0 0
        %2554 = vmatmul.mubr.bf16.gmra.mrb[0].mxu0 %v2519
        %v2555 = vpop.f32.mrb[0].mxu0
        %v2556 = vadd.f32 0.0, %v2555
        %v2557 = vpop.f32.mrb[0].mxu0
        %v2558 = vpop.f32.mrb[0].mxu0
        %v2559 = vadd.f32 0.0, %v2558
        %v2560 = vpop.f32.mrb[0].mxu0
        %2561 = vdwg.mxu0
        %v2562 = vpack.c.bf16 %v2418, %v2415
        %v2563 = vpack.c.bf16 %v2465, %v2462
        %v2564 = vpack.c.bf16 %v2512, %v2509
        %v2565 = vpack.c.bf16 %v2559, %v2556
        %2570 = vrot.lane.b32.xlu0 %v2562, 24
        %v2571 = vpop.permute.xlu0 %2570
        %2572 = vrot.lane.b32.xlu0 %v2563, 24
        %v2573 = vpop.permute.xlu0 %2572
        %2574 = vrot.lane.b32.xlu0 %v2564, 24
        %v2575 = vpop.permute.xlu0 %2574
        %2576 = vrot.lane.b32.xlu0 %v2565, 24
        %v2577 = vpop.permute.xlu0 %2576
        %vm2582 = vcmask 261312
        %2583 = vst.msk [vmem:[#allocation3] sm:$0xff] %vm2582, %v2571
        %2584 = vst.msk [vmem:[#allocation3 + $0x8] sm:$0xff] %vm2582, %v2573
        %2585 = vst.msk [vmem:[#allocation3 + $0x10] sm:$0xff] %vm2582, %v2575
        %2586 = vst.msk [vmem:[#allocation3 + $0x18] sm:$0xff] %vm2582, %v2577
        %v2587 = vld [vmem:[#allocation3] sm:$0xff]
        %v2588 = vld [vmem:[#allocation3 + $0x8] sm:$0xff]
        %v2589 = vld [vmem:[#allocation3 + $0x10] sm:$0xff]
        %v2590 = vld [vmem:[#allocation3 + $0x18] sm:$0xff]
        %v2591 = vld [vmem:[%s5] sm:$0xf]
        %v2592 = vld [vmem:[%s5 + $0x4] sm:$0xf]
        %v2593 = vld [vmem:[%s5 + $0x8] sm:$0xf]
        %v2594 = vld [vmem:[%s5 + $0xc] sm:$0xf]
        %v2595 = vld [vmem:[%s6] sm:$0x1]
        %v2597 = vlaneseq
        %v2598 = vshrl.u32 %v2597, 7
        %v2599 = vsub.s32 0, %v2598
        %v2600 = vrot.slane %v2595, %v2599
        %v2606 = vunpack.c.l.b16 %v2591
        %v2607 = vunpack.c.l.b16 %v2592
        %v2608 = vunpack.c.l.b16 %v2593
        %v2609 = vunpack.c.l.b16 %v2594
        %v2610 = vpack.c.b16 %v2607, %v2606
        %v2611 = vpack.c.b16 %v2609, %v2608
        %v2615 = vsel %vm380, %v2587, 0
        %v2618 = vsel %vm380, %v2588, 0
        %v2621 = vsel %vm380, %v2589, 0
        %v2624 = vsel %vm380, %v2590, 0
        %2626 = vmatprep.subr.bf16.mxu0 0
        %2627 = vmatpush1.bf16.msra.mxu0 %v2610
        %2628 = vmatprep.subr.bf16.mxu0 0
        %2629 = vmatpush1.bf16.msra.mxu0 %v2611
        %2630 = vmatprep.subr.bf16.mxu0 0
        %2631 = vmatpush1.bf16.msra.mxu0 0
        %2632 = vmatprep.subr.bf16.mxu0 0
        %2633 = vmatpush1.bf16.msra.mxu0 0
        %2634 = vmatprep.subr.bf16.mxu0 0
        %2635 = vmatpush1.bf16.msra.mxu0 0
        %2636 = vmatprep.subr.bf16.mxu0 0
        %2637 = vmatpush1.bf16.msra.mxu0 0
        %2638 = vmatprep.subr.bf16.mxu0 0
        %2639 = vmatpush1.bf16.msra.mxu0 0
        %2640 = vmatprep.subr.bf16.mxu0 0
        %2641 = vmatpush1.bf16.msra.mxu0 0
        %2642 = vmatprep.subr.bf16.mxu0 0
        %2643 = vmatpush1.bf16.msra.mxu0 0
        %2644 = vmatprep.subr.bf16.mxu0 0
        %2645 = vmatpush1.bf16.msra.mxu0 0
        %2646 = vmatprep.subr.bf16.mxu0 0
        %2647 = vmatpush1.bf16.msra.mxu0 0
        %2648 = vmatprep.subr.bf16.mxu0 0
        %2649 = vmatpush1.bf16.msra.mxu0 0
        %2650 = vmatprep.subr.bf16.mxu0 0
        %2651 = vmatpush1.bf16.msra.mxu0 0
        %2652 = vmatprep.subr.bf16.mxu0 0
        %2653 = vmatpush1.bf16.msra.mxu0 0
        %2654 = vmatprep.subr.bf16.mxu0 0
        %2655 = vmatpush1.bf16.msra.mxu0 0
        %2656 = vmatprep.subr.bf16.mxu0 0
        %2657 = vmatpush1.bf16.msra.mxu0 0
        %2658 = vmatprep.mubr.bf16.mxu0 0
        %2659 = vmatmul.mubr.bf16.gmra.mrb[0].mxu0 %v2615
        %v2660 = vpop.f32.mrb[0].mxu0
        %v2661 = vadd.f32 %v2600, %v2660
        %v2662 = vpop.f32.mrb[0].mxu0
        %v2663 = vpop.f32.mrb[0].mxu0
        %v2664 = vadd.f32 %v2600, %v2663
        %v2665 = vpop.f32.mrb[0].mxu0
        %2666 = vmatprep.mubr.bf16.mxu0 0
        %2667 = vmatmul.mubr.bf16.gmra.mrb[0].mxu0 %v2618
        %v2668 = vpop.f32.mrb[0].mxu0
        %v2669 = vadd.f32 %v2600, %v2668
        %v2670 = vpop.f32.mrb[0].mxu0
        %v2671 = vpop.f32.mrb[0].mxu0
        %v2672 = vadd.f32 %v2600, %v2671
        %v2673 = vpop.f32.mrb[0].mxu0
        %2674 = vmatprep.mubr.bf16.mxu0 0
        %2675 = vmatmul.mubr.bf16.gmra.mrb[0].mxu0 %v2621
        %v2676 = vpop.f32.mrb[0].mxu0
        %v2677 = vadd.f32 %v2600, %v2676
        %v2678 = vpop.f32.mrb[0].mxu0
        %v2679 = vpop.f32.mrb[0].mxu0
        %v2680 = vadd.f32 %v2600, %v2679
        %v2681 = vpop.f32.mrb[0].mxu0
        %2682 = vmatprep.mubr.bf16.mxu0 0
        %2683 = vmatmul.mubr.bf16.gmra.mrb[0].mxu0 %v2624
        %v2684 = vpop.f32.mrb[0].mxu0
        %v2685 = vadd.f32 %v2600, %v2684
        %v2686 = vpop.f32.mrb[0].mxu0
        %v2687 = vpop.f32.mrb[0].mxu0
        %v2688 = vadd.f32 %v2600, %v2687
        %v2689 = vpop.f32.mrb[0].mxu0
        %2690 = vdwg.mxu0
        %2691 = vst.msk [vmem:[%s341] sm:$0xff] %vm380, %v2661
        %2692 = vst.msk [vmem:[%s341 + $0x8] sm:$0xff] %vm380, %v2664
        %2693 = vst.msk [vmem:[%s341 + $0x10] sm:$0xff] %vm380, %v2669
        %2694 = vst.msk [vmem:[%s341 + $0x18] sm:$0xff] %vm380, %v2672
        %2695 = vst.msk [vmem:[%s341 + $0x20] sm:$0xff] %vm380, %v2677
        %2696 = vst.msk [vmem:[%s341 + $0x28] sm:$0xff] %vm380, %v2680
        %2697 = vst.msk [vmem:[%s341 + $0x30] sm:$0xff] %vm380, %v2685
        %2698 = vst.msk [vmem:[%s341 + $0x38] sm:$0xff] %vm380, %v2688
        %s2699 = sand.u32 %s186, 1
        %s2700 = scalar_lea.sflag [#allocation6], %s2699
        %s2701 = sand.u32 %s186, 1
        %s2702 = smul.addr %s2701, 64
        %s2703 = scalar_lea.vmem [#allocation12], %s2702
        // Predicated region
        $region65: #{tpu_custom_call.1} parent=47 // pred_check
          %p2704 = pneg %p196
        $region66: #{tpu_custom_call.1} parent=47 // pred_check_branch
          %2706 = sbr.rel (%p2704) target = $region68
        $region67: #{tpu_custom_call.1} parent=47 // pred_region
          %s2707 = smul.u32 4, %s26
          %s2709 = ssub.s32 1024, 1024
          %2710 = vsyncadd %s2700, %s2709
          %s2711 = smul.addr %s2707, 2
          %s2712 = smul.addr %s2711, 128
          %s2713 = scalar_lea.hbm %s7, %s2712
          %s2714 = sshll.u32 %s2703, 4
          %s2715 = int_to_ptr.vmem [resolvable:$true] %s2714
          %2720 = dma.vmem_to_hbm [thread:$0]  %s2715, 1024, %s2713, %s2700, 128, 128, 8
        $region68: #{tpu_custom_call.1} parent=47 // pred_fallthru
          _
      $region48: #{tpu_custom_call.1} parent=5 // pred_fallthru
        _
      %p2721 = scmp.le.s32.totalorder 2, %s21
      // Predicated region
      $region69: #{tpu_custom_call.1} parent=5 // pred_check
        %p2722 = pneg %p2721
      $region70: #{tpu_custom_call.1} parent=5 // pred_check_branch
        %2724 = sbr.rel (%p2722) target = $region72
      $region71: #{tpu_custom_call.1} parent=5 // pred_region
        %s2725 = ssub.s32 %s21, 2
        // Predicated region
        $region73: #{tpu_custom_call.1} parent=71 // pred_check
          %p2726 = pneg %p202
        $region74: #{tpu_custom_call.1} parent=71 // pred_check_branch
          %2728 = sbr.rel (%p2726) target = $region76
        $region75: #{tpu_custom_call.1} parent=71 // pred_region
          %s2729 = sand.u32 %s187, 1
          %s2730 = scalar_lea.sflag [#allocation6], %s2729
          %s2731 = sand.u32 %s187, 1
          %s2732 = smul.addr %s2731, 64
          %s2733 = scalar_lea.vmem [#allocation12], %s2732
          %2734 = dma.done %s2730, 1024
        $region76: #{tpu_custom_call.1} parent=71 // pred_fallthru
          _
      $region72: #{tpu_custom_call.1} parent=5 // pred_fallthru
        _
    $region6: #{tpu_custom_call.1} parent=1 // loop_footer
      %s25 = sadd.s32 1, %s21
    $region7: #{tpu_custom_call.1} parent=1 // loop_footer_branch
      %20 = sbr.rel target = $region3
    $region8: #{tpu_custom_call.1} parent=1 // loop_exit
      _
    %2735 = vsyncpa [#allocation5], 1
    %s2736 = scalar_lea.sflag [#allocation5], 1
    %2737 = vsyncpa %s2736, 1
    %2738 = vsyncpa [#allocation8], 1
    %2739 = vsyncpa [#allocation11], 1
    %2740 = vsyncpa [#allocation6], 1
    %s2741 = scalar_lea.sflag [#allocation6], 1
    %2742 = vsyncpa %s2741, 1

</llo_original>
